<compile_context>
chip_gen: v5e
topology: v5e:2x2
jax: 0.10.0
libtpu: 0.0.40
codegen_flags: <defaults>
</compile_context>

<pallas_src>
import jax
import jax.numpy as jnp
from jax.experimental import pallas as pl
from jax.experimental.pallas import tpu as pltpu

# Logical (PyTorch) feature sizes and the lane-padded hidden size.
D_IN, D_H, D_OUT = 500, 600, 500
P_H = 640  # 600 -> next multiple of 128


def _round_up(x, m):
    return ((x + m - 1) // m) * m


def _tpu_config():
    """Returns (tile_cap, vmem_limit_bytes, n_cores, act_dtype) for this TPU gen."""
    try:
        kind = jax.devices()[0].device_kind.lower()
    except Exception:  # pragma: no cover - defensive
        kind = ""
    old_gen = any(t in kind for t in ("v2", "v3", "v4", "v5"))
    # v5e has no bf16 EUP/VPU -> keep the transcendental in f32 there.
    act_dtype = jnp.float32 if old_gen else jnp.bfloat16
    if any(t in kind for t in ("v5", "v6")):
        # Single TensorCore, 128 MiB VMEM: big tiles amortize per-step overhead.
        return 2048, 64 * 1024 * 1024, 1, act_dtype
    # v7x (or unknown): 64 MiB VMEM per TC, 2 TCs share the "parallel" grid axis.
    return 1024, 48 * 1024 * 1024, 2, act_dtype


def _make_kernel(act_dtype):
    def kernel(x_ref, w1_ref, b1_ref, w2_ref, b2_ref, w3_ref, b3_ref, o_ref):
        def sigmoid(h):
            # sigmoid(h) = 0.5*tanh(0.5*h) + 0.5: single EUP transcendental.
            t = jnp.tanh((h * 0.5).astype(act_dtype))
            return (t * 0.5 + 0.5).astype(jnp.bfloat16)

        # x arrives as f32 (tile, 500); cast to bf16 in-register (no HBM pre-pass).
        x = x_ref[...].astype(jnp.bfloat16)
        h1 = jnp.dot(x, w1_ref[...], preferred_element_type=jnp.float32) + b1_ref[...]
        a1 = sigmoid(h1)
        h2 = jnp.dot(a1, w2_ref[...], preferred_element_type=jnp.float32) + b2_ref[...]
        a2 = sigmoid(h2)
        # 500-wide f32 store directly into the (tile, 500) output block.
        o_ref[...] = (
            jnp.dot(a2, w3_ref[...], preferred_element_type=jnp.float32) + b3_ref[...]
        )

    return kernel


def prepare_params(params):
    """PyTorch-layout params -> kernel layout: W^T, hidden dim padded to 640, bf16."""
    w1, b1, w2, b2, w3, b3 = params  # w: (out, in) f32, b: (out,) f32

    def padw(w, rows, cols):
        wt = w.T
        wt = jnp.pad(wt, ((0, rows - wt.shape[0]), (0, cols - wt.shape[1])))
        return wt.astype(jnp.bfloat16)

    def padb(b, cols):
        return jnp.pad(b, (0, cols - b.shape[0])).reshape(1, cols).astype(jnp.float32)

    return (
        padw(w1, D_IN, P_H), padb(b1, P_H),     # (500, 640), (1, 640)
        padw(w2, P_H, P_H), padb(b2, P_H),      # (640, 640), (1, 640)
        padw(w3, P_H, D_OUT), padb(b3, D_OUT),  # (640, 500), (1, 500)
    )


@jax.jit
def ann_forward(inputs, prepared_params):
    """inputs: (N, C, 500) float32 -> (N, C, 500) float32."""
    w1p, b1p, w2p, b2p, w3p, b3p = prepared_params
    N, C, L = inputs.shape
    assert L == D_IN
    M = N * C
    x = inputs.reshape(M, L)  # free reshape, no pad / cast pre-pass

    tile_cap, vmem_limit, n_cores, act_dtype = _tpu_config()
    # M-tile: multiple of 8 (sublane), generation-capped, split so a dual-TC
    # chip (v7x) gets >= 2 grid steps on the parallel axis when M allows.
    tile = max(8, min(tile_cap, _round_up(pl.cdiv(M, n_cores), 8)))
    if tile >= M:
        tile = M  # single full-dim block (always a legal block shape)
    grid = (pl.cdiv(M, tile),)  # ragged last tile is handled by Pallas (masked)

    out = pl.pallas_call(
        _make_kernel(act_dtype),
        out_shape=jax.ShapeDtypeStruct((M, D_OUT), jnp.float32),
        grid_spec=pltpu.PrefetchScalarGridSpec(
            num_scalar_prefetch=0,
            grid=grid,
            in_specs=[
                pl.BlockSpec((tile, D_IN), lambda i: (i, 0)),   # x tile (f32)
                # Weights / biases: constant index_map -> fetched once, resident.
                pl.BlockSpec((D_IN, P_H), lambda i: (0, 0)),    # w1 (bf16)
                pl.BlockSpec((1, P_H), lambda i: (0, 0)),       # b1 (f32)
                pl.BlockSpec((P_H, P_H), lambda i: (0, 0)),     # w2 (bf16)
                pl.BlockSpec((1, P_H), lambda i: (0, 0)),       # b2 (f32)
                pl.BlockSpec((P_H, D_OUT), lambda i: (0, 0)),   # w3 (bf16)
                pl.BlockSpec((1, D_OUT), lambda i: (0, 0)),     # b3 (f32)
            ],
            out_specs=pl.BlockSpec((tile, D_OUT), lambda i: (i, 0)),
        ),
        compiler_params=pltpu.CompilerParams(
            dimension_semantics=("parallel",),
            vmem_limit_bytes=vmem_limit,
        ),
    )(x, w1p, b1p, w2p, b2p, w3p, b3p)

    return out.reshape(N, C, D_OUT)  # no slice copy


def init_params(key):
    """Deterministic init matching nn.Linear (PyTorch layout: W (out, in), b (out,))."""
    ks = jax.random.split(key, 6)

    def linear(kw, kb, fan_in, fan_out):
        bound = float(fan_in) ** -0.5
        w = jax.random.uniform(kw, (fan_out, fan_in), jnp.float32, -bound, bound)
        b = jax.random.uniform(kb, (fan_out,), jnp.float32, -bound, bound)
        return w, b

    w1, b1 = linear(ks[0], ks[1], D_IN, D_H)
    w2, b2 = linear(ks[2], ks[3], D_H, D_H)
    w3, b3 = linear(ks[4], ks[5], D_H, D_OUT)
    return (w1, b1, w2, b2, w3, b3)


def ann_reference_f32(inputs, params):
    w1, b1, w2, b2, w3, b3 = params
    a1 = jax.nn.sigmoid(inputs @ w1.T + b1)
    a2 = jax.nn.sigmoid(a1 @ w2.T + b2)
    return a2 @ w3.T + b3


def ann_reference_mixed(inputs, params, act_dtype):
    # Mirrors the kernel precision: bf16 operands, f32 accumulation/bias,
    # tanh-form sigmoid evaluated in act_dtype.
    w1, b1, w2, b2, w3, b3 = params
    bf = jnp.bfloat16

    def sig(h):
        t = jnp.tanh((h * 0.5).astype(act_dtype))
        return (t * 0.5 + 0.5).astype(bf)

    x = inputs.astype(bf)
    h1 = jnp.dot(x, w1.T.astype(bf), preferred_element_type=jnp.float32) + b1
    a1 = sig(h1)
    h2 = jnp.dot(a1, w2.T.astype(bf), preferred_element_type=jnp.float32) + b2
    a2 = sig(h2)
    return jnp.dot(a2, w3.T.astype(bf), preferred_element_type=jnp.float32) + b3


if __name__ == "__main__":
    key = jax.random.PRNGKey(0)
    kx, kp = jax.random.split(key)

    # Small shapes consistent with the forward: (N, C, L) with L = 500.
    N, C = 2, 4
    x = jax.random.normal(kx, (N, C, D_IN), jnp.float32)
    params = init_params(kp)
    prepared = prepare_params(params)

    out = jax.block_until_ready(ann_forward(x, prepared))
    assert out.shape == (N, C, D_OUT)
    assert bool(jnp.all(jnp.isfinite(out)))

    act_dtype = _tpu_config()[3]
    ref_mixed = ann_reference_mixed(x, params, act_dtype)
    ref_f32 = ann_reference_f32(x, params)
    assert jnp.allclose(out, ref_mixed, atol=4e-2, rtol=4e-2), float(
        jnp.max(jnp.abs(out - ref_mixed)))
    assert jnp.allclose(out, ref_f32, atol=1e-1, rtol=1e-1)

    # Second shape: M = 21 exercises the no-padding paths (full-dim / ragged tiles).
    x2 = jax.random.normal(jax.random.PRNGKey(1), (3, 7, D_IN), jnp.float32)
    out2 = jax.block_until_ready(ann_forward(x2, prepared))
    ref2 = ann_reference_mixed(x2, params, act_dtype)
    assert out2.shape == (3, 7, D_OUT)
    assert jnp.allclose(out2, ref2, atol=4e-2, rtol=4e-2)

    print("KERNEL_OK")
</pallas_src>

<mosaic_0001>
module attributes {stable_mosaic.version = 11 : i64} {
  func.func @kernel(%arg0: i32, %arg1: memref<8x500xf32, #tpu.memory_space<vmem>>, %arg2: memref<500x640xbf16, #tpu.memory_space<vmem>>, %arg3: memref<1x640xf32, #tpu.memory_space<vmem>>, %arg4: memref<640x640xbf16, #tpu.memory_space<vmem>>, %arg5: memref<1x640xf32, #tpu.memory_space<vmem>>, %arg6: memref<640x500xbf16, #tpu.memory_space<vmem>>, %arg7: memref<1x500xf32, #tpu.memory_space<vmem>>, %arg8: memref<8x500xf32, #tpu.memory_space<vmem>>) attributes {dimension_semantics = [#tpu.dimension_semantics<parallel>], iteration_bounds = array<i64: 1>, scalar_prefetch = 0 : i64, scratch_operands = 0 : i64, tpu.core_type = #tpu.core_type<tc>, window_params = [{transform_indices = @transform_0, window_bounds = array<i64: 8, 500>}, {pipeline_mode = #tpu.pipeline_mode<synchronous>, transform_indices = @transform_1, window_bounds = array<i64: 500, 640>}, {pipeline_mode = #tpu.pipeline_mode<synchronous>, transform_indices = @transform_2, window_bounds = array<i64: 1, 640>}, {pipeline_mode = #tpu.pipeline_mode<synchronous>, transform_indices = @transform_3, window_bounds = array<i64: 640, 640>}, {pipeline_mode = #tpu.pipeline_mode<synchronous>, transform_indices = @transform_4, window_bounds = array<i64: 1, 640>}, {pipeline_mode = #tpu.pipeline_mode<synchronous>, transform_indices = @transform_5, window_bounds = array<i64: 640, 500>}, {pipeline_mode = #tpu.pipeline_mode<synchronous>, transform_indices = @transform_6, window_bounds = array<i64: 1, 500>}, {transform_indices = @transform_7, window_bounds = array<i64: 8, 500>}]} {
    %c0 = arith.constant 0 : index
    %c0_0 = arith.constant 0 : index
    %0 = vector.load %arg1[%c0, %c0_0] : memref<8x500xf32, #tpu.memory_space<vmem>>, vector<8x500xf32>
    %1 = arith.truncf %0 : vector<8x500xf32> to vector<8x500xbf16>
    %c0_1 = arith.constant 0 : index
    %c0_2 = arith.constant 0 : index
    %2 = vector.load %arg2[%c0_1, %c0_2] : memref<500x640xbf16, #tpu.memory_space<vmem>>, vector<500x640xbf16>
    %cst = arith.constant dense<0.000000e+00> : vector<8x640xf32>
    %3 = tpu.matmul %1, %2, %cst {dimension_numbers = #tpu.dot_dimension_numbers<[1], [0], [0], [1], [0, 0, 1, 1], [], []>} : vector<8x500xbf16>, vector<500x640xbf16>, vector<8x640xf32> -> vector<8x640xf32>
    %c0_3 = arith.constant 0 : index
    %c0_4 = arith.constant 0 : index
    %4 = vector.load %arg3[%c0_3, %c0_4] : memref<1x640xf32, #tpu.memory_space<vmem>>, vector<1x640xf32>
    %5 = vector.broadcast %4 : vector<1x640xf32> to vector<8x640xf32>
    %6 = arith.addf %3, %5 : vector<8x640xf32>
    %cst_5 = arith.constant 5.000000e-01 : f32
    %7 = vector.broadcast %cst_5 : f32 to vector<8x640xf32>
    %8 = arith.mulf %6, %7 : vector<8x640xf32>
    %9 = arith.truncf %8 : vector<8x640xf32> to vector<8x640xbf16>
    %10 = math.tanh %9 : vector<8x640xbf16>
    %cst_6 = arith.constant 5.000000e-01 : bf16
    %11 = vector.broadcast %cst_6 : bf16 to vector<8x640xbf16>
    %12 = arith.mulf %10, %11 : vector<8x640xbf16>
    %cst_7 = arith.constant 5.000000e-01 : bf16
    %13 = vector.broadcast %cst_7 : bf16 to vector<8x640xbf16>
    %14 = arith.addf %12, %13 : vector<8x640xbf16>
    %c0_8 = arith.constant 0 : index
    %c0_9 = arith.constant 0 : index
    %15 = vector.load %arg4[%c0_8, %c0_9] : memref<640x640xbf16, #tpu.memory_space<vmem>>, vector<640x640xbf16>
    %cst_10 = arith.constant dense<0.000000e+00> : vector<8x640xf32>
    %16 = tpu.matmul %14, %15, %cst_10 {dimension_numbers = #tpu.dot_dimension_numbers<[1], [0], [0], [1], [0, 0, 1, 1], [], []>} : vector<8x640xbf16>, vector<640x640xbf16>, vector<8x640xf32> -> vector<8x640xf32>
    %c0_11 = arith.constant 0 : index
    %c0_12 = arith.constant 0 : index
    %17 = vector.load %arg5[%c0_11, %c0_12] : memref<1x640xf32, #tpu.memory_space<vmem>>, vector<1x640xf32>
    %18 = vector.broadcast %17 : vector<1x640xf32> to vector<8x640xf32>
    %19 = arith.addf %16, %18 : vector<8x640xf32>
    %cst_13 = arith.constant 5.000000e-01 : f32
    %20 = vector.broadcast %cst_13 : f32 to vector<8x640xf32>
    %21 = arith.mulf %19, %20 : vector<8x640xf32>
    %22 = arith.truncf %21 : vector<8x640xf32> to vector<8x640xbf16>
    %23 = math.tanh %22 : vector<8x640xbf16>
    %cst_14 = arith.constant 5.000000e-01 : bf16
    %24 = vector.broadcast %cst_14 : bf16 to vector<8x640xbf16>
    %25 = arith.mulf %23, %24 : vector<8x640xbf16>
    %cst_15 = arith.constant 5.000000e-01 : bf16
    %26 = vector.broadcast %cst_15 : bf16 to vector<8x640xbf16>
    %27 = arith.addf %25, %26 : vector<8x640xbf16>
    %c0_16 = arith.constant 0 : index
    %c0_17 = arith.constant 0 : index
    %28 = vector.load %arg6[%c0_16, %c0_17] : memref<640x500xbf16, #tpu.memory_space<vmem>>, vector<640x500xbf16>
    %cst_18 = arith.constant dense<0.000000e+00> : vector<8x500xf32>
    %29 = tpu.matmul %27, %28, %cst_18 {dimension_numbers = #tpu.dot_dimension_numbers<[1], [0], [0], [1], [0, 0, 1, 1], [], []>} : vector<8x640xbf16>, vector<640x500xbf16>, vector<8x500xf32> -> vector<8x500xf32>
    %c0_19 = arith.constant 0 : index
    %c0_20 = arith.constant 0 : index
    %30 = vector.load %arg7[%c0_19, %c0_20] : memref<1x500xf32, #tpu.memory_space<vmem>>, vector<1x500xf32>
    %31 = vector.broadcast %30 : vector<1x500xf32> to vector<8x500xf32>
    %32 = arith.addf %29, %31 : vector<8x500xf32>
    %c0_21 = arith.constant 0 : index
    %c0_22 = arith.constant 0 : index
    %33 = vector.load %arg8[%c0_21, %c0_22] : memref<8x500xf32, #tpu.memory_space<vmem>>, vector<8x500xf32>
    tpu.vector_store %arg8[%c0_21, %c0_22], %32 {strides = array<i32>} : memref<8x500xf32, #tpu.memory_space<vmem>>, vector<8x500xf32>,
    return
  }
  func.func @transform_0(%arg0: i32) -> (i32, i32) {
    %c0_i32 = arith.constant 0 : i32
    %c0_i32_0 = arith.constant 0 : i32
    return %arg0, %c0_i32 : i32, i32
  }
  func.func @transform_1(%arg0: i32) -> (i32, i32) {
    %c0_i32 = arith.constant 0 : i32
    %c0_i32_0 = arith.constant 0 : i32
    %c0_i32_1 = arith.constant 0 : i32
    return %c0_i32, %c0_i32_0 : i32, i32
  }
  func.func @transform_2(%arg0: i32) -> (i32, i32) {
    %c0_i32 = arith.constant 0 : i32
    %c0_i32_0 = arith.constant 0 : i32
    %c0_i32_1 = arith.constant 0 : i32
    return %c0_i32, %c0_i32_0 : i32, i32
  }
  func.func @transform_3(%arg0: i32) -> (i32, i32) {
    %c0_i32 = arith.constant 0 : i32
    %c0_i32_0 = arith.constant 0 : i32
    %c0_i32_1 = arith.constant 0 : i32
    return %c0_i32, %c0_i32_0 : i32, i32
  }
  func.func @transform_4(%arg0: i32) -> (i32, i32) {
    %c0_i32 = arith.constant 0 : i32
    %c0_i32_0 = arith.constant 0 : i32
    %c0_i32_1 = arith.constant 0 : i32
    return %c0_i32, %c0_i32_0 : i32, i32
  }
  func.func @transform_5(%arg0: i32) -> (i32, i32) {
    %c0_i32 = arith.constant 0 : i32
    %c0_i32_0 = arith.constant 0 : i32
    %c0_i32_1 = arith.constant 0 : i32
    return %c0_i32, %c0_i32_0 : i32, i32
  }
  func.func @transform_6(%arg0: i32) -> (i32, i32) {
    %c0_i32 = arith.constant 0 : i32
    %c0_i32_0 = arith.constant 0 : i32
    %c0_i32_1 = arith.constant 0 : i32
    return %c0_i32, %c0_i32_0 : i32, i32
  }
  func.func @transform_7(%arg0: i32) -> (i32, i32) {
    %c0_i32 = arith.constant 0 : i32
    %c0_i32_0 = arith.constant 0 : i32
    return %arg0, %c0_i32 : i32, i32
  }
}

</mosaic_0001>

<llo_original>
// kernel: ann_forward.1
$region0: #{ann_forward.1}
  #allocation0 [shape = 'u32[]', space=smem, size = 0x4, offset = 0x4, fixed_abs, tag = 'smem constant byte address 0x4 - core index']
  #allocation1 [shape = 'u32[72,128]{1,0:T(1,128)}', space=vmem, size = 0x9000, scoped, tag = 'internal scratch']
  %s0 = inlined_call_operand.vmem [shape: f32[8,500], index: 0, kind: input, shape index: {}]
  %s1 = inlined_call_operand.hbm [shape: bf16[500,640], index: 1, kind: input, shape index: {}]
  %s2 = inlined_call_operand.vmem [shape: f32[1,640], index: 2, kind: input, shape index: {}]
  %s3 = inlined_call_operand.vmem [shape: bf16[640,640], index: 3, kind: input, shape index: {}]
  %s4 = inlined_call_operand.vmem [shape: f32[1,640], index: 4, kind: input, shape index: {}]
  %s5 = inlined_call_operand.vmem [shape: bf16[640,500], index: 5, kind: input, shape index: {}]
  %s6 = inlined_call_operand.vmem [shape: f32[1,500], index: 6, kind: input, shape index: {}]
  %s7 = inlined_call_operand.vmem [shape: f32[8,500], index: 7, kind: output, shape index: {}]
  %s8 = sld [smem:[#allocation0]]
  $region42: #{ann_forward.1} parent=0
    _
  %s10 = ssub.s32 1, %s8
  %s11 = scalar_select 0, %s10, %s8
  $region1: #{ann_forward.1} parent=0
    #allocation2 [shape = 'u8[645120]{0}', space=vmem, size = 0x9d800, scoped, tag = 'input window, operand 1, single buffered']
    #allocation3 [shape = 's32[1]{0}', space=sflag, size = 0x4, scoped, tag = 'scoped memory for ann_forward.1']
    %12 = vsyncpa [#allocation3], 0
    // Predicated region
    $region2: #{ann_forward.1} parent=1 // pred_check
      _
    $region3: #{ann_forward.1} parent=1 // pred_check_branch
      %14 = sbr.rel (0) target = $region5
    $region4: #{ann_forward.1} parent=1 // pred_region
      _
    $region5: #{ann_forward.1} parent=1 // pred_fallthru
      _
    // Predicated region
    $region6: #{ann_forward.1} parent=1 // pred_check
      _
    $region7: #{ann_forward.1} parent=1 // pred_check_branch
      %16 = sbr.rel (0) target = $region9
    $region8: #{ann_forward.1} parent=1 // pred_region
      %18 = vsyncadd [#allocation3], 0
      %s19 = sshll.u32 %s1, 4
      %s20 = int_to_ptr.hbm [resolvable:$true] %s19
      %s21 = sshll.u32 [#allocation2], 4
      %s22 = int_to_ptr.vmem [resolvable:$true] %s21
      %27 = dma.hbm_to_vmem [thread:$0]  %s20, 20160, %s22, [#allocation3], 320, 320, 20
    $region9: #{ann_forward.1} parent=1 // pred_fallthru
      _
    // Predicated region
    $region10: #{ann_forward.1} parent=1 // pred_check
      _
    $region11: #{ann_forward.1} parent=1 // pred_check_branch
      %29 = sbr.rel (0) target = $region13
    $region12: #{ann_forward.1} parent=1 // pred_region
      _
    $region13: #{ann_forward.1} parent=1 // pred_fallthru
      _
    // Predicated region
    $region14: #{ann_forward.1} parent=1 // pred_check
      _
    $region15: #{ann_forward.1} parent=1 // pred_check_branch
      %31 = sbr.rel (0) target = $region17
    $region16: #{ann_forward.1} parent=1 // pred_region
      _
    $region17: #{ann_forward.1} parent=1 // pred_fallthru
      _
    // Predicated region
    $region18: #{ann_forward.1} parent=1 // pred_check
      _
    $region19: #{ann_forward.1} parent=1 // pred_check_branch
      %33 = sbr.rel (0) target = $region21
    $region20: #{ann_forward.1} parent=1 // pred_region
      _
    $region21: #{ann_forward.1} parent=1 // pred_fallthru
      _
    // Predicated region
    $region22: #{ann_forward.1} parent=1 // pred_check
      _
    $region23: #{ann_forward.1} parent=1 // pred_check_branch
      %35 = sbr.rel (0) target = $region25
    $region24: #{ann_forward.1} parent=1 // pred_region
      _
    $region25: #{ann_forward.1} parent=1 // pred_fallthru
      _
    // Predicated region
    $region26: #{ann_forward.1} parent=1 // pred_check
      _
    $region27: #{ann_forward.1} parent=1 // pred_check_branch
      %37 = sbr.rel (0) target = $region29
    $region28: #{ann_forward.1} parent=1 // pred_region
      _
    $region29: #{ann_forward.1} parent=1 // pred_fallthru
      _
    // Predicated region
    $region30: #{ann_forward.1} parent=1 // pred_check
      _
    $region31: #{ann_forward.1} parent=1 // pred_check_branch
      %39 = sbr.rel (0) target = $region33
    $region32: #{ann_forward.1} parent=1 // pred_region
      %41 = dma.done [#allocation3], 20160
    $region33: #{ann_forward.1} parent=1 // pred_fallthru
      _
    %v42 = vld [vmem:[%s0] sm:$0xff]
    %v43 = vld [vmem:[%s0 + $0x8] sm:$0xff]
    %v44 = vld [vmem:[%s0 + $0x10] sm:$0xff]
    %v45 = vld [vmem:[%s0 + $0x18] sm:$0xff]
    %v46 = vpack.c.bf16 %v42, %v42
    %v47 = vpack.c.bf16 %v43, %v43
    %v48 = vpack.c.bf16 %v44, %v44
    %v49 = vpack.c.bf16 %v45, %v45
    %v50 = vld [vmem:[#allocation2] sm:$0xff]
    %v51 = vld [vmem:[#allocation2 + $0x8] sm:$0xff]
    %v52 = vld [vmem:[#allocation2 + $0x10] sm:$0xf]
    %v53 = vld [vmem:[#allocation2 + $0x14] sm:$0xff]
    %v54 = vld [vmem:[#allocation2 + $0x1c] sm:$0xff]
    %v55 = vld [vmem:[#allocation2 + $0x24] sm:$0xf]
    %v56 = vld [vmem:[#allocation2 + $0x28] sm:$0xff]
    %v57 = vld [vmem:[#allocation2 + $0x30] sm:$0xff]
    %v58 = vld [vmem:[#allocation2 + $0x38] sm:$0xf]
    %v59 = vld [vmem:[#allocation2 + $0x3c] sm:$0xff]
    %v60 = vld [vmem:[#allocation2 + $0x44] sm:$0xff]
    %v61 = vld [vmem:[#allocation2 + $0x4c] sm:$0xf]
    %v62 = vld [vmem:[#allocation2 + $0x50] sm:$0xff]
    %v63 = vld [vmem:[#allocation2 + $0x58] sm:$0xff]
    %v64 = vld [vmem:[#allocation2 + $0x60] sm:$0xf]
    %v65 = vld [vmem:[#allocation2 + $0x64] sm:$0xff]
    %v66 = vld [vmem:[#allocation2 + $0x6c] sm:$0xff]
    %v67 = vld [vmem:[#allocation2 + $0x74] sm:$0xf]
    %v68 = vld [vmem:[#allocation2 + $0x78] sm:$0xff]
    %v69 = vld [vmem:[#allocation2 + $0x80] sm:$0xff]
    %v70 = vld [vmem:[#allocation2 + $0x88] sm:$0xf]
    %v71 = vld [vmem:[#allocation2 + $0x8c] sm:$0xff]
    %v72 = vld [vmem:[#allocation2 + $0x94] sm:$0xff]
    %v73 = vld [vmem:[#allocation2 + $0x9c] sm:$0xf]
    %v74 = vld [vmem:[#allocation2 + $0xa0] sm:$0xff]
    %v75 = vld [vmem:[#allocation2 + $0xa8] sm:$0xff]
    %v76 = vld [vmem:[#allocation2 + $0xb0] sm:$0xf]
    %v77 = vld [vmem:[#allocation2 + $0xb4] sm:$0xff]
    %v78 = vld [vmem:[#allocation2 + $0xbc] sm:$0xff]
    %v79 = vld [vmem:[#allocation2 + $0xc4] sm:$0xf]
    %v80 = vld [vmem:[#allocation2 + $0xc8] sm:$0xff]
    %v81 = vld [vmem:[#allocation2 + $0xd0] sm:$0xff]
    %v82 = vld [vmem:[#allocation2 + $0xd8] sm:$0xf]
    %v83 = vld [vmem:[#allocation2 + $0xdc] sm:$0xff]
    %v84 = vld [vmem:[#allocation2 + $0xe4] sm:$0xff]
    %v85 = vld [vmem:[#allocation2 + $0xec] sm:$0xf]
    %v86 = vld [vmem:[#allocation2 + $0xf0] sm:$0xff]
    %v87 = vld [vmem:[#allocation2 + $0xf8] sm:$0xff]
    %v88 = vld [vmem:[#allocation2 + $0x100] sm:$0xf]
    %v89 = vld [vmem:[#allocation2 + $0x104] sm:$0xff]
    %v90 = vld [vmem:[#allocation2 + $0x10c] sm:$0xff]
    %v91 = vld [vmem:[#allocation2 + $0x114] sm:$0xf]
    %v92 = vld [vmem:[#allocation2 + $0x118] sm:$0xff]
    %v93 = vld [vmem:[#allocation2 + $0x120] sm:$0xff]
    %v94 = vld [vmem:[#allocation2 + $0x128] sm:$0xf]
    %v95 = vld [vmem:[#allocation2 + $0x12c] sm:$0xff]
    %v96 = vld [vmem:[#allocation2 + $0x134] sm:$0xff]
    %v97 = vld [vmem:[#allocation2 + $0x13c] sm:$0xf]
    %v98 = vld [vmem:[#allocation2 + $0x140] sm:$0xff]
    %v99 = vld [vmem:[#allocation2 + $0x148] sm:$0xff]
    %v100 = vld [vmem:[#allocation2 + $0x150] sm:$0xf]
    %v101 = vld [vmem:[#allocation2 + $0x154] sm:$0xff]
    %v102 = vld [vmem:[#allocation2 + $0x15c] sm:$0xff]
    %v103 = vld [vmem:[#allocation2 + $0x164] sm:$0xf]
    %v104 = vld [vmem:[#allocation2 + $0x168] sm:$0xff]
    %v105 = vld [vmem:[#allocation2 + $0x170] sm:$0xff]
    %v106 = vld [vmem:[#allocation2 + $0x178] sm:$0xf]
    %v107 = vld [vmem:[#allocation2 + $0x17c] sm:$0xff]
    %v108 = vld [vmem:[#allocation2 + $0x184] sm:$0xff]
    %v109 = vld [vmem:[#allocation2 + $0x18c] sm:$0xf]
    %v110 = vld [vmem:[#allocation2 + $0x190] sm:$0xff]
    %v111 = vld [vmem:[#allocation2 + $0x198] sm:$0xff]
    %v112 = vld [vmem:[#allocation2 + $0x1a0] sm:$0xf]
    %v113 = vld [vmem:[#allocation2 + $0x1a4] sm:$0xff]
    %v114 = vld [vmem:[#allocation2 + $0x1ac] sm:$0xff]
    %v115 = vld [vmem:[#allocation2 + $0x1b4] sm:$0xf]
    %v116 = vld [vmem:[#allocation2 + $0x1b8] sm:$0xff]
    %v117 = vld [vmem:[#allocation2 + $0x1c0] sm:$0xff]
    %v118 = vld [vmem:[#allocation2 + $0x1c8] sm:$0xf]
    %v119 = vld [vmem:[#allocation2 + $0x1cc] sm:$0xff]
    %v120 = vld [vmem:[#allocation2 + $0x1d4] sm:$0xff]
    %v121 = vld [vmem:[#allocation2 + $0x1dc] sm:$0xf]
    %v122 = vld [vmem:[#allocation2 + $0x1e0] sm:$0xff]
    %v123 = vld [vmem:[#allocation2 + $0x1e8] sm:$0xff]
    %v124 = vld [vmem:[#allocation2 + $0x1f0] sm:$0xf]
    %v125 = vld [vmem:[#allocation2 + $0x1f4] sm:$0xff]
    %v126 = vld [vmem:[#allocation2 + $0x1fc] sm:$0xff]
    %v127 = vld [vmem:[#allocation2 + $0x204] sm:$0xf]
    %v128 = vld [vmem:[#allocation2 + $0x208] sm:$0xff]
    %v129 = vld [vmem:[#allocation2 + $0x210] sm:$0xff]
    %v130 = vld [vmem:[#allocation2 + $0x218] sm:$0xf]
    %v131 = vld [vmem:[#allocation2 + $0x21c] sm:$0xff]
    %v132 = vld [vmem:[#allocation2 + $0x224] sm:$0xff]
    %v133 = vld [vmem:[#allocation2 + $0x22c] sm:$0xf]
    %v134 = vld [vmem:[#allocation2 + $0x230] sm:$0xff]
    %v135 = vld [vmem:[#allocation2 + $0x238] sm:$0xff]
    %v136 = vld [vmem:[#allocation2 + $0x240] sm:$0xf]
    %v137 = vld [vmem:[#allocation2 + $0x244] sm:$0xff]
    %v138 = vld [vmem:[#allocation2 + $0x24c] sm:$0xff]
    %v139 = vld [vmem:[#allocation2 + $0x254] sm:$0xf]
    %v140 = vld [vmem:[#allocation2 + $0x258] sm:$0xff]
    %v141 = vld [vmem:[#allocation2 + $0x260] sm:$0xff]
    %v142 = vld [vmem:[#allocation2 + $0x268] sm:$0xf]
    %v143 = vld [vmem:[#allocation2 + $0x26c] sm:$0xff]
    %v144 = vld [vmem:[#allocation2 + $0x274] sm:$0xff]
    %v145 = vld [vmem:[#allocation2 + $0x27c] sm:$0xf]
    %v146 = vld [vmem:[#allocation2 + $0x280] sm:$0xff]
    %v147 = vld [vmem:[#allocation2 + $0x288] sm:$0xff]
    %v148 = vld [vmem:[#allocation2 + $0x290] sm:$0xf]
    %v149 = vld [vmem:[#allocation2 + $0x294] sm:$0xff]
    %v150 = vld [vmem:[#allocation2 + $0x29c] sm:$0xff]
    %v151 = vld [vmem:[#allocation2 + $0x2a4] sm:$0xf]
    %v152 = vld [vmem:[#allocation2 + $0x2a8] sm:$0xff]
    %v153 = vld [vmem:[#allocation2 + $0x2b0] sm:$0xff]
    %v154 = vld [vmem:[#allocation2 + $0x2b8] sm:$0xf]
    %v155 = vld [vmem:[#allocation2 + $0x2bc] sm:$0xff]
    %v156 = vld [vmem:[#allocation2 + $0x2c4] sm:$0xff]
    %v157 = vld [vmem:[#allocation2 + $0x2cc] sm:$0xf]
    %v158 = vld [vmem:[#allocation2 + $0x2d0] sm:$0xff]
    %v159 = vld [vmem:[#allocation2 + $0x2d8] sm:$0xff]
    %v160 = vld [vmem:[#allocation2 + $0x2e0] sm:$0xf]
    %v161 = vld [vmem:[#allocation2 + $0x2e4] sm:$0xff]
    %v162 = vld [vmem:[#allocation2 + $0x2ec] sm:$0xff]
    %v163 = vld [vmem:[#allocation2 + $0x2f4] sm:$0xf]
    %v164 = vld [vmem:[#allocation2 + $0x2f8] sm:$0xff]
    %v165 = vld [vmem:[#allocation2 + $0x300] sm:$0xff]
    %v166 = vld [vmem:[#allocation2 + $0x308] sm:$0xf]
    %v167 = vld [vmem:[#allocation2 + $0x30c] sm:$0xff]
    %v168 = vld [vmem:[#allocation2 + $0x314] sm:$0xff]
    %v169 = vld [vmem:[#allocation2 + $0x31c] sm:$0xf]
    %v170 = vld [vmem:[#allocation2 + $0x320] sm:$0xff]
    %v171 = vld [vmem:[#allocation2 + $0x328] sm:$0xff]
    %v172 = vld [vmem:[#allocation2 + $0x330] sm:$0xf]
    %v173 = vld [vmem:[#allocation2 + $0x334] sm:$0xff]
    %v174 = vld [vmem:[#allocation2 + $0x33c] sm:$0xff]
    %v175 = vld [vmem:[#allocation2 + $0x344] sm:$0xf]
    %v176 = vld [vmem:[#allocation2 + $0x348] sm:$0xff]
    %v177 = vld [vmem:[#allocation2 + $0x350] sm:$0xff]
    %v178 = vld [vmem:[#allocation2 + $0x358] sm:$0xf]
    %v179 = vld [vmem:[#allocation2 + $0x35c] sm:$0xff]
    %v180 = vld [vmem:[#allocation2 + $0x364] sm:$0xff]
    %v181 = vld [vmem:[#allocation2 + $0x36c] sm:$0xf]
    %v182 = vld [vmem:[#allocation2 + $0x370] sm:$0xff]
    %v183 = vld [vmem:[#allocation2 + $0x378] sm:$0xff]
    %v184 = vld [vmem:[#allocation2 + $0x380] sm:$0xf]
    %v185 = vld [vmem:[#allocation2 + $0x384] sm:$0xff]
    %v186 = vld [vmem:[#allocation2 + $0x38c] sm:$0xff]
    %v187 = vld [vmem:[#allocation2 + $0x394] sm:$0xf]
    %v188 = vld [vmem:[#allocation2 + $0x398] sm:$0xff]
    %v189 = vld [vmem:[#allocation2 + $0x3a0] sm:$0xff]
    %v190 = vld [vmem:[#allocation2 + $0x3a8] sm:$0xf]
    %v191 = vld [vmem:[#allocation2 + $0x3ac] sm:$0xff]
    %v192 = vld [vmem:[#allocation2 + $0x3b4] sm:$0xff]
    %v193 = vld [vmem:[#allocation2 + $0x3bc] sm:$0xf]
    %v194 = vld [vmem:[#allocation2 + $0x3c0] sm:$0xff]
    %v195 = vld [vmem:[#allocation2 + $0x3c8] sm:$0xff]
    %v196 = vld [vmem:[#allocation2 + $0x3d0] sm:$0xf]
    %v197 = vld [vmem:[#allocation2 + $0x3d4] sm:$0xff]
    %v198 = vld [vmem:[#allocation2 + $0x3dc] sm:$0xff]
    %v199 = vld [vmem:[#allocation2 + $0x3e4] sm:$0xf]
    %v200 = vld [vmem:[#allocation2 + $0x3e8] sm:$0xff]
    %v201 = vld [vmem:[#allocation2 + $0x3f0] sm:$0xff]
    %v202 = vld [vmem:[#allocation2 + $0x3f8] sm:$0xf]
    %v203 = vld [vmem:[#allocation2 + $0x3fc] sm:$0xff]
    %v204 = vld [vmem:[#allocation2 + $0x404] sm:$0xff]
    %v205 = vld [vmem:[#allocation2 + $0x40c] sm:$0xf]
    %v206 = vld [vmem:[#allocation2 + $0x410] sm:$0xff]
    %v207 = vld [vmem:[#allocation2 + $0x418] sm:$0xff]
    %v208 = vld [vmem:[#allocation2 + $0x420] sm:$0xf]
    %v209 = vld [vmem:[#allocation2 + $0x424] sm:$0xff]
    %v210 = vld [vmem:[#allocation2 + $0x42c] sm:$0xff]
    %v211 = vld [vmem:[#allocation2 + $0x434] sm:$0xf]
    %v212 = vld [vmem:[#allocation2 + $0x438] sm:$0xff]
    %v213 = vld [vmem:[#allocation2 + $0x440] sm:$0xff]
    %v214 = vld [vmem:[#allocation2 + $0x448] sm:$0xf]
    %v215 = vld [vmem:[#allocation2 + $0x44c] sm:$0xff]
    %v216 = vld [vmem:[#allocation2 + $0x454] sm:$0xff]
    %v217 = vld [vmem:[#allocation2 + $0x45c] sm:$0xf]
    %v218 = vld [vmem:[#allocation2 + $0x460] sm:$0xff]
    %v219 = vld [vmem:[#allocation2 + $0x468] sm:$0xff]
    %v220 = vld [vmem:[#allocation2 + $0x470] sm:$0xf]
    %v221 = vld [vmem:[#allocation2 + $0x474] sm:$0xff]
    %v222 = vld [vmem:[#allocation2 + $0x47c] sm:$0xff]
    %v223 = vld [vmem:[#allocation2 + $0x484] sm:$0xf]
    %v224 = vld [vmem:[#allocation2 + $0x488] sm:$0xff]
    %v225 = vld [vmem:[#allocation2 + $0x490] sm:$0xff]
    %v226 = vld [vmem:[#allocation2 + $0x498] sm:$0xf]
    %v227 = vld [vmem:[#allocation2 + $0x49c] sm:$0xff]
    %v228 = vld [vmem:[#allocation2 + $0x4a4] sm:$0xff]
    %v229 = vld [vmem:[#allocation2 + $0x4ac] sm:$0xf]
    %v230 = vld [vmem:[#allocation2 + $0x4b0] sm:$0xff]
    %v231 = vld [vmem:[#allocation2 + $0x4b8] sm:$0xff]
    %v232 = vld [vmem:[#allocation2 + $0x4c0] sm:$0xf]
    %v233 = vld [vmem:[#allocation2 + $0x4c4] sm:$0xff]
    %v234 = vld [vmem:[#allocation2 + $0x4cc] sm:$0xff]
    %v235 = vld [vmem:[#allocation2 + $0x4d4] sm:$0xf]
    %v236 = vld [vmem:[#allocation2 + $0x4d8] sm:$0x33]
    %v237 = vld [vmem:[#allocation2 + $0x4e0] sm:$0x33]
    %v238 = vld [vmem:[#allocation2 + $0x4e8] sm:$0x3]
    %v239 = vld [vmem:[%s2] sm:$0x1f]
    %v241 = vperm.slane %v239, 0
    %v242 = vperm.slane %v239, 1
    %v243 = vperm.slane %v239, 2
    %v244 = vperm.slane %v239, 3
    %v245 = vperm.slane %v239, 4
    %v440 = vunpack.c.l.b16 %v50
    %v441 = vunpack.c.h.b16 %v50
    %v442 = vunpack.c.l.b16 %v51
    %v443 = vunpack.c.h.b16 %v51
    %v444 = vunpack.c.l.b16 %v52
    %v445 = vunpack.c.l.b16 %v53
    %v446 = vunpack.c.h.b16 %v53
    %v447 = vunpack.c.l.b16 %v54
    %v448 = vunpack.c.h.b16 %v54
    %v449 = vunpack.c.l.b16 %v55
    %v450 = vunpack.c.l.b16 %v56
    %v451 = vunpack.c.h.b16 %v56
    %v452 = vunpack.c.l.b16 %v57
    %v453 = vunpack.c.h.b16 %v57
    %v454 = vunpack.c.l.b16 %v58
    %v455 = vunpack.c.l.b16 %v59
    %v456 = vunpack.c.h.b16 %v59
    %v457 = vunpack.c.l.b16 %v60
    %v458 = vunpack.c.h.b16 %v60
    %v459 = vunpack.c.l.b16 %v61
    %v460 = vunpack.c.l.b16 %v62
    %v461 = vunpack.c.h.b16 %v62
    %v462 = vunpack.c.l.b16 %v63
    %v463 = vunpack.c.h.b16 %v63
    %v464 = vunpack.c.l.b16 %v64
    %v465 = vunpack.c.l.b16 %v65
    %v466 = vunpack.c.h.b16 %v65
    %v467 = vunpack.c.l.b16 %v66
    %v468 = vunpack.c.h.b16 %v66
    %v469 = vunpack.c.l.b16 %v67
    %v470 = vunpack.c.l.b16 %v68
    %v471 = vunpack.c.h.b16 %v68
    %v472 = vunpack.c.l.b16 %v69
    %v473 = vunpack.c.h.b16 %v69
    %v474 = vunpack.c.l.b16 %v70
    %v475 = vunpack.c.l.b16 %v71
    %v476 = vunpack.c.h.b16 %v71
    %v477 = vunpack.c.l.b16 %v72
    %v478 = vunpack.c.h.b16 %v72
    %v479 = vunpack.c.l.b16 %v73
    %v480 = vunpack.c.l.b16 %v74
    %v481 = vunpack.c.h.b16 %v74
    %v482 = vunpack.c.l.b16 %v75
    %v483 = vunpack.c.h.b16 %v75
    %v484 = vunpack.c.l.b16 %v76
    %v485 = vunpack.c.l.b16 %v77
    %v486 = vunpack.c.h.b16 %v77
    %v487 = vunpack.c.l.b16 %v78
    %v488 = vunpack.c.h.b16 %v78
    %v489 = vunpack.c.l.b16 %v79
    %v490 = vunpack.c.l.b16 %v80
    %v491 = vunpack.c.h.b16 %v80
    %v492 = vunpack.c.l.b16 %v81
    %v493 = vunpack.c.h.b16 %v81
    %v494 = vunpack.c.l.b16 %v82
    %v495 = vunpack.c.l.b16 %v83
    %v496 = vunpack.c.h.b16 %v83
    %v497 = vunpack.c.l.b16 %v84
    %v498 = vunpack.c.h.b16 %v84
    %v499 = vunpack.c.l.b16 %v85
    %v500 = vunpack.c.l.b16 %v86
    %v501 = vunpack.c.h.b16 %v86
    %v502 = vunpack.c.l.b16 %v87
    %v503 = vunpack.c.h.b16 %v87
    %v504 = vunpack.c.l.b16 %v88
    %v505 = vunpack.c.l.b16 %v89
    %v506 = vunpack.c.h.b16 %v89
    %v507 = vunpack.c.l.b16 %v90
    %v508 = vunpack.c.h.b16 %v90
    %v509 = vunpack.c.l.b16 %v91
    %v510 = vunpack.c.l.b16 %v92
    %v511 = vunpack.c.h.b16 %v92
    %v512 = vunpack.c.l.b16 %v93
    %v513 = vunpack.c.h.b16 %v93
    %v514 = vunpack.c.l.b16 %v94
    %v515 = vunpack.c.l.b16 %v95
    %v516 = vunpack.c.h.b16 %v95
    %v517 = vunpack.c.l.b16 %v96
    %v518 = vunpack.c.h.b16 %v96
    %v519 = vunpack.c.l.b16 %v97
    %v520 = vunpack.c.l.b16 %v98
    %v521 = vunpack.c.h.b16 %v98
    %v522 = vunpack.c.l.b16 %v99
    %v523 = vunpack.c.h.b16 %v99
    %v524 = vunpack.c.l.b16 %v100
    %v525 = vunpack.c.l.b16 %v101
    %v526 = vunpack.c.h.b16 %v101
    %v527 = vunpack.c.l.b16 %v102
    %v528 = vunpack.c.h.b16 %v102
    %v529 = vunpack.c.l.b16 %v103
    %v530 = vunpack.c.l.b16 %v104
    %v531 = vunpack.c.h.b16 %v104
    %v532 = vunpack.c.l.b16 %v105
    %v533 = vunpack.c.h.b16 %v105
    %v534 = vunpack.c.l.b16 %v106
    %v535 = vunpack.c.l.b16 %v107
    %v536 = vunpack.c.h.b16 %v107
    %v537 = vunpack.c.l.b16 %v108
    %v538 = vunpack.c.h.b16 %v108
    %v539 = vunpack.c.l.b16 %v109
    %v540 = vunpack.c.l.b16 %v110
    %v541 = vunpack.c.h.b16 %v110
    %v542 = vunpack.c.l.b16 %v111
    %v543 = vunpack.c.h.b16 %v111
    %v544 = vunpack.c.l.b16 %v112
    %v545 = vunpack.c.l.b16 %v113
    %v546 = vunpack.c.h.b16 %v113
    %v547 = vunpack.c.l.b16 %v114
    %v548 = vunpack.c.h.b16 %v114
    %v549 = vunpack.c.l.b16 %v115
    %v550 = vunpack.c.l.b16 %v116
    %v551 = vunpack.c.h.b16 %v116
    %v552 = vunpack.c.l.b16 %v117
    %v553 = vunpack.c.h.b16 %v117
    %v554 = vunpack.c.l.b16 %v118
    %v555 = vunpack.c.l.b16 %v119
    %v556 = vunpack.c.h.b16 %v119
    %v557 = vunpack.c.l.b16 %v120
    %v558 = vunpack.c.h.b16 %v120
    %v559 = vunpack.c.l.b16 %v121
    %v560 = vunpack.c.l.b16 %v122
    %v561 = vunpack.c.h.b16 %v122
    %v562 = vunpack.c.l.b16 %v123
    %v563 = vunpack.c.h.b16 %v123
    %v564 = vunpack.c.l.b16 %v124
    %v565 = vunpack.c.l.b16 %v125
    %v566 = vunpack.c.h.b16 %v125
    %v567 = vunpack.c.l.b16 %v126
    %v568 = vunpack.c.h.b16 %v126
    %v569 = vunpack.c.l.b16 %v127
    %v570 = vunpack.c.l.b16 %v128
    %v571 = vunpack.c.h.b16 %v128
    %v572 = vunpack.c.l.b16 %v129
    %v573 = vunpack.c.h.b16 %v129
    %v574 = vunpack.c.l.b16 %v130
    %v575 = vunpack.c.l.b16 %v131
    %v576 = vunpack.c.h.b16 %v131
    %v577 = vunpack.c.l.b16 %v132
    %v578 = vunpack.c.h.b16 %v132
    %v579 = vunpack.c.l.b16 %v133
    %v580 = vunpack.c.l.b16 %v134
    %v581 = vunpack.c.h.b16 %v134
    %v582 = vunpack.c.l.b16 %v135
    %v583 = vunpack.c.h.b16 %v135
    %v584 = vunpack.c.l.b16 %v136
    %v585 = vunpack.c.l.b16 %v137
    %v586 = vunpack.c.h.b16 %v137
    %v587 = vunpack.c.l.b16 %v138
    %v588 = vunpack.c.h.b16 %v138
    %v589 = vunpack.c.l.b16 %v139
    %v590 = vunpack.c.l.b16 %v140
    %v591 = vunpack.c.h.b16 %v140
    %v592 = vunpack.c.l.b16 %v141
    %v593 = vunpack.c.h.b16 %v141
    %v594 = vunpack.c.l.b16 %v142
    %v595 = vunpack.c.l.b16 %v143
    %v596 = vunpack.c.h.b16 %v143
    %v597 = vunpack.c.l.b16 %v144
    %v598 = vunpack.c.h.b16 %v144
    %v599 = vunpack.c.l.b16 %v145
    %v600 = vunpack.c.l.b16 %v146
    %v601 = vunpack.c.h.b16 %v146
    %v602 = vunpack.c.l.b16 %v147
    %v603 = vunpack.c.h.b16 %v147
    %v604 = vunpack.c.l.b16 %v148
    %v605 = vunpack.c.l.b16 %v149
    %v606 = vunpack.c.h.b16 %v149
    %v607 = vunpack.c.l.b16 %v150
    %v608 = vunpack.c.h.b16 %v150
    %v609 = vunpack.c.l.b16 %v151
    %v610 = vunpack.c.l.b16 %v152
    %v611 = vunpack.c.h.b16 %v152
    %v612 = vunpack.c.l.b16 %v153
    %v613 = vunpack.c.h.b16 %v153
    %v614 = vunpack.c.l.b16 %v154
    %v615 = vunpack.c.l.b16 %v155
    %v616 = vunpack.c.h.b16 %v155
    %v617 = vunpack.c.l.b16 %v156
    %v618 = vunpack.c.h.b16 %v156
    %v619 = vunpack.c.l.b16 %v157
    %v620 = vunpack.c.l.b16 %v158
    %v621 = vunpack.c.h.b16 %v158
    %v622 = vunpack.c.l.b16 %v159
    %v623 = vunpack.c.h.b16 %v159
    %v624 = vunpack.c.l.b16 %v160
    %v625 = vunpack.c.l.b16 %v161
    %v626 = vunpack.c.h.b16 %v161
    %v627 = vunpack.c.l.b16 %v162
    %v628 = vunpack.c.h.b16 %v162
    %v629 = vunpack.c.l.b16 %v163
    %v630 = vunpack.c.l.b16 %v164
    %v631 = vunpack.c.h.b16 %v164
    %v632 = vunpack.c.l.b16 %v165
    %v633 = vunpack.c.h.b16 %v165
    %v634 = vunpack.c.l.b16 %v166
    %v635 = vunpack.c.l.b16 %v167
    %v636 = vunpack.c.h.b16 %v167
    %v637 = vunpack.c.l.b16 %v168
    %v638 = vunpack.c.h.b16 %v168
    %v639 = vunpack.c.l.b16 %v169
    %v640 = vunpack.c.l.b16 %v170
    %v641 = vunpack.c.h.b16 %v170
    %v642 = vunpack.c.l.b16 %v171
    %v643 = vunpack.c.h.b16 %v171
    %v644 = vunpack.c.l.b16 %v172
    %v645 = vunpack.c.l.b16 %v173
    %v646 = vunpack.c.h.b16 %v173
    %v647 = vunpack.c.l.b16 %v174
    %v648 = vunpack.c.h.b16 %v174
    %v649 = vunpack.c.l.b16 %v175
    %v650 = vunpack.c.l.b16 %v176
    %v651 = vunpack.c.h.b16 %v176
    %v652 = vunpack.c.l.b16 %v177
    %v653 = vunpack.c.h.b16 %v177
    %v654 = vunpack.c.l.b16 %v178
    %v655 = vunpack.c.l.b16 %v179
    %v656 = vunpack.c.h.b16 %v179
    %v657 = vunpack.c.l.b16 %v180
    %v658 = vunpack.c.h.b16 %v180
    %v659 = vunpack.c.l.b16 %v181
    %v660 = vunpack.c.l.b16 %v182
    %v661 = vunpack.c.h.b16 %v182
    %v662 = vunpack.c.l.b16 %v183
    %v663 = vunpack.c.h.b16 %v183
    %v664 = vunpack.c.l.b16 %v184
    %v665 = vunpack.c.l.b16 %v185
    %v666 = vunpack.c.h.b16 %v185
    %v667 = vunpack.c.l.b16 %v186
    %v668 = vunpack.c.h.b16 %v186
    %v669 = vunpack.c.l.b16 %v187
    %v670 = vunpack.c.l.b16 %v188
    %v671 = vunpack.c.h.b16 %v188
    %v672 = vunpack.c.l.b16 %v189
    %v673 = vunpack.c.h.b16 %v189
    %v674 = vunpack.c.l.b16 %v190
    %v675 = vunpack.c.l.b16 %v191
    %v676 = vunpack.c.h.b16 %v191
    %v677 = vunpack.c.l.b16 %v192
    %v678 = vunpack.c.h.b16 %v192
    %v679 = vunpack.c.l.b16 %v193
    %v680 = vunpack.c.l.b16 %v194
    %v681 = vunpack.c.h.b16 %v194
    %v682 = vunpack.c.l.b16 %v195
    %v683 = vunpack.c.h.b16 %v195
    %v684 = vunpack.c.l.b16 %v196
    %v685 = vunpack.c.l.b16 %v197
    %v686 = vunpack.c.h.b16 %v197
    %v687 = vunpack.c.l.b16 %v198
    %v688 = vunpack.c.h.b16 %v198
    %v689 = vunpack.c.l.b16 %v199
    %v690 = vunpack.c.l.b16 %v200
    %v691 = vunpack.c.h.b16 %v200
    %v692 = vunpack.c.l.b16 %v201
    %v693 = vunpack.c.h.b16 %v201
    %v694 = vunpack.c.l.b16 %v202
    %v695 = vunpack.c.l.b16 %v203
    %v696 = vunpack.c.h.b16 %v203
    %v697 = vunpack.c.l.b16 %v204
    %v698 = vunpack.c.h.b16 %v204
    %v699 = vunpack.c.l.b16 %v205
    %v700 = vunpack.c.l.b16 %v206
    %v701 = vunpack.c.h.b16 %v206
    %v702 = vunpack.c.l.b16 %v207
    %v703 = vunpack.c.h.b16 %v207
    %v704 = vunpack.c.l.b16 %v208
    %v705 = vunpack.c.l.b16 %v209
    %v706 = vunpack.c.h.b16 %v209
    %v707 = vunpack.c.l.b16 %v210
    %v708 = vunpack.c.h.b16 %v210
    %v709 = vunpack.c.l.b16 %v211
    %v710 = vunpack.c.l.b16 %v212
    %v711 = vunpack.c.h.b16 %v212
    %v712 = vunpack.c.l.b16 %v213
    %v713 = vunpack.c.h.b16 %v213
    %v714 = vunpack.c.l.b16 %v214
    %v715 = vunpack.c.l.b16 %v215
    %v716 = vunpack.c.h.b16 %v215
    %v717 = vunpack.c.l.b16 %v216
    %v718 = vunpack.c.h.b16 %v216
    %v719 = vunpack.c.l.b16 %v217
    %v720 = vunpack.c.l.b16 %v218
    %v721 = vunpack.c.h.b16 %v218
    %v722 = vunpack.c.l.b16 %v219
    %v723 = vunpack.c.h.b16 %v219
    %v724 = vunpack.c.l.b16 %v220
    %v725 = vunpack.c.l.b16 %v221
    %v726 = vunpack.c.h.b16 %v221
    %v727 = vunpack.c.l.b16 %v222
    %v728 = vunpack.c.h.b16 %v222
    %v729 = vunpack.c.l.b16 %v223
    %v730 = vunpack.c.l.b16 %v224
    %v731 = vunpack.c.h.b16 %v224
    %v732 = vunpack.c.l.b16 %v225
    %v733 = vunpack.c.h.b16 %v225
    %v734 = vunpack.c.l.b16 %v226
    %v735 = vunpack.c.l.b16 %v227
    %v736 = vunpack.c.h.b16 %v227
    %v737 = vunpack.c.l.b16 %v228
    %v738 = vunpack.c.h.b16 %v228
    %v739 = vunpack.c.l.b16 %v229
    %v740 = vunpack.c.l.b16 %v230
    %v741 = vunpack.c.h.b16 %v230
    %v742 = vunpack.c.l.b16 %v231
    %v743 = vunpack.c.h.b16 %v231
    %v744 = vunpack.c.l.b16 %v232
    %v745 = vunpack.c.l.b16 %v233
    %v746 = vunpack.c.h.b16 %v233
    %v747 = vunpack.c.l.b16 %v234
    %v748 = vunpack.c.h.b16 %v234
    %v749 = vunpack.c.l.b16 %v235
    %v750 = vunpack.c.l.b16 %v236
    %v751 = vunpack.c.h.b16 %v236
    %v752 = vunpack.c.l.b16 %v237
    %v753 = vunpack.c.h.b16 %v237
    %v754 = vunpack.c.l.b16 %v238
    %v755 = vpack.c.b16 %v445, %v440
    %v756 = vpack.c.b16 %v446, %v441
    %v757 = vpack.c.b16 %v447, %v442
    %v758 = vpack.c.b16 %v448, %v443
    %v759 = vpack.c.b16 %v449, %v444
    %v760 = vpack.c.b16 %v455, %v450
    %v761 = vpack.c.b16 %v456, %v451
    %v762 = vpack.c.b16 %v457, %v452
    %v763 = vpack.c.b16 %v458, %v453
    %v764 = vpack.c.b16 %v459, %v454
    %v765 = vpack.c.b16 %v465, %v460
    %v766 = vpack.c.b16 %v466, %v461
    %v767 = vpack.c.b16 %v467, %v462
    %v768 = vpack.c.b16 %v468, %v463
    %v769 = vpack.c.b16 %v469, %v464
    %v770 = vpack.c.b16 %v475, %v470
    %v771 = vpack.c.b16 %v476, %v471
    %v772 = vpack.c.b16 %v477, %v472
    %v773 = vpack.c.b16 %v478, %v473
    %v774 = vpack.c.b16 %v479, %v474
    %v775 = vpack.c.b16 %v485, %v480
    %v776 = vpack.c.b16 %v486, %v481
    %v777 = vpack.c.b16 %v487, %v482
    %v778 = vpack.c.b16 %v488, %v483
    %v779 = vpack.c.b16 %v489, %v484
    %v780 = vpack.c.b16 %v495, %v490
    %v781 = vpack.c.b16 %v496, %v491
    %v782 = vpack.c.b16 %v497, %v492
    %v783 = vpack.c.b16 %v498, %v493
    %v784 = vpack.c.b16 %v499, %v494
    %v785 = vpack.c.b16 %v505, %v500
    %v786 = vpack.c.b16 %v506, %v501
    %v787 = vpack.c.b16 %v507, %v502
    %v788 = vpack.c.b16 %v508, %v503
    %v789 = vpack.c.b16 %v509, %v504
    %v790 = vpack.c.b16 %v515, %v510
    %v791 = vpack.c.b16 %v516, %v511
    %v792 = vpack.c.b16 %v517, %v512
    %v793 = vpack.c.b16 %v518, %v513
    %v794 = vpack.c.b16 %v519, %v514
    %v795 = vpack.c.b16 %v525, %v520
    %v796 = vpack.c.b16 %v526, %v521
    %v797 = vpack.c.b16 %v527, %v522
    %v798 = vpack.c.b16 %v528, %v523
    %v799 = vpack.c.b16 %v529, %v524
    %v800 = vpack.c.b16 %v535, %v530
    %v801 = vpack.c.b16 %v536, %v531
    %v802 = vpack.c.b16 %v537, %v532
    %v803 = vpack.c.b16 %v538, %v533
    %v804 = vpack.c.b16 %v539, %v534
    %v805 = vpack.c.b16 %v545, %v540
    %v806 = vpack.c.b16 %v546, %v541
    %v807 = vpack.c.b16 %v547, %v542
    %v808 = vpack.c.b16 %v548, %v543
    %v809 = vpack.c.b16 %v549, %v544
    %v810 = vpack.c.b16 %v555, %v550
    %v811 = vpack.c.b16 %v556, %v551
    %v812 = vpack.c.b16 %v557, %v552
    %v813 = vpack.c.b16 %v558, %v553
    %v814 = vpack.c.b16 %v559, %v554
    %v815 = vpack.c.b16 %v565, %v560
    %v816 = vpack.c.b16 %v566, %v561
    %v817 = vpack.c.b16 %v567, %v562
    %v818 = vpack.c.b16 %v568, %v563
    %v819 = vpack.c.b16 %v569, %v564
    %v820 = vpack.c.b16 %v575, %v570
    %v821 = vpack.c.b16 %v576, %v571
    %v822 = vpack.c.b16 %v577, %v572
    %v823 = vpack.c.b16 %v578, %v573
    %v824 = vpack.c.b16 %v579, %v574
    %v825 = vpack.c.b16 %v585, %v580
    %v826 = vpack.c.b16 %v586, %v581
    %v827 = vpack.c.b16 %v587, %v582
    %v828 = vpack.c.b16 %v588, %v583
    %v829 = vpack.c.b16 %v589, %v584
    %v830 = vpack.c.b16 %v595, %v590
    %v831 = vpack.c.b16 %v596, %v591
    %v832 = vpack.c.b16 %v597, %v592
    %v833 = vpack.c.b16 %v598, %v593
    %v834 = vpack.c.b16 %v599, %v594
    %v835 = vpack.c.b16 %v605, %v600
    %v836 = vpack.c.b16 %v606, %v601
    %v837 = vpack.c.b16 %v607, %v602
    %v838 = vpack.c.b16 %v608, %v603
    %v839 = vpack.c.b16 %v609, %v604
    %v840 = vpack.c.b16 %v615, %v610
    %v841 = vpack.c.b16 %v616, %v611
    %v842 = vpack.c.b16 %v617, %v612
    %v843 = vpack.c.b16 %v618, %v613
    %v844 = vpack.c.b16 %v619, %v614
    %v845 = vpack.c.b16 %v625, %v620
    %v846 = vpack.c.b16 %v626, %v621
    %v847 = vpack.c.b16 %v627, %v622
    %v848 = vpack.c.b16 %v628, %v623
    %v849 = vpack.c.b16 %v629, %v624
    %v850 = vpack.c.b16 %v635, %v630
    %v851 = vpack.c.b16 %v636, %v631
    %v852 = vpack.c.b16 %v637, %v632
    %v853 = vpack.c.b16 %v638, %v633
    %v854 = vpack.c.b16 %v639, %v634
    %v855 = vpack.c.b16 %v645, %v640
    %v856 = vpack.c.b16 %v646, %v641
    %v857 = vpack.c.b16 %v647, %v642
    %v858 = vpack.c.b16 %v648, %v643
    %v859 = vpack.c.b16 %v649, %v644
    %v860 = vpack.c.b16 %v655, %v650
    %v861 = vpack.c.b16 %v656, %v651
    %v862 = vpack.c.b16 %v657, %v652
    %v863 = vpack.c.b16 %v658, %v653
    %v864 = vpack.c.b16 %v659, %v654
    %v865 = vpack.c.b16 %v665, %v660
    %v866 = vpack.c.b16 %v666, %v661
    %v867 = vpack.c.b16 %v667, %v662
    %v868 = vpack.c.b16 %v668, %v663
    %v869 = vpack.c.b16 %v669, %v664
    %v870 = vpack.c.b16 %v675, %v670
    %v871 = vpack.c.b16 %v676, %v671
    %v872 = vpack.c.b16 %v677, %v672
    %v873 = vpack.c.b16 %v678, %v673
    %v874 = vpack.c.b16 %v679, %v674
    %v875 = vpack.c.b16 %v685, %v680
    %v876 = vpack.c.b16 %v686, %v681
    %v877 = vpack.c.b16 %v687, %v682
    %v878 = vpack.c.b16 %v688, %v683
    %v879 = vpack.c.b16 %v689, %v684
    %v880 = vpack.c.b16 %v695, %v690
    %v881 = vpack.c.b16 %v696, %v691
    %v882 = vpack.c.b16 %v697, %v692
    %v883 = vpack.c.b16 %v698, %v693
    %v884 = vpack.c.b16 %v699, %v694
    %v885 = vpack.c.b16 %v705, %v700
    %v886 = vpack.c.b16 %v706, %v701
    %v887 = vpack.c.b16 %v707, %v702
    %v888 = vpack.c.b16 %v708, %v703
    %v889 = vpack.c.b16 %v709, %v704
    %v890 = vpack.c.b16 %v715, %v710
    %v891 = vpack.c.b16 %v716, %v711
    %v892 = vpack.c.b16 %v717, %v712
    %v893 = vpack.c.b16 %v718, %v713
    %v894 = vpack.c.b16 %v719, %v714
    %v895 = vpack.c.b16 %v725, %v720
    %v896 = vpack.c.b16 %v726, %v721
    %v897 = vpack.c.b16 %v727, %v722
    %v898 = vpack.c.b16 %v728, %v723
    %v899 = vpack.c.b16 %v729, %v724
    %v900 = vpack.c.b16 %v735, %v730
    %v901 = vpack.c.b16 %v736, %v731
    %v902 = vpack.c.b16 %v737, %v732
    %v903 = vpack.c.b16 %v738, %v733
    %v904 = vpack.c.b16 %v739, %v734
    %v905 = vpack.c.b16 %v745, %v740
    %v906 = vpack.c.b16 %v746, %v741
    %v907 = vpack.c.b16 %v747, %v742
    %v908 = vpack.c.b16 %v748, %v743
    %v909 = vpack.c.b16 %v749, %v744
    %v910 = vpack.c.b16 %v750, %v750
    %v911 = vpack.c.b16 %v751, %v751
    %v912 = vpack.c.b16 %v752, %v752
    %v913 = vpack.c.b16 %v753, %v753
    %v914 = vpack.c.b16 %v754, %v754
    %vm1070 = vcmask 949248
    %v1072 = vsel %vm1070, %v49, 0
    %vm1074 = vcmask 1041408
    %v1076 = vsel %vm1074, %v910, 0
    %v1079 = vsel %vm1074, %v911, 0
    %v1082 = vsel %vm1074, %v912, 0
    %v1085 = vsel %vm1074, %v913, 0
    %v1088 = vsel %vm1074, %v914, 0
    %1090 = vmatpush.bf16.msra.mxu0 %v790
    %1091 = vmatpush.bf16.msra.mxu0 %v785
    %1092 = vmatpush.bf16.msra.mxu0 %v780
    %1093 = vmatpush.bf16.msra.mxu0 %v775
    %1094 = vmatpush.bf16.msra.mxu0 %v770
    %1095 = vmatpush.bf16.msra.mxu0 %v765
    %1096 = vmatpush.bf16.msra.mxu0 %v760
    %1097 = vmatpush.bf16.msra.mxu0 %v755
    %1098 = vmatmul.bf16.gmra.mxu0 %v46
    %v1099 = vpop.f32.mrf.mxu0
    %v1100 = vadd.f32 %v241, %v1099
    %v1101 = vpop.f32.mrf.mxu0
    %1102 = vdwg.mxu0
    %1103 = vmatpush.bf16.msra.mxu0 %v830
    %1104 = vmatpush.bf16.msra.mxu0 %v825
    %1105 = vmatpush.bf16.msra.mxu0 %v820
    %1106 = vmatpush.bf16.msra.mxu0 %v815
    %1107 = vmatpush.bf16.msra.mxu0 %v810
    %1108 = vmatpush.bf16.msra.mxu0 %v805
    %1109 = vmatpush.bf16.msra.mxu0 %v800
    %1110 = vmatpush.bf16.msra.mxu0 %v795
    %1111 = vmatmul.bf16.gmra.mxu0 %v47
    %v1112 = vpop.f32.mrf.mxu0
    %v1113 = vadd.f32 %v1100, %v1112
    %v1114 = vpop.f32.mrf.mxu0
    %1115 = vdwg.mxu0
    %1116 = vmatpush.bf16.msra.mxu0 %v870
    %1117 = vmatpush.bf16.msra.mxu0 %v865
    %1118 = vmatpush.bf16.msra.mxu0 %v860
    %1119 = vmatpush.bf16.msra.mxu0 %v855
    %1120 = vmatpush.bf16.msra.mxu0 %v850
    %1121 = vmatpush.bf16.msra.mxu0 %v845
    %1122 = vmatpush.bf16.msra.mxu0 %v840
    %1123 = vmatpush.bf16.msra.mxu0 %v835
    %1124 = vmatmul.bf16.gmra.mxu0 %v48
    %v1125 = vpop.f32.mrf.mxu0
    %v1126 = vadd.f32 %v1113, %v1125
    %v1127 = vpop.f32.mrf.mxu0
    %1128 = vdwg.mxu0
    %1129 = vmatpush.bf16.msra.mxu0 %v1076
    %1130 = vmatpush.bf16.msra.mxu0 %v905
    %1131 = vmatpush.bf16.msra.mxu0 %v900
    %1132 = vmatpush.bf16.msra.mxu0 %v895
    %1133 = vmatpush.bf16.msra.mxu0 %v890
    %1134 = vmatpush.bf16.msra.mxu0 %v885
    %1135 = vmatpush.bf16.msra.mxu0 %v880
    %1136 = vmatpush.bf16.msra.mxu0 %v875
    %1137 = vmatmul.bf16.gmra.mxu0 %v1072
    %v1138 = vpop.f32.mrf.mxu0
    %v1139 = vadd.f32 %v1126, %v1138
    %v1140 = vpop.f32.mrf.mxu0
    %1141 = vdwg.mxu0
    %1142 = vmatpush.bf16.msra.mxu0 %v791
    %1143 = vmatpush.bf16.msra.mxu0 %v786
    %1144 = vmatpush.bf16.msra.mxu0 %v781
    %1145 = vmatpush.bf16.msra.mxu0 %v776
    %1146 = vmatpush.bf16.msra.mxu0 %v771
    %1147 = vmatpush.bf16.msra.mxu0 %v766
    %1148 = vmatpush.bf16.msra.mxu0 %v761
    %1149 = vmatpush.bf16.msra.mxu0 %v756
    %1150 = vmatmul.bf16.gmra.mxu0 %v46
    %v1151 = vpop.f32.mrf.mxu0
    %v1152 = vadd.f32 %v242, %v1151
    %v1153 = vpop.f32.mrf.mxu0
    %1154 = vdwg.mxu0
    %1155 = vmatpush.bf16.msra.mxu0 %v831
    %1156 = vmatpush.bf16.msra.mxu0 %v826
    %1157 = vmatpush.bf16.msra.mxu0 %v821
    %1158 = vmatpush.bf16.msra.mxu0 %v816
    %1159 = vmatpush.bf16.msra.mxu0 %v811
    %1160 = vmatpush.bf16.msra.mxu0 %v806
    %1161 = vmatpush.bf16.msra.mxu0 %v801
    %1162 = vmatpush.bf16.msra.mxu0 %v796
    %1163 = vmatmul.bf16.gmra.mxu0 %v47
    %v1164 = vpop.f32.mrf.mxu0
    %v1165 = vadd.f32 %v1152, %v1164
    %v1166 = vpop.f32.mrf.mxu0
    %1167 = vdwg.mxu0
    %1168 = vmatpush.bf16.msra.mxu0 %v871
    %1169 = vmatpush.bf16.msra.mxu0 %v866
    %1170 = vmatpush.bf16.msra.mxu0 %v861
    %1171 = vmatpush.bf16.msra.mxu0 %v856
    %1172 = vmatpush.bf16.msra.mxu0 %v851
    %1173 = vmatpush.bf16.msra.mxu0 %v846
    %1174 = vmatpush.bf16.msra.mxu0 %v841
    %1175 = vmatpush.bf16.msra.mxu0 %v836
    %1176 = vmatmul.bf16.gmra.mxu0 %v48
    %v1177 = vpop.f32.mrf.mxu0
    %v1178 = vadd.f32 %v1165, %v1177
    %v1179 = vpop.f32.mrf.mxu0
    %1180 = vdwg.mxu0
    %1181 = vmatpush.bf16.msra.mxu0 %v1079
    %1182 = vmatpush.bf16.msra.mxu0 %v906
    %1183 = vmatpush.bf16.msra.mxu0 %v901
    %1184 = vmatpush.bf16.msra.mxu0 %v896
    %1185 = vmatpush.bf16.msra.mxu0 %v891
    %1186 = vmatpush.bf16.msra.mxu0 %v886
    %1187 = vmatpush.bf16.msra.mxu0 %v881
    %1188 = vmatpush.bf16.msra.mxu0 %v876
    %1189 = vmatmul.bf16.gmra.mxu0 %v1072
    %v1190 = vpop.f32.mrf.mxu0
    %v1191 = vadd.f32 %v1178, %v1190
    %v1192 = vpop.f32.mrf.mxu0
    %1193 = vdwg.mxu0
    %1194 = vmatpush.bf16.msra.mxu0 %v792
    %1195 = vmatpush.bf16.msra.mxu0 %v787
    %1196 = vmatpush.bf16.msra.mxu0 %v782
    %1197 = vmatpush.bf16.msra.mxu0 %v777
    %1198 = vmatpush.bf16.msra.mxu0 %v772
    %1199 = vmatpush.bf16.msra.mxu0 %v767
    %1200 = vmatpush.bf16.msra.mxu0 %v762
    %1201 = vmatpush.bf16.msra.mxu0 %v757
    %1202 = vmatmul.bf16.gmra.mxu0 %v46
    %v1203 = vpop.f32.mrf.mxu0
    %v1204 = vadd.f32 %v243, %v1203
    %v1205 = vpop.f32.mrf.mxu0
    %1206 = vdwg.mxu0
    %1207 = vmatpush.bf16.msra.mxu0 %v832
    %1208 = vmatpush.bf16.msra.mxu0 %v827
    %1209 = vmatpush.bf16.msra.mxu0 %v822
    %1210 = vmatpush.bf16.msra.mxu0 %v817
    %1211 = vmatpush.bf16.msra.mxu0 %v812
    %1212 = vmatpush.bf16.msra.mxu0 %v807
    %1213 = vmatpush.bf16.msra.mxu0 %v802
    %1214 = vmatpush.bf16.msra.mxu0 %v797
    %1215 = vmatmul.bf16.gmra.mxu0 %v47
    %v1216 = vpop.f32.mrf.mxu0
    %v1217 = vadd.f32 %v1204, %v1216
    %v1218 = vpop.f32.mrf.mxu0
    %1219 = vdwg.mxu0
    %1220 = vmatpush.bf16.msra.mxu0 %v872
    %1221 = vmatpush.bf16.msra.mxu0 %v867
    %1222 = vmatpush.bf16.msra.mxu0 %v862
    %1223 = vmatpush.bf16.msra.mxu0 %v857
    %1224 = vmatpush.bf16.msra.mxu0 %v852
    %1225 = vmatpush.bf16.msra.mxu0 %v847
    %1226 = vmatpush.bf16.msra.mxu0 %v842
    %1227 = vmatpush.bf16.msra.mxu0 %v837
    %1228 = vmatmul.bf16.gmra.mxu0 %v48
    %v1229 = vpop.f32.mrf.mxu0
    %v1230 = vadd.f32 %v1217, %v1229
    %v1231 = vpop.f32.mrf.mxu0
    %1232 = vdwg.mxu0
    %1233 = vmatpush.bf16.msra.mxu0 %v1082
    %1234 = vmatpush.bf16.msra.mxu0 %v907
    %1235 = vmatpush.bf16.msra.mxu0 %v902
    %1236 = vmatpush.bf16.msra.mxu0 %v897
    %1237 = vmatpush.bf16.msra.mxu0 %v892
    %1238 = vmatpush.bf16.msra.mxu0 %v887
    %1239 = vmatpush.bf16.msra.mxu0 %v882
    %1240 = vmatpush.bf16.msra.mxu0 %v877
    %1241 = vmatmul.bf16.gmra.mxu0 %v1072
    %v1242 = vpop.f32.mrf.mxu0
    %v1243 = vadd.f32 %v1230, %v1242
    %v1244 = vpop.f32.mrf.mxu0
    %1245 = vdwg.mxu0
    %1246 = vmatpush.bf16.msra.mxu0 %v793
    %1247 = vmatpush.bf16.msra.mxu0 %v788
    %1248 = vmatpush.bf16.msra.mxu0 %v783
    %1249 = vmatpush.bf16.msra.mxu0 %v778
    %1250 = vmatpush.bf16.msra.mxu0 %v773
    %1251 = vmatpush.bf16.msra.mxu0 %v768
    %1252 = vmatpush.bf16.msra.mxu0 %v763
    %1253 = vmatpush.bf16.msra.mxu0 %v758
    %1254 = vmatmul.bf16.gmra.mxu0 %v46
    %v1255 = vpop.f32.mrf.mxu0
    %v1256 = vadd.f32 %v244, %v1255
    %v1257 = vpop.f32.mrf.mxu0
    %1258 = vdwg.mxu0
    %1259 = vmatpush.bf16.msra.mxu0 %v833
    %1260 = vmatpush.bf16.msra.mxu0 %v828
    %1261 = vmatpush.bf16.msra.mxu0 %v823
    %1262 = vmatpush.bf16.msra.mxu0 %v818
    %1263 = vmatpush.bf16.msra.mxu0 %v813
    %1264 = vmatpush.bf16.msra.mxu0 %v808
    %1265 = vmatpush.bf16.msra.mxu0 %v803
    %1266 = vmatpush.bf16.msra.mxu0 %v798
    %1267 = vmatmul.bf16.gmra.mxu0 %v47
    %v1268 = vpop.f32.mrf.mxu0
    %v1269 = vadd.f32 %v1256, %v1268
    %v1270 = vpop.f32.mrf.mxu0
    %1271 = vdwg.mxu0
    %1272 = vmatpush.bf16.msra.mxu0 %v873
    %1273 = vmatpush.bf16.msra.mxu0 %v868
    %1274 = vmatpush.bf16.msra.mxu0 %v863
    %1275 = vmatpush.bf16.msra.mxu0 %v858
    %1276 = vmatpush.bf16.msra.mxu0 %v853
    %1277 = vmatpush.bf16.msra.mxu0 %v848
    %1278 = vmatpush.bf16.msra.mxu0 %v843
    %1279 = vmatpush.bf16.msra.mxu0 %v838
    %1280 = vmatmul.bf16.gmra.mxu0 %v48
    %v1281 = vpop.f32.mrf.mxu0
    %v1282 = vadd.f32 %v1269, %v1281
    %v1283 = vpop.f32.mrf.mxu0
    %1284 = vdwg.mxu0
    %1285 = vmatpush.bf16.msra.mxu0 %v1085
    %1286 = vmatpush.bf16.msra.mxu0 %v908
    %1287 = vmatpush.bf16.msra.mxu0 %v903
    %1288 = vmatpush.bf16.msra.mxu0 %v898
    %1289 = vmatpush.bf16.msra.mxu0 %v893
    %1290 = vmatpush.bf16.msra.mxu0 %v888
    %1291 = vmatpush.bf16.msra.mxu0 %v883
    %1292 = vmatpush.bf16.msra.mxu0 %v878
    %1293 = vmatmul.bf16.gmra.mxu0 %v1072
    %v1294 = vpop.f32.mrf.mxu0
    %v1295 = vadd.f32 %v1282, %v1294
    %v1296 = vpop.f32.mrf.mxu0
    %1297 = vdwg.mxu0
    %1298 = vmatpush.bf16.msra.mxu0 %v794
    %1299 = vmatpush.bf16.msra.mxu0 %v789
    %1300 = vmatpush.bf16.msra.mxu0 %v784
    %1301 = vmatpush.bf16.msra.mxu0 %v779
    %1302 = vmatpush.bf16.msra.mxu0 %v774
    %1303 = vmatpush.bf16.msra.mxu0 %v769
    %1304 = vmatpush.bf16.msra.mxu0 %v764
    %1305 = vmatpush.bf16.msra.mxu0 %v759
    %1306 = vmatmul.bf16.gmra.mxu0 %v46
    %v1307 = vpop.f32.mrf.mxu0
    %v1308 = vadd.f32 %v245, %v1307
    %v1309 = vpop.f32.mrf.mxu0
    %1310 = vdwg.mxu0
    %1311 = vmatpush.bf16.msra.mxu0 %v834
    %1312 = vmatpush.bf16.msra.mxu0 %v829
    %1313 = vmatpush.bf16.msra.mxu0 %v824
    %1314 = vmatpush.bf16.msra.mxu0 %v819
    %1315 = vmatpush.bf16.msra.mxu0 %v814
    %1316 = vmatpush.bf16.msra.mxu0 %v809
    %1317 = vmatpush.bf16.msra.mxu0 %v804
    %1318 = vmatpush.bf16.msra.mxu0 %v799
    %1319 = vmatmul.bf16.gmra.mxu0 %v47
    %v1320 = vpop.f32.mrf.mxu0
    %v1321 = vadd.f32 %v1308, %v1320
    %v1322 = vpop.f32.mrf.mxu0
    %1323 = vdwg.mxu0
    %1324 = vmatpush.bf16.msra.mxu0 %v874
    %1325 = vmatpush.bf16.msra.mxu0 %v869
    %1326 = vmatpush.bf16.msra.mxu0 %v864
    %1327 = vmatpush.bf16.msra.mxu0 %v859
    %1328 = vmatpush.bf16.msra.mxu0 %v854
    %1329 = vmatpush.bf16.msra.mxu0 %v849
    %1330 = vmatpush.bf16.msra.mxu0 %v844
    %1331 = vmatpush.bf16.msra.mxu0 %v839
    %1332 = vmatmul.bf16.gmra.mxu0 %v48
    %v1333 = vpop.f32.mrf.mxu0
    %v1334 = vadd.f32 %v1321, %v1333
    %v1335 = vpop.f32.mrf.mxu0
    %1336 = vdwg.mxu0
    %1337 = vmatpush.bf16.msra.mxu0 %v1088
    %1338 = vmatpush.bf16.msra.mxu0 %v909
    %1339 = vmatpush.bf16.msra.mxu0 %v904
    %1340 = vmatpush.bf16.msra.mxu0 %v899
    %1341 = vmatpush.bf16.msra.mxu0 %v894
    %1342 = vmatpush.bf16.msra.mxu0 %v889
    %1343 = vmatpush.bf16.msra.mxu0 %v884
    %1344 = vmatpush.bf16.msra.mxu0 %v879
    %1345 = vmatmul.bf16.gmra.mxu0 %v1072
    %v1346 = vpop.f32.mrf.mxu0
    %v1347 = vadd.f32 %v1334, %v1346
    %v1348 = vpop.f32.mrf.mxu0
    %1349 = vdwg.mxu0
    %v1350 = vmul.f32 %v1139, 0.5
    %v1351 = vmul.f32 %v1191, 0.5
    %v1352 = vmul.f32 %v1243, 0.5
    %v1353 = vmul.f32 %v1295, 0.5
    %v1354 = vmul.f32 %v1347, 0.5
    %v1355 = vpack.c.bf16 %v1351, %v1350
    %v1356 = vpack.c.bf16 %v1353, %v1352
    %v1357 = vpack.c.bf16 %v1354, %v1354
    %v1358 = vunpack.c.l.bf16 %v1355
    %v1359 = vunpack.c.h.bf16 %v1355
    %v1360 = vunpack.c.l.bf16 %v1356
    %v1361 = vunpack.c.h.bf16 %v1356
    %v1362 = vunpack.c.l.bf16 %v1357
    %v1363 = vtanh.pop %v1358
    %v1364 = vtanh.pop %v1359
    %v1365 = vtanh.pop %v1360
    %v1366 = vtanh.pop %v1361
    %v1367 = vtanh.pop %v1362
    %v1368 = vpack.c.bf16 %v1364, %v1363
    %v1369 = vpack.c.bf16 %v1366, %v1365
    %v1370 = vpack.c.bf16 %v1367, %v1367
    %v1371 = vunpack.c.l.bf16 %v1368
    %v1372 = vunpack.c.h.bf16 %v1368
    %v1373 = vunpack.c.l.bf16 %v1369
    %v1374 = vunpack.c.h.bf16 %v1369
    %v1375 = vunpack.c.l.bf16 %v1370
    %v1376 = vmul.f32 %v1371, 0.5
    %v1377 = vmul.f32 %v1372, 0.5
    %v1378 = vmul.f32 %v1373, 0.5
    %v1379 = vmul.f32 %v1374, 0.5
    %v1380 = vmul.f32 %v1375, 0.5
    %v1381 = vpack.c.bf16 %v1377, %v1376
    %v1382 = vpack.c.bf16 %v1379, %v1378
    %v1383 = vpack.c.bf16 %v1380, %v1380
    %v1384 = vunpack.c.l.bf16 %v1381
    %v1385 = vunpack.c.h.bf16 %v1381
    %v1386 = vunpack.c.l.bf16 %v1382
    %v1387 = vunpack.c.h.bf16 %v1382
    %v1388 = vunpack.c.l.bf16 %v1383
    %v1389 = vadd.f32 %v1384, 0.5
    %v1390 = vadd.f32 %v1385, 0.5
    %v1391 = vadd.f32 %v1386, 0.5
    %v1392 = vadd.f32 %v1387, 0.5
    %v1393 = vadd.f32 %v1388, 0.5
    %v1394 = vpack.c.bf16 %v1389, %v1389
    %v1395 = vpack.c.bf16 %v1390, %v1390
    %v1396 = vpack.c.bf16 %v1391, %v1391
    %v1397 = vpack.c.bf16 %v1392, %v1392
    %v1398 = vpack.c.bf16 %v1393, %v1393
    %v1399 = vld [vmem:[%s3] sm:$0xff]
    %v1400 = vld [vmem:[%s3 + $0x8] sm:$0xff]
    %v1401 = vld [vmem:[%s3 + $0x10] sm:$0xf]
    %v1402 = vld [vmem:[%s3 + $0x14] sm:$0xff]
    %v1403 = vld [vmem:[%s3 + $0x1c] sm:$0xff]
    %v1404 = vld [vmem:[%s3 + $0x24] sm:$0xf]
    %v1405 = vld [vmem:[%s3 + $0x28] sm:$0xff]
    %v1406 = vld [vmem:[%s3 + $0x30] sm:$0xff]
    %v1407 = vld [vmem:[%s3 + $0x38] sm:$0xf]
    %v1408 = vld [vmem:[%s3 + $0x3c] sm:$0xff]
    %v1409 = vld [vmem:[%s3 + $0x44] sm:$0xff]
    %v1410 = vld [vmem:[%s3 + $0x4c] sm:$0xf]
    %v1411 = vld [vmem:[%s3 + $0x50] sm:$0xff]
    %v1412 = vld [vmem:[%s3 + $0x58] sm:$0xff]
    %v1413 = vld [vmem:[%s3 + $0x60] sm:$0xf]
    %v1414 = vld [vmem:[%s3 + $0x64] sm:$0xff]
    %v1415 = vld [vmem:[%s3 + $0x6c] sm:$0xff]
    %v1416 = vld [vmem:[%s3 + $0x74] sm:$0xf]
    %v1417 = vld [vmem:[%s3 + $0x78] sm:$0xff]
    %v1418 = vld [vmem:[%s3 + $0x80] sm:$0xff]
    %v1419 = vld [vmem:[%s3 + $0x88] sm:$0xf]
    %v1420 = vld [vmem:[%s3 + $0x8c] sm:$0xff]
    %v1421 = vld [vmem:[%s3 + $0x94] sm:$0xff]
    %v1422 = vld [vmem:[%s3 + $0x9c] sm:$0xf]
    %v1423 = vld [vmem:[%s3 + $0xa0] sm:$0xff]
    %v1424 = vld [vmem:[%s3 + $0xa8] sm:$0xff]
    %v1425 = vld [vmem:[%s3 + $0xb0] sm:$0xf]
    %v1426 = vld [vmem:[%s3 + $0xb4] sm:$0xff]
    %v1427 = vld [vmem:[%s3 + $0xbc] sm:$0xff]
    %v1428 = vld [vmem:[%s3 + $0xc4] sm:$0xf]
    %v1429 = vld [vmem:[%s3 + $0xc8] sm:$0xff]
    %v1430 = vld [vmem:[%s3 + $0xd0] sm:$0xff]
    %v1431 = vld [vmem:[%s3 + $0xd8] sm:$0xf]
    %v1432 = vld [vmem:[%s3 + $0xdc] sm:$0xff]
    %v1433 = vld [vmem:[%s3 + $0xe4] sm:$0xff]
    %v1434 = vld [vmem:[%s3 + $0xec] sm:$0xf]
    %v1435 = vld [vmem:[%s3 + $0xf0] sm:$0xff]
    %v1436 = vld [vmem:[%s3 + $0xf8] sm:$0xff]
    %v1437 = vld [vmem:[%s3 + $0x100] sm:$0xf]
    %v1438 = vld [vmem:[%s3 + $0x104] sm:$0xff]
    %v1439 = vld [vmem:[%s3 + $0x10c] sm:$0xff]
    %v1440 = vld [vmem:[%s3 + $0x114] sm:$0xf]
    %v1441 = vld [vmem:[%s3 + $0x118] sm:$0xff]
    %v1442 = vld [vmem:[%s3 + $0x120] sm:$0xff]
    %v1443 = vld [vmem:[%s3 + $0x128] sm:$0xf]
    %v1444 = vld [vmem:[%s3 + $0x12c] sm:$0xff]
    %v1445 = vld [vmem:[%s3 + $0x134] sm:$0xff]
    %v1446 = vld [vmem:[%s3 + $0x13c] sm:$0xf]
    %v1447 = vld [vmem:[%s3 + $0x140] sm:$0xff]
    %v1448 = vld [vmem:[%s3 + $0x148] sm:$0xff]
    %v1449 = vld [vmem:[%s3 + $0x150] sm:$0xf]
    %v1450 = vld [vmem:[%s3 + $0x154] sm:$0xff]
    %v1451 = vld [vmem:[%s3 + $0x15c] sm:$0xff]
    %v1452 = vld [vmem:[%s3 + $0x164] sm:$0xf]
    %v1453 = vld [vmem:[%s3 + $0x168] sm:$0xff]
    %v1454 = vld [vmem:[%s3 + $0x170] sm:$0xff]
    %v1455 = vld [vmem:[%s3 + $0x178] sm:$0xf]
    %v1456 = vld [vmem:[%s3 + $0x17c] sm:$0xff]
    %v1457 = vld [vmem:[%s3 + $0x184] sm:$0xff]
    %v1458 = vld [vmem:[%s3 + $0x18c] sm:$0xf]
    %v1459 = vld [vmem:[%s3 + $0x190] sm:$0xff]
    %v1460 = vld [vmem:[%s3 + $0x198] sm:$0xff]
    %v1461 = vld [vmem:[%s3 + $0x1a0] sm:$0xf]
    %v1462 = vld [vmem:[%s3 + $0x1a4] sm:$0xff]
    %v1463 = vld [vmem:[%s3 + $0x1ac] sm:$0xff]
    %v1464 = vld [vmem:[%s3 + $0x1b4] sm:$0xf]
    %v1465 = vld [vmem:[%s3 + $0x1b8] sm:$0xff]
    %v1466 = vld [vmem:[%s3 + $0x1c0] sm:$0xff]
    %v1467 = vld [vmem:[%s3 + $0x1c8] sm:$0xf]
    %v1468 = vld [vmem:[%s3 + $0x1cc] sm:$0xff]
    %v1469 = vld [vmem:[%s3 + $0x1d4] sm:$0xff]
    %v1470 = vld [vmem:[%s3 + $0x1dc] sm:$0xf]
    %v1471 = vld [vmem:[%s3 + $0x1e0] sm:$0xff]
    %v1472 = vld [vmem:[%s3 + $0x1e8] sm:$0xff]
    %v1473 = vld [vmem:[%s3 + $0x1f0] sm:$0xf]
    %v1474 = vld [vmem:[%s3 + $0x1f4] sm:$0xff]
    %v1475 = vld [vmem:[%s3 + $0x1fc] sm:$0xff]
    %v1476 = vld [vmem:[%s3 + $0x204] sm:$0xf]
    %v1477 = vld [vmem:[%s3 + $0x208] sm:$0xff]
    %v1478 = vld [vmem:[%s3 + $0x210] sm:$0xff]
    %v1479 = vld [vmem:[%s3 + $0x218] sm:$0xf]
    %v1480 = vld [vmem:[%s3 + $0x21c] sm:$0xff]
    %v1481 = vld [vmem:[%s3 + $0x224] sm:$0xff]
    %v1482 = vld [vmem:[%s3 + $0x22c] sm:$0xf]
    %v1483 = vld [vmem:[%s3 + $0x230] sm:$0xff]
    %v1484 = vld [vmem:[%s3 + $0x238] sm:$0xff]
    %v1485 = vld [vmem:[%s3 + $0x240] sm:$0xf]
    %v1486 = vld [vmem:[%s3 + $0x244] sm:$0xff]
    %v1487 = vld [vmem:[%s3 + $0x24c] sm:$0xff]
    %v1488 = vld [vmem:[%s3 + $0x254] sm:$0xf]
    %v1489 = vld [vmem:[%s3 + $0x258] sm:$0xff]
    %v1490 = vld [vmem:[%s3 + $0x260] sm:$0xff]
    %v1491 = vld [vmem:[%s3 + $0x268] sm:$0xf]
    %v1492 = vld [vmem:[%s3 + $0x26c] sm:$0xff]
    %v1493 = vld [vmem:[%s3 + $0x274] sm:$0xff]
    %v1494 = vld [vmem:[%s3 + $0x27c] sm:$0xf]
    %v1495 = vld [vmem:[%s3 + $0x280] sm:$0xff]
    %v1496 = vld [vmem:[%s3 + $0x288] sm:$0xff]
    %v1497 = vld [vmem:[%s3 + $0x290] sm:$0xf]
    %v1498 = vld [vmem:[%s3 + $0x294] sm:$0xff]
    %v1499 = vld [vmem:[%s3 + $0x29c] sm:$0xff]
    %v1500 = vld [vmem:[%s3 + $0x2a4] sm:$0xf]
    %v1501 = vld [vmem:[%s3 + $0x2a8] sm:$0xff]
    %v1502 = vld [vmem:[%s3 + $0x2b0] sm:$0xff]
    %v1503 = vld [vmem:[%s3 + $0x2b8] sm:$0xf]
    %v1504 = vld [vmem:[%s3 + $0x2bc] sm:$0xff]
    %v1505 = vld [vmem:[%s3 + $0x2c4] sm:$0xff]
    %v1506 = vld [vmem:[%s3 + $0x2cc] sm:$0xf]
    %v1507 = vld [vmem:[%s3 + $0x2d0] sm:$0xff]
    %v1508 = vld [vmem:[%s3 + $0x2d8] sm:$0xff]
    %v1509 = vld [vmem:[%s3 + $0x2e0] sm:$0xf]
    %v1510 = vld [vmem:[%s3 + $0x2e4] sm:$0xff]
    %v1511 = vld [vmem:[%s3 + $0x2ec] sm:$0xff]
    %v1512 = vld [vmem:[%s3 + $0x2f4] sm:$0xf]
    %v1513 = vld [vmem:[%s3 + $0x2f8] sm:$0xff]
    %v1514 = vld [vmem:[%s3 + $0x300] sm:$0xff]
    %v1515 = vld [vmem:[%s3 + $0x308] sm:$0xf]
    %v1516 = vld [vmem:[%s3 + $0x30c] sm:$0xff]
    %v1517 = vld [vmem:[%s3 + $0x314] sm:$0xff]
    %v1518 = vld [vmem:[%s3 + $0x31c] sm:$0xf]
    %v1519 = vld [vmem:[%s3 + $0x320] sm:$0xff]
    %v1520 = vld [vmem:[%s3 + $0x328] sm:$0xff]
    %v1521 = vld [vmem:[%s3 + $0x330] sm:$0xf]
    %v1522 = vld [vmem:[%s3 + $0x334] sm:$0xff]
    %v1523 = vld [vmem:[%s3 + $0x33c] sm:$0xff]
    %v1524 = vld [vmem:[%s3 + $0x344] sm:$0xf]
    %v1525 = vld [vmem:[%s3 + $0x348] sm:$0xff]
    %v1526 = vld [vmem:[%s3 + $0x350] sm:$0xff]
    %v1527 = vld [vmem:[%s3 + $0x358] sm:$0xf]
    %v1528 = vld [vmem:[%s3 + $0x35c] sm:$0xff]
    %v1529 = vld [vmem:[%s3 + $0x364] sm:$0xff]
    %v1530 = vld [vmem:[%s3 + $0x36c] sm:$0xf]
    %v1531 = vld [vmem:[%s3 + $0x370] sm:$0xff]
    %v1532 = vld [vmem:[%s3 + $0x378] sm:$0xff]
    %v1533 = vld [vmem:[%s3 + $0x380] sm:$0xf]
    %v1534 = vld [vmem:[%s3 + $0x384] sm:$0xff]
    %v1535 = vld [vmem:[%s3 + $0x38c] sm:$0xff]
    %v1536 = vld [vmem:[%s3 + $0x394] sm:$0xf]
    %v1537 = vld [vmem:[%s3 + $0x398] sm:$0xff]
    %v1538 = vld [vmem:[%s3 + $0x3a0] sm:$0xff]
    %v1539 = vld [vmem:[%s3 + $0x3a8] sm:$0xf]
    %v1540 = vld [vmem:[%s3 + $0x3ac] sm:$0xff]
    %v1541 = vld [vmem:[%s3 + $0x3b4] sm:$0xff]
    %v1542 = vld [vmem:[%s3 + $0x3bc] sm:$0xf]
    %v1543 = vld [vmem:[%s3 + $0x3c0] sm:$0xff]
    %v1544 = vld [vmem:[%s3 + $0x3c8] sm:$0xff]
    %v1545 = vld [vmem:[%s3 + $0x3d0] sm:$0xf]
    %v1546 = vld [vmem:[%s3 + $0x3d4] sm:$0xff]
    %v1547 = vld [vmem:[%s3 + $0x3dc] sm:$0xff]
    %v1548 = vld [vmem:[%s3 + $0x3e4] sm:$0xf]
    %v1549 = vld [vmem:[%s3 + $0x3e8] sm:$0xff]
    %v1550 = vld [vmem:[%s3 + $0x3f0] sm:$0xff]
    %v1551 = vld [vmem:[%s3 + $0x3f8] sm:$0xf]
    %v1552 = vld [vmem:[%s3 + $0x3fc] sm:$0xff]
    %v1553 = vld [vmem:[%s3 + $0x404] sm:$0xff]
    %v1554 = vld [vmem:[%s3 + $0x40c] sm:$0xf]
    %v1555 = vld [vmem:[%s3 + $0x410] sm:$0xff]
    %v1556 = vld [vmem:[%s3 + $0x418] sm:$0xff]
    %v1557 = vld [vmem:[%s3 + $0x420] sm:$0xf]
    %v1558 = vld [vmem:[%s3 + $0x424] sm:$0xff]
    %v1559 = vld [vmem:[%s3 + $0x42c] sm:$0xff]
    %v1560 = vld [vmem:[%s3 + $0x434] sm:$0xf]
    %v1561 = vld [vmem:[%s3 + $0x438] sm:$0xff]
    %v1562 = vld [vmem:[%s3 + $0x440] sm:$0xff]
    %v1563 = vld [vmem:[%s3 + $0x448] sm:$0xf]
    %v1564 = vld [vmem:[%s3 + $0x44c] sm:$0xff]
    %v1565 = vld [vmem:[%s3 + $0x454] sm:$0xff]
    %v1566 = vld [vmem:[%s3 + $0x45c] sm:$0xf]
    %v1567 = vld [vmem:[%s3 + $0x460] sm:$0xff]
    %v1568 = vld [vmem:[%s3 + $0x468] sm:$0xff]
    %v1569 = vld [vmem:[%s3 + $0x470] sm:$0xf]
    %v1570 = vld [vmem:[%s3 + $0x474] sm:$0xff]
    %v1571 = vld [vmem:[%s3 + $0x47c] sm:$0xff]
    %v1572 = vld [vmem:[%s3 + $0x484] sm:$0xf]
    %v1573 = vld [vmem:[%s3 + $0x488] sm:$0xff]
    %v1574 = vld [vmem:[%s3 + $0x490] sm:$0xff]
    %v1575 = vld [vmem:[%s3 + $0x498] sm:$0xf]
    %v1576 = vld [vmem:[%s3 + $0x49c] sm:$0xff]
    %v1577 = vld [vmem:[%s3 + $0x4a4] sm:$0xff]
    %v1578 = vld [vmem:[%s3 + $0x4ac] sm:$0xf]
    %v1579 = vld [vmem:[%s3 + $0x4b0] sm:$0xff]
    %v1580 = vld [vmem:[%s3 + $0x4b8] sm:$0xff]
    %v1581 = vld [vmem:[%s3 + $0x4c0] sm:$0xf]
    %v1582 = vld [vmem:[%s3 + $0x4c4] sm:$0xff]
    %v1583 = vld [vmem:[%s3 + $0x4cc] sm:$0xff]
    %v1584 = vld [vmem:[%s3 + $0x4d4] sm:$0xf]
    %v1585 = vld [vmem:[%s3 + $0x4d8] sm:$0xff]
    %v1586 = vld [vmem:[%s3 + $0x4e0] sm:$0xff]
    %v1587 = vld [vmem:[%s3 + $0x4e8] sm:$0xf]
    %v1588 = vld [vmem:[%s3 + $0x4ec] sm:$0xff]
    %v1589 = vld [vmem:[%s3 + $0x4f4] sm:$0xff]
    %v1590 = vld [vmem:[%s3 + $0x4fc] sm:$0xf]
    %v1591 = vld [vmem:[%s3 + $0x500] sm:$0xff]
    %v1592 = vld [vmem:[%s3 + $0x508] sm:$0xff]
    %v1593 = vld [vmem:[%s3 + $0x510] sm:$0xf]
    %v1594 = vld [vmem:[%s3 + $0x514] sm:$0xff]
    %v1595 = vld [vmem:[%s3 + $0x51c] sm:$0xff]
    %v1596 = vld [vmem:[%s3 + $0x524] sm:$0xf]
    %v1597 = vld [vmem:[%s3 + $0x528] sm:$0xff]
    %v1598 = vld [vmem:[%s3 + $0x530] sm:$0xff]
    %v1599 = vld [vmem:[%s3 + $0x538] sm:$0xf]
    %v1600 = vld [vmem:[%s3 + $0x53c] sm:$0xff]
    %v1601 = vld [vmem:[%s3 + $0x544] sm:$0xff]
    %v1602 = vld [vmem:[%s3 + $0x54c] sm:$0xf]
    %v1603 = vld [vmem:[%s3 + $0x550] sm:$0xff]
    %v1604 = vld [vmem:[%s3 + $0x558] sm:$0xff]
    %v1605 = vld [vmem:[%s3 + $0x560] sm:$0xf]
    %v1606 = vld [vmem:[%s3 + $0x564] sm:$0xff]
    %v1607 = vld [vmem:[%s3 + $0x56c] sm:$0xff]
    %v1608 = vld [vmem:[%s3 + $0x574] sm:$0xf]
    %v1609 = vld [vmem:[%s3 + $0x578] sm:$0xff]
    %v1610 = vld [vmem:[%s3 + $0x580] sm:$0xff]
    %v1611 = vld [vmem:[%s3 + $0x588] sm:$0xf]
    %v1612 = vld [vmem:[%s3 + $0x58c] sm:$0xff]
    %v1613 = vld [vmem:[%s3 + $0x594] sm:$0xff]
    %v1614 = vld [vmem:[%s3 + $0x59c] sm:$0xf]
    %v1615 = vld [vmem:[%s3 + $0x5a0] sm:$0xff]
    %v1616 = vld [vmem:[%s3 + $0x5a8] sm:$0xff]
    %v1617 = vld [vmem:[%s3 + $0x5b0] sm:$0xf]
    %v1618 = vld [vmem:[%s3 + $0x5b4] sm:$0xff]
    %v1619 = vld [vmem:[%s3 + $0x5bc] sm:$0xff]
    %v1620 = vld [vmem:[%s3 + $0x5c4] sm:$0xf]
    %v1621 = vld [vmem:[%s3 + $0x5c8] sm:$0xff]
    %v1622 = vld [vmem:[%s3 + $0x5d0] sm:$0xff]
    %v1623 = vld [vmem:[%s3 + $0x5d8] sm:$0xf]
    %v1624 = vld [vmem:[%s3 + $0x5dc] sm:$0xff]
    %v1625 = vld [vmem:[%s3 + $0x5e4] sm:$0xff]
    %v1626 = vld [vmem:[%s3 + $0x5ec] sm:$0xf]
    %v1627 = vld [vmem:[%s3 + $0x5f0] sm:$0xff]
    %v1628 = vld [vmem:[%s3 + $0x5f8] sm:$0xff]
    %v1629 = vld [vmem:[%s3 + $0x600] sm:$0xf]
    %v1630 = vld [vmem:[%s3 + $0x604] sm:$0xff]
    %v1631 = vld [vmem:[%s3 + $0x60c] sm:$0xff]
    %v1632 = vld [vmem:[%s3 + $0x614] sm:$0xf]
    %v1633 = vld [vmem:[%s3 + $0x618] sm:$0xff]
    %v1634 = vld [vmem:[%s3 + $0x620] sm:$0xff]
    %v1635 = vld [vmem:[%s3 + $0x628] sm:$0xf]
    %v1636 = vld [vmem:[%s3 + $0x62c] sm:$0xff]
    %v1637 = vld [vmem:[%s3 + $0x634] sm:$0xff]
    %v1638 = vld [vmem:[%s3 + $0x63c] sm:$0xf]
    %v1639 = vld [vmem:[%s4] sm:$0x1f]
    %v1641 = vperm.slane %v1639, 0
    %v1642 = vperm.slane %v1639, 1
    %v1643 = vperm.slane %v1639, 2
    %v1644 = vperm.slane %v1639, 3
    %v1645 = vperm.slane %v1639, 4
    %v1891 = vunpack.c.l.b16 %v1399
    %v1892 = vunpack.c.h.b16 %v1399
    %v1893 = vunpack.c.l.b16 %v1400
    %v1894 = vunpack.c.h.b16 %v1400
    %v1895 = vunpack.c.l.b16 %v1401
    %v1896 = vunpack.c.l.b16 %v1402
    %v1897 = vunpack.c.h.b16 %v1402
    %v1898 = vunpack.c.l.b16 %v1403
    %v1899 = vunpack.c.h.b16 %v1403
    %v1900 = vunpack.c.l.b16 %v1404
    %v1901 = vunpack.c.l.b16 %v1405
    %v1902 = vunpack.c.h.b16 %v1405
    %v1903 = vunpack.c.l.b16 %v1406
    %v1904 = vunpack.c.h.b16 %v1406
    %v1905 = vunpack.c.l.b16 %v1407
    %v1906 = vunpack.c.l.b16 %v1408
    %v1907 = vunpack.c.h.b16 %v1408
    %v1908 = vunpack.c.l.b16 %v1409
    %v1909 = vunpack.c.h.b16 %v1409
    %v1910 = vunpack.c.l.b16 %v1410
    %v1911 = vunpack.c.l.b16 %v1411
    %v1912 = vunpack.c.h.b16 %v1411
    %v1913 = vunpack.c.l.b16 %v1412
    %v1914 = vunpack.c.h.b16 %v1412
    %v1915 = vunpack.c.l.b16 %v1413
    %v1916 = vunpack.c.l.b16 %v1414
    %v1917 = vunpack.c.h.b16 %v1414
    %v1918 = vunpack.c.l.b16 %v1415
    %v1919 = vunpack.c.h.b16 %v1415
    %v1920 = vunpack.c.l.b16 %v1416
    %v1921 = vunpack.c.l.b16 %v1417
    %v1922 = vunpack.c.h.b16 %v1417
    %v1923 = vunpack.c.l.b16 %v1418
    %v1924 = vunpack.c.h.b16 %v1418
    %v1925 = vunpack.c.l.b16 %v1419
    %v1926 = vunpack.c.l.b16 %v1420
    %v1927 = vunpack.c.h.b16 %v1420
    %v1928 = vunpack.c.l.b16 %v1421
    %v1929 = vunpack.c.h.b16 %v1421
    %v1930 = vunpack.c.l.b16 %v1422
    %v1931 = vunpack.c.l.b16 %v1423
    %v1932 = vunpack.c.h.b16 %v1423
    %v1933 = vunpack.c.l.b16 %v1424
    %v1934 = vunpack.c.h.b16 %v1424
    %v1935 = vunpack.c.l.b16 %v1425
    %v1936 = vunpack.c.l.b16 %v1426
    %v1937 = vunpack.c.h.b16 %v1426
    %v1938 = vunpack.c.l.b16 %v1427
    %v1939 = vunpack.c.h.b16 %v1427
    %v1940 = vunpack.c.l.b16 %v1428
    %v1941 = vunpack.c.l.b16 %v1429
    %v1942 = vunpack.c.h.b16 %v1429
    %v1943 = vunpack.c.l.b16 %v1430
    %v1944 = vunpack.c.h.b16 %v1430
    %v1945 = vunpack.c.l.b16 %v1431
    %v1946 = vunpack.c.l.b16 %v1432
    %v1947 = vunpack.c.h.b16 %v1432
    %v1948 = vunpack.c.l.b16 %v1433
    %v1949 = vunpack.c.h.b16 %v1433
    %v1950 = vunpack.c.l.b16 %v1434
    %v1951 = vunpack.c.l.b16 %v1435
    %v1952 = vunpack.c.h.b16 %v1435
    %v1953 = vunpack.c.l.b16 %v1436
    %v1954 = vunpack.c.h.b16 %v1436
    %v1955 = vunpack.c.l.b16 %v1437
    %v1956 = vunpack.c.l.b16 %v1438
    %v1957 = vunpack.c.h.b16 %v1438
    %v1958 = vunpack.c.l.b16 %v1439
    %v1959 = vunpack.c.h.b16 %v1439
    %v1960 = vunpack.c.l.b16 %v1440
    %v1961 = vunpack.c.l.b16 %v1441
    %v1962 = vunpack.c.h.b16 %v1441
    %v1963 = vunpack.c.l.b16 %v1442
    %v1964 = vunpack.c.h.b16 %v1442
    %v1965 = vunpack.c.l.b16 %v1443
    %v1966 = vunpack.c.l.b16 %v1444
    %v1967 = vunpack.c.h.b16 %v1444
    %v1968 = vunpack.c.l.b16 %v1445
    %v1969 = vunpack.c.h.b16 %v1445
    %v1970 = vunpack.c.l.b16 %v1446
    %v1971 = vunpack.c.l.b16 %v1447
    %v1972 = vunpack.c.h.b16 %v1447
    %v1973 = vunpack.c.l.b16 %v1448
    %v1974 = vunpack.c.h.b16 %v1448
    %v1975 = vunpack.c.l.b16 %v1449
    %v1976 = vunpack.c.l.b16 %v1450
    %v1977 = vunpack.c.h.b16 %v1450
    %v1978 = vunpack.c.l.b16 %v1451
    %v1979 = vunpack.c.h.b16 %v1451
    %v1980 = vunpack.c.l.b16 %v1452
    %v1981 = vunpack.c.l.b16 %v1453
    %v1982 = vunpack.c.h.b16 %v1453
    %v1983 = vunpack.c.l.b16 %v1454
    %v1984 = vunpack.c.h.b16 %v1454
    %v1985 = vunpack.c.l.b16 %v1455
    %v1986 = vunpack.c.l.b16 %v1456
    %v1987 = vunpack.c.h.b16 %v1456
    %v1988 = vunpack.c.l.b16 %v1457
    %v1989 = vunpack.c.h.b16 %v1457
    %v1990 = vunpack.c.l.b16 %v1458
    %v1991 = vunpack.c.l.b16 %v1459
    %v1992 = vunpack.c.h.b16 %v1459
    %v1993 = vunpack.c.l.b16 %v1460
    %v1994 = vunpack.c.h.b16 %v1460
    %v1995 = vunpack.c.l.b16 %v1461
    %v1996 = vunpack.c.l.b16 %v1462
    %v1997 = vunpack.c.h.b16 %v1462
    %v1998 = vunpack.c.l.b16 %v1463
    %v1999 = vunpack.c.h.b16 %v1463
    %v2000 = vunpack.c.l.b16 %v1464
    %v2001 = vunpack.c.l.b16 %v1465
    %v2002 = vunpack.c.h.b16 %v1465
    %v2003 = vunpack.c.l.b16 %v1466
    %v2004 = vunpack.c.h.b16 %v1466
    %v2005 = vunpack.c.l.b16 %v1467
    %v2006 = vunpack.c.l.b16 %v1468
    %v2007 = vunpack.c.h.b16 %v1468
    %v2008 = vunpack.c.l.b16 %v1469
    %v2009 = vunpack.c.h.b16 %v1469
    %v2010 = vunpack.c.l.b16 %v1470
    %v2011 = vunpack.c.l.b16 %v1471
    %v2012 = vunpack.c.h.b16 %v1471
    %v2013 = vunpack.c.l.b16 %v1472
    %v2014 = vunpack.c.h.b16 %v1472
    %v2015 = vunpack.c.l.b16 %v1473
    %v2016 = vunpack.c.l.b16 %v1474
    %v2017 = vunpack.c.h.b16 %v1474
    %v2018 = vunpack.c.l.b16 %v1475
    %v2019 = vunpack.c.h.b16 %v1475
    %v2020 = vunpack.c.l.b16 %v1476
    %v2021 = vunpack.c.l.b16 %v1477
    %v2022 = vunpack.c.h.b16 %v1477
    %v2023 = vunpack.c.l.b16 %v1478
    %v2024 = vunpack.c.h.b16 %v1478
    %v2025 = vunpack.c.l.b16 %v1479
    %v2026 = vunpack.c.l.b16 %v1480
    %v2027 = vunpack.c.h.b16 %v1480
    %v2028 = vunpack.c.l.b16 %v1481
    %v2029 = vunpack.c.h.b16 %v1481
    %v2030 = vunpack.c.l.b16 %v1482
    %v2031 = vunpack.c.l.b16 %v1483
    %v2032 = vunpack.c.h.b16 %v1483
    %v2033 = vunpack.c.l.b16 %v1484
    %v2034 = vunpack.c.h.b16 %v1484
    %v2035 = vunpack.c.l.b16 %v1485
    %v2036 = vunpack.c.l.b16 %v1486
    %v2037 = vunpack.c.h.b16 %v1486
    %v2038 = vunpack.c.l.b16 %v1487
    %v2039 = vunpack.c.h.b16 %v1487
    %v2040 = vunpack.c.l.b16 %v1488
    %v2041 = vunpack.c.l.b16 %v1489
    %v2042 = vunpack.c.h.b16 %v1489
    %v2043 = vunpack.c.l.b16 %v1490
    %v2044 = vunpack.c.h.b16 %v1490
    %v2045 = vunpack.c.l.b16 %v1491
    %v2046 = vunpack.c.l.b16 %v1492
    %v2047 = vunpack.c.h.b16 %v1492
    %v2048 = vunpack.c.l.b16 %v1493
    %v2049 = vunpack.c.h.b16 %v1493
    %v2050 = vunpack.c.l.b16 %v1494
    %v2051 = vunpack.c.l.b16 %v1495
    %v2052 = vunpack.c.h.b16 %v1495
    %v2053 = vunpack.c.l.b16 %v1496
    %v2054 = vunpack.c.h.b16 %v1496
    %v2055 = vunpack.c.l.b16 %v1497
    %v2056 = vunpack.c.l.b16 %v1498
    %v2057 = vunpack.c.h.b16 %v1498
    %v2058 = vunpack.c.l.b16 %v1499
    %v2059 = vunpack.c.h.b16 %v1499
    %v2060 = vunpack.c.l.b16 %v1500
    %v2061 = vunpack.c.l.b16 %v1501
    %v2062 = vunpack.c.h.b16 %v1501
    %v2063 = vunpack.c.l.b16 %v1502
    %v2064 = vunpack.c.h.b16 %v1502
    %v2065 = vunpack.c.l.b16 %v1503
    %v2066 = vunpack.c.l.b16 %v1504
    %v2067 = vunpack.c.h.b16 %v1504
    %v2068 = vunpack.c.l.b16 %v1505
    %v2069 = vunpack.c.h.b16 %v1505
    %v2070 = vunpack.c.l.b16 %v1506
    %v2071 = vunpack.c.l.b16 %v1507
    %v2072 = vunpack.c.h.b16 %v1507
    %v2073 = vunpack.c.l.b16 %v1508
    %v2074 = vunpack.c.h.b16 %v1508
    %v2075 = vunpack.c.l.b16 %v1509
    %v2076 = vunpack.c.l.b16 %v1510
    %v2077 = vunpack.c.h.b16 %v1510
    %v2078 = vunpack.c.l.b16 %v1511
    %v2079 = vunpack.c.h.b16 %v1511
    %v2080 = vunpack.c.l.b16 %v1512
    %v2081 = vunpack.c.l.b16 %v1513
    %v2082 = vunpack.c.h.b16 %v1513
    %v2083 = vunpack.c.l.b16 %v1514
    %v2084 = vunpack.c.h.b16 %v1514
    %v2085 = vunpack.c.l.b16 %v1515
    %v2086 = vunpack.c.l.b16 %v1516
    %v2087 = vunpack.c.h.b16 %v1516
    %v2088 = vunpack.c.l.b16 %v1517
    %v2089 = vunpack.c.h.b16 %v1517
    %v2090 = vunpack.c.l.b16 %v1518
    %v2091 = vunpack.c.l.b16 %v1519
    %v2092 = vunpack.c.h.b16 %v1519
    %v2093 = vunpack.c.l.b16 %v1520
    %v2094 = vunpack.c.h.b16 %v1520
    %v2095 = vunpack.c.l.b16 %v1521
    %v2096 = vunpack.c.l.b16 %v1522
    %v2097 = vunpack.c.h.b16 %v1522
    %v2098 = vunpack.c.l.b16 %v1523
    %v2099 = vunpack.c.h.b16 %v1523
    %v2100 = vunpack.c.l.b16 %v1524
    %v2101 = vunpack.c.l.b16 %v1525
    %v2102 = vunpack.c.h.b16 %v1525
    %v2103 = vunpack.c.l.b16 %v1526
    %v2104 = vunpack.c.h.b16 %v1526
    %v2105 = vunpack.c.l.b16 %v1527
    %v2106 = vunpack.c.l.b16 %v1528
    %v2107 = vunpack.c.h.b16 %v1528
    %v2108 = vunpack.c.l.b16 %v1529
    %v2109 = vunpack.c.h.b16 %v1529
    %v2110 = vunpack.c.l.b16 %v1530
    %v2111 = vunpack.c.l.b16 %v1531
    %v2112 = vunpack.c.h.b16 %v1531
    %v2113 = vunpack.c.l.b16 %v1532
    %v2114 = vunpack.c.h.b16 %v1532
    %v2115 = vunpack.c.l.b16 %v1533
    %v2116 = vunpack.c.l.b16 %v1534
    %v2117 = vunpack.c.h.b16 %v1534
    %v2118 = vunpack.c.l.b16 %v1535
    %v2119 = vunpack.c.h.b16 %v1535
    %v2120 = vunpack.c.l.b16 %v1536
    %v2121 = vunpack.c.l.b16 %v1537
    %v2122 = vunpack.c.h.b16 %v1537
    %v2123 = vunpack.c.l.b16 %v1538
    %v2124 = vunpack.c.h.b16 %v1538
    %v2125 = vunpack.c.l.b16 %v1539
    %v2126 = vunpack.c.l.b16 %v1540
    %v2127 = vunpack.c.h.b16 %v1540
    %v2128 = vunpack.c.l.b16 %v1541
    %v2129 = vunpack.c.h.b16 %v1541
    %v2130 = vunpack.c.l.b16 %v1542
    %v2131 = vunpack.c.l.b16 %v1543
    %v2132 = vunpack.c.h.b16 %v1543
    %v2133 = vunpack.c.l.b16 %v1544
    %v2134 = vunpack.c.h.b16 %v1544
    %v2135 = vunpack.c.l.b16 %v1545
    %v2136 = vunpack.c.l.b16 %v1546
    %v2137 = vunpack.c.h.b16 %v1546
    %v2138 = vunpack.c.l.b16 %v1547
    %v2139 = vunpack.c.h.b16 %v1547
    %v2140 = vunpack.c.l.b16 %v1548
    %v2141 = vunpack.c.l.b16 %v1549
    %v2142 = vunpack.c.h.b16 %v1549
    %v2143 = vunpack.c.l.b16 %v1550
    %v2144 = vunpack.c.h.b16 %v1550
    %v2145 = vunpack.c.l.b16 %v1551
    %v2146 = vunpack.c.l.b16 %v1552
    %v2147 = vunpack.c.h.b16 %v1552
    %v2148 = vunpack.c.l.b16 %v1553
    %v2149 = vunpack.c.h.b16 %v1553
    %v2150 = vunpack.c.l.b16 %v1554
    %v2151 = vunpack.c.l.b16 %v1555
    %v2152 = vunpack.c.h.b16 %v1555
    %v2153 = vunpack.c.l.b16 %v1556
    %v2154 = vunpack.c.h.b16 %v1556
    %v2155 = vunpack.c.l.b16 %v1557
    %v2156 = vunpack.c.l.b16 %v1558
    %v2157 = vunpack.c.h.b16 %v1558
    %v2158 = vunpack.c.l.b16 %v1559
    %v2159 = vunpack.c.h.b16 %v1559
    %v2160 = vunpack.c.l.b16 %v1560
    %v2161 = vunpack.c.l.b16 %v1561
    %v2162 = vunpack.c.h.b16 %v1561
    %v2163 = vunpack.c.l.b16 %v1562
    %v2164 = vunpack.c.h.b16 %v1562
    %v2165 = vunpack.c.l.b16 %v1563
    %v2166 = vunpack.c.l.b16 %v1564
    %v2167 = vunpack.c.h.b16 %v1564
    %v2168 = vunpack.c.l.b16 %v1565
    %v2169 = vunpack.c.h.b16 %v1565
    %v2170 = vunpack.c.l.b16 %v1566
    %v2171 = vunpack.c.l.b16 %v1567
    %v2172 = vunpack.c.h.b16 %v1567
    %v2173 = vunpack.c.l.b16 %v1568
    %v2174 = vunpack.c.h.b16 %v1568
    %v2175 = vunpack.c.l.b16 %v1569
    %v2176 = vunpack.c.l.b16 %v1570
    %v2177 = vunpack.c.h.b16 %v1570
    %v2178 = vunpack.c.l.b16 %v1571
    %v2179 = vunpack.c.h.b16 %v1571
    %v2180 = vunpack.c.l.b16 %v1572
    %v2181 = vunpack.c.l.b16 %v1573
    %v2182 = vunpack.c.h.b16 %v1573
    %v2183 = vunpack.c.l.b16 %v1574
    %v2184 = vunpack.c.h.b16 %v1574
    %v2185 = vunpack.c.l.b16 %v1575
    %v2186 = vunpack.c.l.b16 %v1576
    %v2187 = vunpack.c.h.b16 %v1576
    %v2188 = vunpack.c.l.b16 %v1577
    %v2189 = vunpack.c.h.b16 %v1577
    %v2190 = vunpack.c.l.b16 %v1578
    %v2191 = vunpack.c.l.b16 %v1579
    %v2192 = vunpack.c.h.b16 %v1579
    %v2193 = vunpack.c.l.b16 %v1580
    %v2194 = vunpack.c.h.b16 %v1580
    %v2195 = vunpack.c.l.b16 %v1581
    %v2196 = vunpack.c.l.b16 %v1582
    %v2197 = vunpack.c.h.b16 %v1582
    %v2198 = vunpack.c.l.b16 %v1583
    %v2199 = vunpack.c.h.b16 %v1583
    %v2200 = vunpack.c.l.b16 %v1584
    %v2201 = vunpack.c.l.b16 %v1585
    %v2202 = vunpack.c.h.b16 %v1585
    %v2203 = vunpack.c.l.b16 %v1586
    %v2204 = vunpack.c.h.b16 %v1586
    %v2205 = vunpack.c.l.b16 %v1587
    %v2206 = vunpack.c.l.b16 %v1588
    %v2207 = vunpack.c.h.b16 %v1588
    %v2208 = vunpack.c.l.b16 %v1589
    %v2209 = vunpack.c.h.b16 %v1589
    %v2210 = vunpack.c.l.b16 %v1590
    %v2211 = vunpack.c.l.b16 %v1591
    %v2212 = vunpack.c.h.b16 %v1591
    %v2213 = vunpack.c.l.b16 %v1592
    %v2214 = vunpack.c.h.b16 %v1592
    %v2215 = vunpack.c.l.b16 %v1593
    %v2216 = vunpack.c.l.b16 %v1594
    %v2217 = vunpack.c.h.b16 %v1594
    %v2218 = vunpack.c.l.b16 %v1595
    %v2219 = vunpack.c.h.b16 %v1595
    %v2220 = vunpack.c.l.b16 %v1596
    %v2221 = vunpack.c.l.b16 %v1597
    %v2222 = vunpack.c.h.b16 %v1597
    %v2223 = vunpack.c.l.b16 %v1598
    %v2224 = vunpack.c.h.b16 %v1598
    %v2225 = vunpack.c.l.b16 %v1599
    %v2226 = vunpack.c.l.b16 %v1600
    %v2227 = vunpack.c.h.b16 %v1600
    %v2228 = vunpack.c.l.b16 %v1601
    %v2229 = vunpack.c.h.b16 %v1601
    %v2230 = vunpack.c.l.b16 %v1602
    %v2231 = vunpack.c.l.b16 %v1603
    %v2232 = vunpack.c.h.b16 %v1603
    %v2233 = vunpack.c.l.b16 %v1604
    %v2234 = vunpack.c.h.b16 %v1604
    %v2235 = vunpack.c.l.b16 %v1605
    %v2236 = vunpack.c.l.b16 %v1606
    %v2237 = vunpack.c.h.b16 %v1606
    %v2238 = vunpack.c.l.b16 %v1607
    %v2239 = vunpack.c.h.b16 %v1607
    %v2240 = vunpack.c.l.b16 %v1608
    %v2241 = vunpack.c.l.b16 %v1609
    %v2242 = vunpack.c.h.b16 %v1609
    %v2243 = vunpack.c.l.b16 %v1610
    %v2244 = vunpack.c.h.b16 %v1610
    %v2245 = vunpack.c.l.b16 %v1611
    %v2246 = vunpack.c.l.b16 %v1612
    %v2247 = vunpack.c.h.b16 %v1612
    %v2248 = vunpack.c.l.b16 %v1613
    %v2249 = vunpack.c.h.b16 %v1613
    %v2250 = vunpack.c.l.b16 %v1614
    %v2251 = vunpack.c.l.b16 %v1615
    %v2252 = vunpack.c.h.b16 %v1615
    %v2253 = vunpack.c.l.b16 %v1616
    %v2254 = vunpack.c.h.b16 %v1616
    %v2255 = vunpack.c.l.b16 %v1617
    %v2256 = vunpack.c.l.b16 %v1618
    %v2257 = vunpack.c.h.b16 %v1618
    %v2258 = vunpack.c.l.b16 %v1619
    %v2259 = vunpack.c.h.b16 %v1619
    %v2260 = vunpack.c.l.b16 %v1620
    %v2261 = vunpack.c.l.b16 %v1621
    %v2262 = vunpack.c.h.b16 %v1621
    %v2263 = vunpack.c.l.b16 %v1622
    %v2264 = vunpack.c.h.b16 %v1622
    %v2265 = vunpack.c.l.b16 %v1623
    %v2266 = vunpack.c.l.b16 %v1624
    %v2267 = vunpack.c.h.b16 %v1624
    %v2268 = vunpack.c.l.b16 %v1625
    %v2269 = vunpack.c.h.b16 %v1625
    %v2270 = vunpack.c.l.b16 %v1626
    %v2271 = vunpack.c.l.b16 %v1627
    %v2272 = vunpack.c.h.b16 %v1627
    %v2273 = vunpack.c.l.b16 %v1628
    %v2274 = vunpack.c.h.b16 %v1628
    %v2275 = vunpack.c.l.b16 %v1629
    %v2276 = vunpack.c.l.b16 %v1630
    %v2277 = vunpack.c.h.b16 %v1630
    %v2278 = vunpack.c.l.b16 %v1631
    %v2279 = vunpack.c.h.b16 %v1631
    %v2280 = vunpack.c.l.b16 %v1632
    %v2281 = vunpack.c.l.b16 %v1633
    %v2282 = vunpack.c.h.b16 %v1633
    %v2283 = vunpack.c.l.b16 %v1634
    %v2284 = vunpack.c.h.b16 %v1634
    %v2285 = vunpack.c.l.b16 %v1635
    %v2286 = vunpack.c.l.b16 %v1636
    %v2287 = vunpack.c.h.b16 %v1636
    %v2288 = vunpack.c.l.b16 %v1637
    %v2289 = vunpack.c.h.b16 %v1637
    %v2290 = vunpack.c.l.b16 %v1638
    %v2291 = vpack.c.b16 %v1896, %v1891
    %v2292 = vpack.c.b16 %v1897, %v1892
    %v2293 = vpack.c.b16 %v1898, %v1893
    %v2294 = vpack.c.b16 %v1899, %v1894
    %v2295 = vpack.c.b16 %v1900, %v1895
    %v2296 = vpack.c.b16 %v1906, %v1901
    %v2297 = vpack.c.b16 %v1907, %v1902
    %v2298 = vpack.c.b16 %v1908, %v1903
    %v2299 = vpack.c.b16 %v1909, %v1904
    %v2300 = vpack.c.b16 %v1910, %v1905
    %v2301 = vpack.c.b16 %v1916, %v1911
    %v2302 = vpack.c.b16 %v1917, %v1912
    %v2303 = vpack.c.b16 %v1918, %v1913
    %v2304 = vpack.c.b16 %v1919, %v1914
    %v2305 = vpack.c.b16 %v1920, %v1915
    %v2306 = vpack.c.b16 %v1926, %v1921
    %v2307 = vpack.c.b16 %v1927, %v1922
    %v2308 = vpack.c.b16 %v1928, %v1923
    %v2309 = vpack.c.b16 %v1929, %v1924
    %v2310 = vpack.c.b16 %v1930, %v1925
    %v2311 = vpack.c.b16 %v1936, %v1931
    %v2312 = vpack.c.b16 %v1937, %v1932
    %v2313 = vpack.c.b16 %v1938, %v1933
    %v2314 = vpack.c.b16 %v1939, %v1934
    %v2315 = vpack.c.b16 %v1940, %v1935
    %v2316 = vpack.c.b16 %v1946, %v1941
    %v2317 = vpack.c.b16 %v1947, %v1942
    %v2318 = vpack.c.b16 %v1948, %v1943
    %v2319 = vpack.c.b16 %v1949, %v1944
    %v2320 = vpack.c.b16 %v1950, %v1945
    %v2321 = vpack.c.b16 %v1956, %v1951
    %v2322 = vpack.c.b16 %v1957, %v1952
    %v2323 = vpack.c.b16 %v1958, %v1953
    %v2324 = vpack.c.b16 %v1959, %v1954
    %v2325 = vpack.c.b16 %v1960, %v1955
    %v2326 = vpack.c.b16 %v1966, %v1961
    %v2327 = vpack.c.b16 %v1967, %v1962
    %v2328 = vpack.c.b16 %v1968, %v1963
    %v2329 = vpack.c.b16 %v1969, %v1964
    %v2330 = vpack.c.b16 %v1970, %v1965
    %v2331 = vpack.c.b16 %v1976, %v1971
    %v2332 = vpack.c.b16 %v1977, %v1972
    %v2333 = vpack.c.b16 %v1978, %v1973
    %v2334 = vpack.c.b16 %v1979, %v1974
    %v2335 = vpack.c.b16 %v1980, %v1975
    %v2336 = vpack.c.b16 %v1986, %v1981
    %v2337 = vpack.c.b16 %v1987, %v1982
    %v2338 = vpack.c.b16 %v1988, %v1983
    %v2339 = vpack.c.b16 %v1989, %v1984
    %v2340 = vpack.c.b16 %v1990, %v1985
    %v2341 = vpack.c.b16 %v1996, %v1991
    %v2342 = vpack.c.b16 %v1997, %v1992
    %v2343 = vpack.c.b16 %v1998, %v1993
    %v2344 = vpack.c.b16 %v1999, %v1994
    %v2345 = vpack.c.b16 %v2000, %v1995
    %v2346 = vpack.c.b16 %v2006, %v2001
    %v2347 = vpack.c.b16 %v2007, %v2002
    %v2348 = vpack.c.b16 %v2008, %v2003
    %v2349 = vpack.c.b16 %v2009, %v2004
    %v2350 = vpack.c.b16 %v2010, %v2005
    %v2351 = vpack.c.b16 %v2016, %v2011
    %v2352 = vpack.c.b16 %v2017, %v2012
    %v2353 = vpack.c.b16 %v2018, %v2013
    %v2354 = vpack.c.b16 %v2019, %v2014
    %v2355 = vpack.c.b16 %v2020, %v2015
    %v2356 = vpack.c.b16 %v2026, %v2021
    %v2357 = vpack.c.b16 %v2027, %v2022
    %v2358 = vpack.c.b16 %v2028, %v2023
    %v2359 = vpack.c.b16 %v2029, %v2024
    %v2360 = vpack.c.b16 %v2030, %v2025
    %v2361 = vpack.c.b16 %v2036, %v2031
    %v2362 = vpack.c.b16 %v2037, %v2032
    %v2363 = vpack.c.b16 %v2038, %v2033
    %v2364 = vpack.c.b16 %v2039, %v2034
    %v2365 = vpack.c.b16 %v2040, %v2035
    %v2366 = vpack.c.b16 %v2046, %v2041
    %v2367 = vpack.c.b16 %v2047, %v2042
    %v2368 = vpack.c.b16 %v2048, %v2043
    %v2369 = vpack.c.b16 %v2049, %v2044
    %v2370 = vpack.c.b16 %v2050, %v2045
    %v2371 = vpack.c.b16 %v2056, %v2051
    %v2372 = vpack.c.b16 %v2057, %v2052
    %v2373 = vpack.c.b16 %v2058, %v2053
    %v2374 = vpack.c.b16 %v2059, %v2054
    %v2375 = vpack.c.b16 %v2060, %v2055
    %v2376 = vpack.c.b16 %v2066, %v2061
    %v2377 = vpack.c.b16 %v2067, %v2062
    %v2378 = vpack.c.b16 %v2068, %v2063
    %v2379 = vpack.c.b16 %v2069, %v2064
    %v2380 = vpack.c.b16 %v2070, %v2065
    %v2381 = vpack.c.b16 %v2076, %v2071
    %v2382 = vpack.c.b16 %v2077, %v2072
    %v2383 = vpack.c.b16 %v2078, %v2073
    %v2384 = vpack.c.b16 %v2079, %v2074
    %v2385 = vpack.c.b16 %v2080, %v2075
    %v2386 = vpack.c.b16 %v2086, %v2081
    %v2387 = vpack.c.b16 %v2087, %v2082
    %v2388 = vpack.c.b16 %v2088, %v2083
    %v2389 = vpack.c.b16 %v2089, %v2084
    %v2390 = vpack.c.b16 %v2090, %v2085
    %v2391 = vpack.c.b16 %v2096, %v2091
    %v2392 = vpack.c.b16 %v2097, %v2092
    %v2393 = vpack.c.b16 %v2098, %v2093
    %v2394 = vpack.c.b16 %v2099, %v2094
    %v2395 = vpack.c.b16 %v2100, %v2095
    %v2396 = vpack.c.b16 %v2106, %v2101
    %v2397 = vpack.c.b16 %v2107, %v2102
    %v2398 = vpack.c.b16 %v2108, %v2103
    %v2399 = vpack.c.b16 %v2109, %v2104
    %v2400 = vpack.c.b16 %v2110, %v2105
    %v2401 = vpack.c.b16 %v2116, %v2111
    %v2402 = vpack.c.b16 %v2117, %v2112
    %v2403 = vpack.c.b16 %v2118, %v2113
    %v2404 = vpack.c.b16 %v2119, %v2114
    %v2405 = vpack.c.b16 %v2120, %v2115
    %v2406 = vpack.c.b16 %v2126, %v2121
    %v2407 = vpack.c.b16 %v2127, %v2122
    %v2408 = vpack.c.b16 %v2128, %v2123
    %v2409 = vpack.c.b16 %v2129, %v2124
    %v2410 = vpack.c.b16 %v2130, %v2125
    %v2411 = vpack.c.b16 %v2136, %v2131
    %v2412 = vpack.c.b16 %v2137, %v2132
    %v2413 = vpack.c.b16 %v2138, %v2133
    %v2414 = vpack.c.b16 %v2139, %v2134
    %v2415 = vpack.c.b16 %v2140, %v2135
    %v2416 = vpack.c.b16 %v2146, %v2141
    %v2417 = vpack.c.b16 %v2147, %v2142
    %v2418 = vpack.c.b16 %v2148, %v2143
    %v2419 = vpack.c.b16 %v2149, %v2144
    %v2420 = vpack.c.b16 %v2150, %v2145
    %v2421 = vpack.c.b16 %v2156, %v2151
    %v2422 = vpack.c.b16 %v2157, %v2152
    %v2423 = vpack.c.b16 %v2158, %v2153
    %v2424 = vpack.c.b16 %v2159, %v2154
    %v2425 = vpack.c.b16 %v2160, %v2155
    %v2426 = vpack.c.b16 %v2166, %v2161
    %v2427 = vpack.c.b16 %v2167, %v2162
    %v2428 = vpack.c.b16 %v2168, %v2163
    %v2429 = vpack.c.b16 %v2169, %v2164
    %v2430 = vpack.c.b16 %v2170, %v2165
    %v2431 = vpack.c.b16 %v2176, %v2171
    %v2432 = vpack.c.b16 %v2177, %v2172
    %v2433 = vpack.c.b16 %v2178, %v2173
    %v2434 = vpack.c.b16 %v2179, %v2174
    %v2435 = vpack.c.b16 %v2180, %v2175
    %v2436 = vpack.c.b16 %v2186, %v2181
    %v2437 = vpack.c.b16 %v2187, %v2182
    %v2438 = vpack.c.b16 %v2188, %v2183
    %v2439 = vpack.c.b16 %v2189, %v2184
    %v2440 = vpack.c.b16 %v2190, %v2185
    %v2441 = vpack.c.b16 %v2196, %v2191
    %v2442 = vpack.c.b16 %v2197, %v2192
    %v2443 = vpack.c.b16 %v2198, %v2193
    %v2444 = vpack.c.b16 %v2199, %v2194
    %v2445 = vpack.c.b16 %v2200, %v2195
    %v2446 = vpack.c.b16 %v2206, %v2201
    %v2447 = vpack.c.b16 %v2207, %v2202
    %v2448 = vpack.c.b16 %v2208, %v2203
    %v2449 = vpack.c.b16 %v2209, %v2204
    %v2450 = vpack.c.b16 %v2210, %v2205
    %v2451 = vpack.c.b16 %v2216, %v2211
    %v2452 = vpack.c.b16 %v2217, %v2212
    %v2453 = vpack.c.b16 %v2218, %v2213
    %v2454 = vpack.c.b16 %v2219, %v2214
    %v2455 = vpack.c.b16 %v2220, %v2215
    %v2456 = vpack.c.b16 %v2226, %v2221
    %v2457 = vpack.c.b16 %v2227, %v2222
    %v2458 = vpack.c.b16 %v2228, %v2223
    %v2459 = vpack.c.b16 %v2229, %v2224
    %v2460 = vpack.c.b16 %v2230, %v2225
    %v2461 = vpack.c.b16 %v2236, %v2231
    %v2462 = vpack.c.b16 %v2237, %v2232
    %v2463 = vpack.c.b16 %v2238, %v2233
    %v2464 = vpack.c.b16 %v2239, %v2234
    %v2465 = vpack.c.b16 %v2240, %v2235
    %v2466 = vpack.c.b16 %v2246, %v2241
    %v2467 = vpack.c.b16 %v2247, %v2242
    %v2468 = vpack.c.b16 %v2248, %v2243
    %v2469 = vpack.c.b16 %v2249, %v2244
    %v2470 = vpack.c.b16 %v2250, %v2245
    %v2471 = vpack.c.b16 %v2256, %v2251
    %v2472 = vpack.c.b16 %v2257, %v2252
    %v2473 = vpack.c.b16 %v2258, %v2253
    %v2474 = vpack.c.b16 %v2259, %v2254
    %v2475 = vpack.c.b16 %v2260, %v2255
    %v2476 = vpack.c.b16 %v2266, %v2261
    %v2477 = vpack.c.b16 %v2267, %v2262
    %v2478 = vpack.c.b16 %v2268, %v2263
    %v2479 = vpack.c.b16 %v2269, %v2264
    %v2480 = vpack.c.b16 %v2270, %v2265
    %v2481 = vpack.c.b16 %v2276, %v2271
    %v2482 = vpack.c.b16 %v2277, %v2272
    %v2483 = vpack.c.b16 %v2278, %v2273
    %v2484 = vpack.c.b16 %v2279, %v2274
    %v2485 = vpack.c.b16 %v2280, %v2275
    %v2486 = vpack.c.b16 %v2286, %v2281
    %v2487 = vpack.c.b16 %v2287, %v2282
    %v2488 = vpack.c.b16 %v2288, %v2283
    %v2489 = vpack.c.b16 %v2289, %v2284
    %v2490 = vpack.c.b16 %v2290, %v2285
    %2691 = vmatpush.bf16.msra.mxu0 %v2326
    %2692 = vmatpush.bf16.msra.mxu0 %v2321
    %2693 = vmatpush.bf16.msra.mxu0 %v2316
    %2694 = vmatpush.bf16.msra.mxu0 %v2311
    %2695 = vmatpush.bf16.msra.mxu0 %v2306
    %2696 = vmatpush.bf16.msra.mxu0 %v2301
    %2697 = vmatpush.bf16.msra.mxu0 %v2296
    %2698 = vmatpush.bf16.msra.mxu0 %v2291
    %2699 = vmatmul.bf16.gmra.mxu0 %v1394
    %v2700 = vpop.f32.mrf.mxu0
    %v2701 = vadd.f32 %v1641, %v2700
    %v2702 = vpop.f32.mrf.mxu0
    %2703 = vdwg.mxu0
    %2704 = vmatpush.bf16.msra.mxu0 %v2366
    %2705 = vmatpush.bf16.msra.mxu0 %v2361
    %2706 = vmatpush.bf16.msra.mxu0 %v2356
    %2707 = vmatpush.bf16.msra.mxu0 %v2351
    %2708 = vmatpush.bf16.msra.mxu0 %v2346
    %2709 = vmatpush.bf16.msra.mxu0 %v2341
    %2710 = vmatpush.bf16.msra.mxu0 %v2336
    %2711 = vmatpush.bf16.msra.mxu0 %v2331
    %2712 = vmatmul.bf16.gmra.mxu0 %v1395
    %v2713 = vpop.f32.mrf.mxu0
    %v2714 = vadd.f32 %v2701, %v2713
    %v2715 = vpop.f32.mrf.mxu0
    %2716 = vdwg.mxu0
    %2717 = vmatpush.bf16.msra.mxu0 %v2406
    %2718 = vmatpush.bf16.msra.mxu0 %v2401
    %2719 = vmatpush.bf16.msra.mxu0 %v2396
    %2720 = vmatpush.bf16.msra.mxu0 %v2391
    %2721 = vmatpush.bf16.msra.mxu0 %v2386
    %2722 = vmatpush.bf16.msra.mxu0 %v2381
    %2723 = vmatpush.bf16.msra.mxu0 %v2376
    %2724 = vmatpush.bf16.msra.mxu0 %v2371
    %2725 = vmatmul.bf16.gmra.mxu0 %v1396
    %v2726 = vpop.f32.mrf.mxu0
    %v2727 = vadd.f32 %v2714, %v2726
    %v2728 = vpop.f32.mrf.mxu0
    %2729 = vdwg.mxu0
    %2730 = vmatpush.bf16.msra.mxu0 %v2446
    %2731 = vmatpush.bf16.msra.mxu0 %v2441
    %2732 = vmatpush.bf16.msra.mxu0 %v2436
    %2733 = vmatpush.bf16.msra.mxu0 %v2431
    %2734 = vmatpush.bf16.msra.mxu0 %v2426
    %2735 = vmatpush.bf16.msra.mxu0 %v2421
    %2736 = vmatpush.bf16.msra.mxu0 %v2416
    %2737 = vmatpush.bf16.msra.mxu0 %v2411
    %2738 = vmatmul.bf16.gmra.mxu0 %v1397
    %v2739 = vpop.f32.mrf.mxu0
    %v2740 = vadd.f32 %v2727, %v2739
    %v2741 = vpop.f32.mrf.mxu0
    %2742 = vdwg.mxu0
    %2743 = vmatpush.bf16.msra.mxu0 %v2486
    %2744 = vmatpush.bf16.msra.mxu0 %v2481
    %2745 = vmatpush.bf16.msra.mxu0 %v2476
    %2746 = vmatpush.bf16.msra.mxu0 %v2471
    %2747 = vmatpush.bf16.msra.mxu0 %v2466
    %2748 = vmatpush.bf16.msra.mxu0 %v2461
    %2749 = vmatpush.bf16.msra.mxu0 %v2456
    %2750 = vmatpush.bf16.msra.mxu0 %v2451
    %2751 = vmatmul.bf16.gmra.mxu0 %v1398
    %v2752 = vpop.f32.mrf.mxu0
    %v2753 = vadd.f32 %v2740, %v2752
    %v2754 = vpop.f32.mrf.mxu0
    %2755 = vdwg.mxu0
    %2756 = vmatpush.bf16.msra.mxu0 %v2327
    %2757 = vmatpush.bf16.msra.mxu0 %v2322
    %2758 = vmatpush.bf16.msra.mxu0 %v2317
    %2759 = vmatpush.bf16.msra.mxu0 %v2312
    %2760 = vmatpush.bf16.msra.mxu0 %v2307
    %2761 = vmatpush.bf16.msra.mxu0 %v2302
    %2762 = vmatpush.bf16.msra.mxu0 %v2297
    %2763 = vmatpush.bf16.msra.mxu0 %v2292
    %2764 = vmatmul.bf16.gmra.mxu0 %v1394
    %v2765 = vpop.f32.mrf.mxu0
    %v2766 = vadd.f32 %v1642, %v2765
    %v2767 = vpop.f32.mrf.mxu0
    %2768 = vdwg.mxu0
    %2769 = vmatpush.bf16.msra.mxu0 %v2367
    %2770 = vmatpush.bf16.msra.mxu0 %v2362
    %2771 = vmatpush.bf16.msra.mxu0 %v2357
    %2772 = vmatpush.bf16.msra.mxu0 %v2352
    %2773 = vmatpush.bf16.msra.mxu0 %v2347
    %2774 = vmatpush.bf16.msra.mxu0 %v2342
    %2775 = vmatpush.bf16.msra.mxu0 %v2337
    %2776 = vmatpush.bf16.msra.mxu0 %v2332
    %2777 = vmatmul.bf16.gmra.mxu0 %v1395
    %v2778 = vpop.f32.mrf.mxu0
    %v2779 = vadd.f32 %v2766, %v2778
    %v2780 = vpop.f32.mrf.mxu0
    %2781 = vdwg.mxu0
    %2782 = vmatpush.bf16.msra.mxu0 %v2407
    %2783 = vmatpush.bf16.msra.mxu0 %v2402
    %2784 = vmatpush.bf16.msra.mxu0 %v2397
    %2785 = vmatpush.bf16.msra.mxu0 %v2392
    %2786 = vmatpush.bf16.msra.mxu0 %v2387
    %2787 = vmatpush.bf16.msra.mxu0 %v2382
    %2788 = vmatpush.bf16.msra.mxu0 %v2377
    %2789 = vmatpush.bf16.msra.mxu0 %v2372
    %2790 = vmatmul.bf16.gmra.mxu0 %v1396
    %v2791 = vpop.f32.mrf.mxu0
    %v2792 = vadd.f32 %v2779, %v2791
    %v2793 = vpop.f32.mrf.mxu0
    %2794 = vdwg.mxu0
    %2795 = vmatpush.bf16.msra.mxu0 %v2447
    %2796 = vmatpush.bf16.msra.mxu0 %v2442
    %2797 = vmatpush.bf16.msra.mxu0 %v2437
    %2798 = vmatpush.bf16.msra.mxu0 %v2432
    %2799 = vmatpush.bf16.msra.mxu0 %v2427
    %2800 = vmatpush.bf16.msra.mxu0 %v2422
    %2801 = vmatpush.bf16.msra.mxu0 %v2417
    %2802 = vmatpush.bf16.msra.mxu0 %v2412
    %2803 = vmatmul.bf16.gmra.mxu0 %v1397
    %v2804 = vpop.f32.mrf.mxu0
    %v2805 = vadd.f32 %v2792, %v2804
    %v2806 = vpop.f32.mrf.mxu0
    %2807 = vdwg.mxu0
    %2808 = vmatpush.bf16.msra.mxu0 %v2487
    %2809 = vmatpush.bf16.msra.mxu0 %v2482
    %2810 = vmatpush.bf16.msra.mxu0 %v2477
    %2811 = vmatpush.bf16.msra.mxu0 %v2472
    %2812 = vmatpush.bf16.msra.mxu0 %v2467
    %2813 = vmatpush.bf16.msra.mxu0 %v2462
    %2814 = vmatpush.bf16.msra.mxu0 %v2457
    %2815 = vmatpush.bf16.msra.mxu0 %v2452
    %2816 = vmatmul.bf16.gmra.mxu0 %v1398
    %v2817 = vpop.f32.mrf.mxu0
    %v2818 = vadd.f32 %v2805, %v2817
    %v2819 = vpop.f32.mrf.mxu0
    %2820 = vdwg.mxu0
    %2821 = vmatpush.bf16.msra.mxu0 %v2328
    %2822 = vmatpush.bf16.msra.mxu0 %v2323
    %2823 = vmatpush.bf16.msra.mxu0 %v2318
    %2824 = vmatpush.bf16.msra.mxu0 %v2313
    %2825 = vmatpush.bf16.msra.mxu0 %v2308
    %2826 = vmatpush.bf16.msra.mxu0 %v2303
    %2827 = vmatpush.bf16.msra.mxu0 %v2298
    %2828 = vmatpush.bf16.msra.mxu0 %v2293
    %2829 = vmatmul.bf16.gmra.mxu0 %v1394
    %v2830 = vpop.f32.mrf.mxu0
    %v2831 = vadd.f32 %v1643, %v2830
    %v2832 = vpop.f32.mrf.mxu0
    %2833 = vdwg.mxu0
    %2834 = vmatpush.bf16.msra.mxu0 %v2368
    %2835 = vmatpush.bf16.msra.mxu0 %v2363
    %2836 = vmatpush.bf16.msra.mxu0 %v2358
    %2837 = vmatpush.bf16.msra.mxu0 %v2353
    %2838 = vmatpush.bf16.msra.mxu0 %v2348
    %2839 = vmatpush.bf16.msra.mxu0 %v2343
    %2840 = vmatpush.bf16.msra.mxu0 %v2338
    %2841 = vmatpush.bf16.msra.mxu0 %v2333
    %2842 = vmatmul.bf16.gmra.mxu0 %v1395
    %v2843 = vpop.f32.mrf.mxu0
    %v2844 = vadd.f32 %v2831, %v2843
    %v2845 = vpop.f32.mrf.mxu0
    %2846 = vdwg.mxu0
    %2847 = vmatpush.bf16.msra.mxu0 %v2408
    %2848 = vmatpush.bf16.msra.mxu0 %v2403
    %2849 = vmatpush.bf16.msra.mxu0 %v2398
    %2850 = vmatpush.bf16.msra.mxu0 %v2393
    %2851 = vmatpush.bf16.msra.mxu0 %v2388
    %2852 = vmatpush.bf16.msra.mxu0 %v2383
    %2853 = vmatpush.bf16.msra.mxu0 %v2378
    %2854 = vmatpush.bf16.msra.mxu0 %v2373
    %2855 = vmatmul.bf16.gmra.mxu0 %v1396
    %v2856 = vpop.f32.mrf.mxu0
    %v2857 = vadd.f32 %v2844, %v2856
    %v2858 = vpop.f32.mrf.mxu0
    %2859 = vdwg.mxu0
    %2860 = vmatpush.bf16.msra.mxu0 %v2448
    %2861 = vmatpush.bf16.msra.mxu0 %v2443
    %2862 = vmatpush.bf16.msra.mxu0 %v2438
    %2863 = vmatpush.bf16.msra.mxu0 %v2433
    %2864 = vmatpush.bf16.msra.mxu0 %v2428
    %2865 = vmatpush.bf16.msra.mxu0 %v2423
    %2866 = vmatpush.bf16.msra.mxu0 %v2418
    %2867 = vmatpush.bf16.msra.mxu0 %v2413
    %2868 = vmatmul.bf16.gmra.mxu0 %v1397
    %v2869 = vpop.f32.mrf.mxu0
    %v2870 = vadd.f32 %v2857, %v2869
    %v2871 = vpop.f32.mrf.mxu0
    %2872 = vdwg.mxu0
    %2873 = vmatpush.bf16.msra.mxu0 %v2488
    %2874 = vmatpush.bf16.msra.mxu0 %v2483
    %2875 = vmatpush.bf16.msra.mxu0 %v2478
    %2876 = vmatpush.bf16.msra.mxu0 %v2473
    %2877 = vmatpush.bf16.msra.mxu0 %v2468
    %2878 = vmatpush.bf16.msra.mxu0 %v2463
    %2879 = vmatpush.bf16.msra.mxu0 %v2458
    %2880 = vmatpush.bf16.msra.mxu0 %v2453
    %2881 = vmatmul.bf16.gmra.mxu0 %v1398
    %v2882 = vpop.f32.mrf.mxu0
    %v2883 = vadd.f32 %v2870, %v2882
    %v2884 = vpop.f32.mrf.mxu0
    %2885 = vdwg.mxu0
    %2886 = vmatpush.bf16.msra.mxu0 %v2329
    %2887 = vmatpush.bf16.msra.mxu0 %v2324
    %2888 = vmatpush.bf16.msra.mxu0 %v2319
    %2889 = vmatpush.bf16.msra.mxu0 %v2314
    %2890 = vmatpush.bf16.msra.mxu0 %v2309
    %2891 = vmatpush.bf16.msra.mxu0 %v2304
    %2892 = vmatpush.bf16.msra.mxu0 %v2299
    %2893 = vmatpush.bf16.msra.mxu0 %v2294
    %2894 = vmatmul.bf16.gmra.mxu0 %v1394
    %v2895 = vpop.f32.mrf.mxu0
    %v2896 = vadd.f32 %v1644, %v2895
    %v2897 = vpop.f32.mrf.mxu0
    %2898 = vdwg.mxu0
    %2899 = vmatpush.bf16.msra.mxu0 %v2369
    %2900 = vmatpush.bf16.msra.mxu0 %v2364
    %2901 = vmatpush.bf16.msra.mxu0 %v2359
    %2902 = vmatpush.bf16.msra.mxu0 %v2354
    %2903 = vmatpush.bf16.msra.mxu0 %v2349
    %2904 = vmatpush.bf16.msra.mxu0 %v2344
    %2905 = vmatpush.bf16.msra.mxu0 %v2339
    %2906 = vmatpush.bf16.msra.mxu0 %v2334
    %2907 = vmatmul.bf16.gmra.mxu0 %v1395
    %v2908 = vpop.f32.mrf.mxu0
    %v2909 = vadd.f32 %v2896, %v2908
    %v2910 = vpop.f32.mrf.mxu0
    %2911 = vdwg.mxu0
    %2912 = vmatpush.bf16.msra.mxu0 %v2409
    %2913 = vmatpush.bf16.msra.mxu0 %v2404
    %2914 = vmatpush.bf16.msra.mxu0 %v2399
    %2915 = vmatpush.bf16.msra.mxu0 %v2394
    %2916 = vmatpush.bf16.msra.mxu0 %v2389
    %2917 = vmatpush.bf16.msra.mxu0 %v2384
    %2918 = vmatpush.bf16.msra.mxu0 %v2379
    %2919 = vmatpush.bf16.msra.mxu0 %v2374
    %2920 = vmatmul.bf16.gmra.mxu0 %v1396
    %v2921 = vpop.f32.mrf.mxu0
    %v2922 = vadd.f32 %v2909, %v2921
    %v2923 = vpop.f32.mrf.mxu0
    %2924 = vdwg.mxu0
    %2925 = vmatpush.bf16.msra.mxu0 %v2449
    %2926 = vmatpush.bf16.msra.mxu0 %v2444
    %2927 = vmatpush.bf16.msra.mxu0 %v2439
    %2928 = vmatpush.bf16.msra.mxu0 %v2434
    %2929 = vmatpush.bf16.msra.mxu0 %v2429
    %2930 = vmatpush.bf16.msra.mxu0 %v2424
    %2931 = vmatpush.bf16.msra.mxu0 %v2419
    %2932 = vmatpush.bf16.msra.mxu0 %v2414
    %2933 = vmatmul.bf16.gmra.mxu0 %v1397
    %v2934 = vpop.f32.mrf.mxu0
    %v2935 = vadd.f32 %v2922, %v2934
    %v2936 = vpop.f32.mrf.mxu0
    %2937 = vdwg.mxu0
    %2938 = vmatpush.bf16.msra.mxu0 %v2489
    %2939 = vmatpush.bf16.msra.mxu0 %v2484
    %2940 = vmatpush.bf16.msra.mxu0 %v2479
    %2941 = vmatpush.bf16.msra.mxu0 %v2474
    %2942 = vmatpush.bf16.msra.mxu0 %v2469
    %2943 = vmatpush.bf16.msra.mxu0 %v2464
    %2944 = vmatpush.bf16.msra.mxu0 %v2459
    %2945 = vmatpush.bf16.msra.mxu0 %v2454
    %2946 = vmatmul.bf16.gmra.mxu0 %v1398
    %v2947 = vpop.f32.mrf.mxu0
    %v2948 = vadd.f32 %v2935, %v2947
    %v2949 = vpop.f32.mrf.mxu0
    %2950 = vdwg.mxu0
    %2951 = vmatpush.bf16.msra.mxu0 %v2330
    %2952 = vmatpush.bf16.msra.mxu0 %v2325
    %2953 = vmatpush.bf16.msra.mxu0 %v2320
    %2954 = vmatpush.bf16.msra.mxu0 %v2315
    %2955 = vmatpush.bf16.msra.mxu0 %v2310
    %2956 = vmatpush.bf16.msra.mxu0 %v2305
    %2957 = vmatpush.bf16.msra.mxu0 %v2300
    %2958 = vmatpush.bf16.msra.mxu0 %v2295
    %2959 = vmatmul.bf16.gmra.mxu0 %v1394
    %v2960 = vpop.f32.mrf.mxu0
    %v2961 = vadd.f32 %v1645, %v2960
    %v2962 = vpop.f32.mrf.mxu0
    %2963 = vdwg.mxu0
    %2964 = vmatpush.bf16.msra.mxu0 %v2370
    %2965 = vmatpush.bf16.msra.mxu0 %v2365
    %2966 = vmatpush.bf16.msra.mxu0 %v2360
    %2967 = vmatpush.bf16.msra.mxu0 %v2355
    %2968 = vmatpush.bf16.msra.mxu0 %v2350
    %2969 = vmatpush.bf16.msra.mxu0 %v2345
    %2970 = vmatpush.bf16.msra.mxu0 %v2340
    %2971 = vmatpush.bf16.msra.mxu0 %v2335
    %2972 = vmatmul.bf16.gmra.mxu0 %v1395
    %v2973 = vpop.f32.mrf.mxu0
    %v2974 = vadd.f32 %v2961, %v2973
    %v2975 = vpop.f32.mrf.mxu0
    %2976 = vdwg.mxu0
    %2977 = vmatpush.bf16.msra.mxu0 %v2410
    %2978 = vmatpush.bf16.msra.mxu0 %v2405
    %2979 = vmatpush.bf16.msra.mxu0 %v2400
    %2980 = vmatpush.bf16.msra.mxu0 %v2395
    %2981 = vmatpush.bf16.msra.mxu0 %v2390
    %2982 = vmatpush.bf16.msra.mxu0 %v2385
    %2983 = vmatpush.bf16.msra.mxu0 %v2380
    %2984 = vmatpush.bf16.msra.mxu0 %v2375
    %2985 = vmatmul.bf16.gmra.mxu0 %v1396
    %v2986 = vpop.f32.mrf.mxu0
    %v2987 = vadd.f32 %v2974, %v2986
    %v2988 = vpop.f32.mrf.mxu0
    %2989 = vdwg.mxu0
    %2990 = vmatpush.bf16.msra.mxu0 %v2450
    %2991 = vmatpush.bf16.msra.mxu0 %v2445
    %2992 = vmatpush.bf16.msra.mxu0 %v2440
    %2993 = vmatpush.bf16.msra.mxu0 %v2435
    %2994 = vmatpush.bf16.msra.mxu0 %v2430
    %2995 = vmatpush.bf16.msra.mxu0 %v2425
    %2996 = vmatpush.bf16.msra.mxu0 %v2420
    %2997 = vmatpush.bf16.msra.mxu0 %v2415
    %2998 = vmatmul.bf16.gmra.mxu0 %v1397
    %v2999 = vpop.f32.mrf.mxu0
    %v3000 = vadd.f32 %v2987, %v2999
    %v3001 = vpop.f32.mrf.mxu0
    %3002 = vdwg.mxu0
    %3003 = vmatpush.bf16.msra.mxu0 %v2490
    %3004 = vmatpush.bf16.msra.mxu0 %v2485
    %3005 = vmatpush.bf16.msra.mxu0 %v2480
    %3006 = vmatpush.bf16.msra.mxu0 %v2475
    %3007 = vmatpush.bf16.msra.mxu0 %v2470
    %3008 = vmatpush.bf16.msra.mxu0 %v2465
    %3009 = vmatpush.bf16.msra.mxu0 %v2460
    %3010 = vmatpush.bf16.msra.mxu0 %v2455
    %3011 = vmatmul.bf16.gmra.mxu0 %v1398
    %v3012 = vpop.f32.mrf.mxu0
    %v3013 = vadd.f32 %v3000, %v3012
    %v3014 = vpop.f32.mrf.mxu0
    %3015 = vdwg.mxu0
    %v3016 = vmul.f32 %v2753, 0.5
    %v3017 = vmul.f32 %v2818, 0.5
    %v3018 = vmul.f32 %v2883, 0.5
    %v3019 = vmul.f32 %v2948, 0.5
    %v3020 = vmul.f32 %v3013, 0.5
    %v3021 = vpack.c.bf16 %v3017, %v3016
    %v3022 = vpack.c.bf16 %v3019, %v3018
    %v3023 = vpack.c.bf16 %v3020, %v3020
    %v3024 = vunpack.c.l.bf16 %v3021
    %v3025 = vunpack.c.h.bf16 %v3021
    %v3026 = vunpack.c.l.bf16 %v3022
    %v3027 = vunpack.c.h.bf16 %v3022
    %v3028 = vunpack.c.l.bf16 %v3023
    %v3029 = vtanh.pop %v3024
    %v3030 = vtanh.pop %v3025
    %v3031 = vtanh.pop %v3026
    %v3032 = vtanh.pop %v3027
    %v3033 = vtanh.pop %v3028
    %v3034 = vpack.c.bf16 %v3030, %v3029
    %v3035 = vpack.c.bf16 %v3032, %v3031
    %v3036 = vpack.c.bf16 %v3033, %v3033
    %v3037 = vunpack.c.l.bf16 %v3034
    %v3038 = vunpack.c.h.bf16 %v3034
    %v3039 = vunpack.c.l.bf16 %v3035
    %v3040 = vunpack.c.h.bf16 %v3035
    %v3041 = vunpack.c.l.bf16 %v3036
    %v3042 = vmul.f32 %v3037, 0.5
    %v3043 = vmul.f32 %v3038, 0.5
    %v3044 = vmul.f32 %v3039, 0.5
    %v3045 = vmul.f32 %v3040, 0.5
    %v3046 = vmul.f32 %v3041, 0.5
    %v3047 = vpack.c.bf16 %v3043, %v3042
    %v3048 = vpack.c.bf16 %v3045, %v3044
    %v3049 = vpack.c.bf16 %v3046, %v3046
    %v3050 = vunpack.c.l.bf16 %v3047
    %v3051 = vunpack.c.h.bf16 %v3047
    %v3052 = vunpack.c.l.bf16 %v3048
    %v3053 = vunpack.c.h.bf16 %v3048
    %v3054 = vunpack.c.l.bf16 %v3049
    %v3055 = vadd.f32 %v3050, 0.5
    %v3056 = vadd.f32 %v3051, 0.5
    %v3057 = vadd.f32 %v3052, 0.5
    %v3058 = vadd.f32 %v3053, 0.5
    %v3059 = vadd.f32 %v3054, 0.5
    %v3060 = vpack.c.bf16 %v3055, %v3055
    %v3061 = vpack.c.bf16 %v3056, %v3056
    %v3062 = vpack.c.bf16 %v3057, %v3057
    %v3063 = vpack.c.bf16 %v3058, %v3058
    %v3064 = vpack.c.bf16 %v3059, %v3059
    %v3065 = vld [vmem:[%s5] sm:$0xff]
    %v3066 = vld [vmem:[%s5 + $0x8] sm:$0xff]
    %v3067 = vld [vmem:[%s5 + $0x10] sm:$0xff]
    %v3068 = vld [vmem:[%s5 + $0x18] sm:$0xff]
    %v3069 = vld [vmem:[%s5 + $0x20] sm:$0xff]
    %v3070 = vld [vmem:[%s5 + $0x28] sm:$0xff]
    %v3071 = vld [vmem:[%s5 + $0x30] sm:$0xff]
    %v3072 = vld [vmem:[%s5 + $0x38] sm:$0xff]
    %v3073 = vld [vmem:[%s5 + $0x40] sm:$0xff]
    %v3074 = vld [vmem:[%s5 + $0x48] sm:$0xff]
    %v3075 = vld [vmem:[%s5 + $0x50] sm:$0xff]
    %v3076 = vld [vmem:[%s5 + $0x58] sm:$0xff]
    %v3077 = vld [vmem:[%s5 + $0x60] sm:$0xff]
    %v3078 = vld [vmem:[%s5 + $0x68] sm:$0xff]
    %v3079 = vld [vmem:[%s5 + $0x70] sm:$0xff]
    %v3080 = vld [vmem:[%s5 + $0x78] sm:$0xff]
    %v3081 = vld [vmem:[%s5 + $0x80] sm:$0xff]
    %v3082 = vld [vmem:[%s5 + $0x88] sm:$0xff]
    %v3083 = vld [vmem:[%s5 + $0x90] sm:$0xff]
    %v3084 = vld [vmem:[%s5 + $0x98] sm:$0xff]
    %v3085 = vld [vmem:[%s5 + $0xa0] sm:$0xff]
    %v3086 = vld [vmem:[%s5 + $0xa8] sm:$0xff]
    %v3087 = vld [vmem:[%s5 + $0xb0] sm:$0xff]
    %v3088 = vld [vmem:[%s5 + $0xb8] sm:$0xff]
    %v3089 = vld [vmem:[%s5 + $0xc0] sm:$0xff]
    %v3090 = vld [vmem:[%s5 + $0xc8] sm:$0xff]
    %v3091 = vld [vmem:[%s5 + $0xd0] sm:$0xff]
    %v3092 = vld [vmem:[%s5 + $0xd8] sm:$0xff]
    %v3093 = vld [vmem:[%s5 + $0xe0] sm:$0xff]
    %v3094 = vld [vmem:[%s5 + $0xe8] sm:$0xff]
    %v3095 = vld [vmem:[%s5 + $0xf0] sm:$0xff]
    %v3096 = vld [vmem:[%s5 + $0xf8] sm:$0xff]
    %v3097 = vld [vmem:[%s5 + $0x100] sm:$0xff]
    %v3098 = vld [vmem:[%s5 + $0x108] sm:$0xff]
    %v3099 = vld [vmem:[%s5 + $0x110] sm:$0xff]
    %v3100 = vld [vmem:[%s5 + $0x118] sm:$0xff]
    %v3101 = vld [vmem:[%s5 + $0x120] sm:$0xff]
    %v3102 = vld [vmem:[%s5 + $0x128] sm:$0xff]
    %v3103 = vld [vmem:[%s5 + $0x130] sm:$0xff]
    %v3104 = vld [vmem:[%s5 + $0x138] sm:$0xff]
    %v3105 = vld [vmem:[%s5 + $0x140] sm:$0xff]
    %v3106 = vld [vmem:[%s5 + $0x148] sm:$0xff]
    %v3107 = vld [vmem:[%s5 + $0x150] sm:$0xff]
    %v3108 = vld [vmem:[%s5 + $0x158] sm:$0xff]
    %v3109 = vld [vmem:[%s5 + $0x160] sm:$0xff]
    %v3110 = vld [vmem:[%s5 + $0x168] sm:$0xff]
    %v3111 = vld [vmem:[%s5 + $0x170] sm:$0xff]
    %v3112 = vld [vmem:[%s5 + $0x178] sm:$0xff]
    %v3113 = vld [vmem:[%s5 + $0x180] sm:$0xff]
    %v3114 = vld [vmem:[%s5 + $0x188] sm:$0xff]
    %v3115 = vld [vmem:[%s5 + $0x190] sm:$0xff]
    %v3116 = vld [vmem:[%s5 + $0x198] sm:$0xff]
    %v3117 = vld [vmem:[%s5 + $0x1a0] sm:$0xff]
    %v3118 = vld [vmem:[%s5 + $0x1a8] sm:$0xff]
    %v3119 = vld [vmem:[%s5 + $0x1b0] sm:$0xff]
    %v3120 = vld [vmem:[%s5 + $0x1b8] sm:$0xff]
    %v3121 = vld [vmem:[%s5 + $0x1c0] sm:$0xff]
    %v3122 = vld [vmem:[%s5 + $0x1c8] sm:$0xff]
    %v3123 = vld [vmem:[%s5 + $0x1d0] sm:$0xff]
    %v3124 = vld [vmem:[%s5 + $0x1d8] sm:$0xff]
    %v3125 = vld [vmem:[%s5 + $0x1e0] sm:$0xff]
    %v3126 = vld [vmem:[%s5 + $0x1e8] sm:$0xff]
    %v3127 = vld [vmem:[%s5 + $0x1f0] sm:$0xff]
    %v3128 = vld [vmem:[%s5 + $0x1f8] sm:$0xff]
    %v3129 = vld [vmem:[%s5 + $0x200] sm:$0xff]
    %v3130 = vld [vmem:[%s5 + $0x208] sm:$0xff]
    %v3131 = vld [vmem:[%s5 + $0x210] sm:$0xff]
    %v3132 = vld [vmem:[%s5 + $0x218] sm:$0xff]
    %v3133 = vld [vmem:[%s5 + $0x220] sm:$0xff]
    %v3134 = vld [vmem:[%s5 + $0x228] sm:$0xff]
    %v3135 = vld [vmem:[%s5 + $0x230] sm:$0xff]
    %v3136 = vld [vmem:[%s5 + $0x238] sm:$0xff]
    %v3137 = vld [vmem:[%s5 + $0x240] sm:$0xff]
    %v3138 = vld [vmem:[%s5 + $0x248] sm:$0xff]
    %v3139 = vld [vmem:[%s5 + $0x250] sm:$0xff]
    %v3140 = vld [vmem:[%s5 + $0x258] sm:$0xff]
    %v3141 = vld [vmem:[%s5 + $0x260] sm:$0xff]
    %v3142 = vld [vmem:[%s5 + $0x268] sm:$0xff]
    %v3143 = vld [vmem:[%s5 + $0x270] sm:$0xff]
    %v3144 = vld [vmem:[%s5 + $0x278] sm:$0xff]
    %v3145 = vld [vmem:[%s5 + $0x280] sm:$0xff]
    %v3146 = vld [vmem:[%s5 + $0x288] sm:$0xff]
    %v3147 = vld [vmem:[%s5 + $0x290] sm:$0xff]
    %v3148 = vld [vmem:[%s5 + $0x298] sm:$0xff]
    %v3149 = vld [vmem:[%s5 + $0x2a0] sm:$0xff]
    %v3150 = vld [vmem:[%s5 + $0x2a8] sm:$0xff]
    %v3151 = vld [vmem:[%s5 + $0x2b0] sm:$0xff]
    %v3152 = vld [vmem:[%s5 + $0x2b8] sm:$0xff]
    %v3153 = vld [vmem:[%s5 + $0x2c0] sm:$0xff]
    %v3154 = vld [vmem:[%s5 + $0x2c8] sm:$0xff]
    %v3155 = vld [vmem:[%s5 + $0x2d0] sm:$0xff]
    %v3156 = vld [vmem:[%s5 + $0x2d8] sm:$0xff]
    %v3157 = vld [vmem:[%s5 + $0x2e0] sm:$0xff]
    %v3158 = vld [vmem:[%s5 + $0x2e8] sm:$0xff]
    %v3159 = vld [vmem:[%s5 + $0x2f0] sm:$0xff]
    %v3160 = vld [vmem:[%s5 + $0x2f8] sm:$0xff]
    %v3161 = vld [vmem:[%s5 + $0x300] sm:$0xff]
    %v3162 = vld [vmem:[%s5 + $0x308] sm:$0xff]
    %v3163 = vld [vmem:[%s5 + $0x310] sm:$0xff]
    %v3164 = vld [vmem:[%s5 + $0x318] sm:$0xff]
    %v3165 = vld [vmem:[%s5 + $0x320] sm:$0xff]
    %v3166 = vld [vmem:[%s5 + $0x328] sm:$0xff]
    %v3167 = vld [vmem:[%s5 + $0x330] sm:$0xff]
    %v3168 = vld [vmem:[%s5 + $0x338] sm:$0xff]
    %v3169 = vld [vmem:[%s5 + $0x340] sm:$0xff]
    %v3170 = vld [vmem:[%s5 + $0x348] sm:$0xff]
    %v3171 = vld [vmem:[%s5 + $0x350] sm:$0xff]
    %v3172 = vld [vmem:[%s5 + $0x358] sm:$0xff]
    %v3173 = vld [vmem:[%s5 + $0x360] sm:$0xff]
    %v3174 = vld [vmem:[%s5 + $0x368] sm:$0xff]
    %v3175 = vld [vmem:[%s5 + $0x370] sm:$0xff]
    %v3176 = vld [vmem:[%s5 + $0x378] sm:$0xff]
    %v3177 = vld [vmem:[%s5 + $0x380] sm:$0xff]
    %v3178 = vld [vmem:[%s5 + $0x388] sm:$0xff]
    %v3179 = vld [vmem:[%s5 + $0x390] sm:$0xff]
    %v3180 = vld [vmem:[%s5 + $0x398] sm:$0xff]
    %v3181 = vld [vmem:[%s5 + $0x3a0] sm:$0xff]
    %v3182 = vld [vmem:[%s5 + $0x3a8] sm:$0xff]
    %v3183 = vld [vmem:[%s5 + $0x3b0] sm:$0xff]
    %v3184 = vld [vmem:[%s5 + $0x3b8] sm:$0xff]
    %v3185 = vld [vmem:[%s5 + $0x3c0] sm:$0xff]
    %v3186 = vld [vmem:[%s5 + $0x3c8] sm:$0xff]
    %v3187 = vld [vmem:[%s5 + $0x3d0] sm:$0xff]
    %v3188 = vld [vmem:[%s5 + $0x3d8] sm:$0xff]
    %v3189 = vld [vmem:[%s5 + $0x3e0] sm:$0xff]
    %v3190 = vld [vmem:[%s5 + $0x3e8] sm:$0xff]
    %v3191 = vld [vmem:[%s5 + $0x3f0] sm:$0xff]
    %v3192 = vld [vmem:[%s5 + $0x3f8] sm:$0xff]
    %v3193 = vld [vmem:[%s5 + $0x400] sm:$0xff]
    %v3194 = vld [vmem:[%s5 + $0x408] sm:$0xff]
    %v3195 = vld [vmem:[%s5 + $0x410] sm:$0xff]
    %v3196 = vld [vmem:[%s5 + $0x418] sm:$0xff]
    %v3197 = vld [vmem:[%s5 + $0x420] sm:$0xff]
    %v3198 = vld [vmem:[%s5 + $0x428] sm:$0xff]
    %v3199 = vld [vmem:[%s5 + $0x430] sm:$0xff]
    %v3200 = vld [vmem:[%s5 + $0x438] sm:$0xff]
    %v3201 = vld [vmem:[%s5 + $0x440] sm:$0xff]
    %v3202 = vld [vmem:[%s5 + $0x448] sm:$0xff]
    %v3203 = vld [vmem:[%s5 + $0x450] sm:$0xff]
    %v3204 = vld [vmem:[%s5 + $0x458] sm:$0xff]
    %v3205 = vld [vmem:[%s5 + $0x460] sm:$0xff]
    %v3206 = vld [vmem:[%s5 + $0x468] sm:$0xff]
    %v3207 = vld [vmem:[%s5 + $0x470] sm:$0xff]
    %v3208 = vld [vmem:[%s5 + $0x478] sm:$0xff]
    %v3209 = vld [vmem:[%s5 + $0x480] sm:$0xff]
    %v3210 = vld [vmem:[%s5 + $0x488] sm:$0xff]
    %v3211 = vld [vmem:[%s5 + $0x490] sm:$0xff]
    %v3212 = vld [vmem:[%s5 + $0x498] sm:$0xff]
    %v3213 = vld [vmem:[%s5 + $0x4a0] sm:$0xff]
    %v3214 = vld [vmem:[%s5 + $0x4a8] sm:$0xff]
    %v3215 = vld [vmem:[%s5 + $0x4b0] sm:$0xff]
    %v3216 = vld [vmem:[%s5 + $0x4b8] sm:$0xff]
    %v3217 = vld [vmem:[%s5 + $0x4c0] sm:$0xff]
    %v3218 = vld [vmem:[%s5 + $0x4c8] sm:$0xff]
    %v3219 = vld [vmem:[%s5 + $0x4d0] sm:$0xff]
    %v3220 = vld [vmem:[%s5 + $0x4d8] sm:$0xff]
    %v3221 = vld [vmem:[%s5 + $0x4e0] sm:$0xff]
    %v3222 = vld [vmem:[%s5 + $0x4e8] sm:$0xff]
    %v3223 = vld [vmem:[%s5 + $0x4f0] sm:$0xff]
    %v3224 = vld [vmem:[%s5 + $0x4f8] sm:$0xff]
    %v3225 = vld [vmem:[%s6] sm:$0xf]
    %v3227 = vperm.slane %v3225, 0
    %v3228 = vperm.slane %v3225, 1
    %v3229 = vperm.slane %v3225, 2
    %v3230 = vperm.slane %v3225, 3
    %v3395 = vunpack.c.l.b16 %v3065
    %v3396 = vunpack.c.h.b16 %v3065
    %v3397 = vunpack.c.l.b16 %v3066
    %v3398 = vunpack.c.h.b16 %v3066
    %v3399 = vunpack.c.l.b16 %v3067
    %v3400 = vunpack.c.h.b16 %v3067
    %v3401 = vunpack.c.l.b16 %v3068
    %v3402 = vunpack.c.h.b16 %v3068
    %v3403 = vunpack.c.l.b16 %v3069
    %v3404 = vunpack.c.h.b16 %v3069
    %v3405 = vunpack.c.l.b16 %v3070
    %v3406 = vunpack.c.h.b16 %v3070
    %v3407 = vunpack.c.l.b16 %v3071
    %v3408 = vunpack.c.h.b16 %v3071
    %v3409 = vunpack.c.l.b16 %v3072
    %v3410 = vunpack.c.h.b16 %v3072
    %v3411 = vunpack.c.l.b16 %v3073
    %v3412 = vunpack.c.h.b16 %v3073
    %v3413 = vunpack.c.l.b16 %v3074
    %v3414 = vunpack.c.h.b16 %v3074
    %v3415 = vunpack.c.l.b16 %v3075
    %v3416 = vunpack.c.h.b16 %v3075
    %v3417 = vunpack.c.l.b16 %v3076
    %v3418 = vunpack.c.h.b16 %v3076
    %v3419 = vunpack.c.l.b16 %v3077
    %v3420 = vunpack.c.h.b16 %v3077
    %v3421 = vunpack.c.l.b16 %v3078
    %v3422 = vunpack.c.h.b16 %v3078
    %v3423 = vunpack.c.l.b16 %v3079
    %v3424 = vunpack.c.h.b16 %v3079
    %v3425 = vunpack.c.l.b16 %v3080
    %v3426 = vunpack.c.h.b16 %v3080
    %v3427 = vunpack.c.l.b16 %v3081
    %v3428 = vunpack.c.h.b16 %v3081
    %v3429 = vunpack.c.l.b16 %v3082
    %v3430 = vunpack.c.h.b16 %v3082
    %v3431 = vunpack.c.l.b16 %v3083
    %v3432 = vunpack.c.h.b16 %v3083
    %v3433 = vunpack.c.l.b16 %v3084
    %v3434 = vunpack.c.h.b16 %v3084
    %v3435 = vunpack.c.l.b16 %v3085
    %v3436 = vunpack.c.h.b16 %v3085
    %v3437 = vunpack.c.l.b16 %v3086
    %v3438 = vunpack.c.h.b16 %v3086
    %v3439 = vunpack.c.l.b16 %v3087
    %v3440 = vunpack.c.h.b16 %v3087
    %v3441 = vunpack.c.l.b16 %v3088
    %v3442 = vunpack.c.h.b16 %v3088
    %v3443 = vunpack.c.l.b16 %v3089
    %v3444 = vunpack.c.h.b16 %v3089
    %v3445 = vunpack.c.l.b16 %v3090
    %v3446 = vunpack.c.h.b16 %v3090
    %v3447 = vunpack.c.l.b16 %v3091
    %v3448 = vunpack.c.h.b16 %v3091
    %v3449 = vunpack.c.l.b16 %v3092
    %v3450 = vunpack.c.h.b16 %v3092
    %v3451 = vunpack.c.l.b16 %v3093
    %v3452 = vunpack.c.h.b16 %v3093
    %v3453 = vunpack.c.l.b16 %v3094
    %v3454 = vunpack.c.h.b16 %v3094
    %v3455 = vunpack.c.l.b16 %v3095
    %v3456 = vunpack.c.h.b16 %v3095
    %v3457 = vunpack.c.l.b16 %v3096
    %v3458 = vunpack.c.h.b16 %v3096
    %v3459 = vunpack.c.l.b16 %v3097
    %v3460 = vunpack.c.h.b16 %v3097
    %v3461 = vunpack.c.l.b16 %v3098
    %v3462 = vunpack.c.h.b16 %v3098
    %v3463 = vunpack.c.l.b16 %v3099
    %v3464 = vunpack.c.h.b16 %v3099
    %v3465 = vunpack.c.l.b16 %v3100
    %v3466 = vunpack.c.h.b16 %v3100
    %v3467 = vunpack.c.l.b16 %v3101
    %v3468 = vunpack.c.h.b16 %v3101
    %v3469 = vunpack.c.l.b16 %v3102
    %v3470 = vunpack.c.h.b16 %v3102
    %v3471 = vunpack.c.l.b16 %v3103
    %v3472 = vunpack.c.h.b16 %v3103
    %v3473 = vunpack.c.l.b16 %v3104
    %v3474 = vunpack.c.h.b16 %v3104
    %v3475 = vunpack.c.l.b16 %v3105
    %v3476 = vunpack.c.h.b16 %v3105
    %v3477 = vunpack.c.l.b16 %v3106
    %v3478 = vunpack.c.h.b16 %v3106
    %v3479 = vunpack.c.l.b16 %v3107
    %v3480 = vunpack.c.h.b16 %v3107
    %v3481 = vunpack.c.l.b16 %v3108
    %v3482 = vunpack.c.h.b16 %v3108
    %v3483 = vunpack.c.l.b16 %v3109
    %v3484 = vunpack.c.h.b16 %v3109
    %v3485 = vunpack.c.l.b16 %v3110
    %v3486 = vunpack.c.h.b16 %v3110
    %v3487 = vunpack.c.l.b16 %v3111
    %v3488 = vunpack.c.h.b16 %v3111
    %v3489 = vunpack.c.l.b16 %v3112
    %v3490 = vunpack.c.h.b16 %v3112
    %v3491 = vunpack.c.l.b16 %v3113
    %v3492 = vunpack.c.h.b16 %v3113
    %v3493 = vunpack.c.l.b16 %v3114
    %v3494 = vunpack.c.h.b16 %v3114
    %v3495 = vunpack.c.l.b16 %v3115
    %v3496 = vunpack.c.h.b16 %v3115
    %v3497 = vunpack.c.l.b16 %v3116
    %v3498 = vunpack.c.h.b16 %v3116
    %v3499 = vunpack.c.l.b16 %v3117
    %v3500 = vunpack.c.h.b16 %v3117
    %v3501 = vunpack.c.l.b16 %v3118
    %v3502 = vunpack.c.h.b16 %v3118
    %v3503 = vunpack.c.l.b16 %v3119
    %v3504 = vunpack.c.h.b16 %v3119
    %v3505 = vunpack.c.l.b16 %v3120
    %v3506 = vunpack.c.h.b16 %v3120
    %v3507 = vunpack.c.l.b16 %v3121
    %v3508 = vunpack.c.h.b16 %v3121
    %v3509 = vunpack.c.l.b16 %v3122
    %v3510 = vunpack.c.h.b16 %v3122
    %v3511 = vunpack.c.l.b16 %v3123
    %v3512 = vunpack.c.h.b16 %v3123
    %v3513 = vunpack.c.l.b16 %v3124
    %v3514 = vunpack.c.h.b16 %v3124
    %v3515 = vunpack.c.l.b16 %v3125
    %v3516 = vunpack.c.h.b16 %v3125
    %v3517 = vunpack.c.l.b16 %v3126
    %v3518 = vunpack.c.h.b16 %v3126
    %v3519 = vunpack.c.l.b16 %v3127
    %v3520 = vunpack.c.h.b16 %v3127
    %v3521 = vunpack.c.l.b16 %v3128
    %v3522 = vunpack.c.h.b16 %v3128
    %v3523 = vunpack.c.l.b16 %v3129
    %v3524 = vunpack.c.h.b16 %v3129
    %v3525 = vunpack.c.l.b16 %v3130
    %v3526 = vunpack.c.h.b16 %v3130
    %v3527 = vunpack.c.l.b16 %v3131
    %v3528 = vunpack.c.h.b16 %v3131
    %v3529 = vunpack.c.l.b16 %v3132
    %v3530 = vunpack.c.h.b16 %v3132
    %v3531 = vunpack.c.l.b16 %v3133
    %v3532 = vunpack.c.h.b16 %v3133
    %v3533 = vunpack.c.l.b16 %v3134
    %v3534 = vunpack.c.h.b16 %v3134
    %v3535 = vunpack.c.l.b16 %v3135
    %v3536 = vunpack.c.h.b16 %v3135
    %v3537 = vunpack.c.l.b16 %v3136
    %v3538 = vunpack.c.h.b16 %v3136
    %v3539 = vunpack.c.l.b16 %v3137
    %v3540 = vunpack.c.h.b16 %v3137
    %v3541 = vunpack.c.l.b16 %v3138
    %v3542 = vunpack.c.h.b16 %v3138
    %v3543 = vunpack.c.l.b16 %v3139
    %v3544 = vunpack.c.h.b16 %v3139
    %v3545 = vunpack.c.l.b16 %v3140
    %v3546 = vunpack.c.h.b16 %v3140
    %v3547 = vunpack.c.l.b16 %v3141
    %v3548 = vunpack.c.h.b16 %v3141
    %v3549 = vunpack.c.l.b16 %v3142
    %v3550 = vunpack.c.h.b16 %v3142
    %v3551 = vunpack.c.l.b16 %v3143
    %v3552 = vunpack.c.h.b16 %v3143
    %v3553 = vunpack.c.l.b16 %v3144
    %v3554 = vunpack.c.h.b16 %v3144
    %v3555 = vunpack.c.l.b16 %v3145
    %v3556 = vunpack.c.h.b16 %v3145
    %v3557 = vunpack.c.l.b16 %v3146
    %v3558 = vunpack.c.h.b16 %v3146
    %v3559 = vunpack.c.l.b16 %v3147
    %v3560 = vunpack.c.h.b16 %v3147
    %v3561 = vunpack.c.l.b16 %v3148
    %v3562 = vunpack.c.h.b16 %v3148
    %v3563 = vunpack.c.l.b16 %v3149
    %v3564 = vunpack.c.h.b16 %v3149
    %v3565 = vunpack.c.l.b16 %v3150
    %v3566 = vunpack.c.h.b16 %v3150
    %v3567 = vunpack.c.l.b16 %v3151
    %v3568 = vunpack.c.h.b16 %v3151
    %v3569 = vunpack.c.l.b16 %v3152
    %v3570 = vunpack.c.h.b16 %v3152
    %v3571 = vunpack.c.l.b16 %v3153
    %v3572 = vunpack.c.h.b16 %v3153
    %v3573 = vunpack.c.l.b16 %v3154
    %v3574 = vunpack.c.h.b16 %v3154
    %v3575 = vunpack.c.l.b16 %v3155
    %v3576 = vunpack.c.h.b16 %v3155
    %v3577 = vunpack.c.l.b16 %v3156
    %v3578 = vunpack.c.h.b16 %v3156
    %v3579 = vunpack.c.l.b16 %v3157
    %v3580 = vunpack.c.h.b16 %v3157
    %v3581 = vunpack.c.l.b16 %v3158
    %v3582 = vunpack.c.h.b16 %v3158
    %v3583 = vunpack.c.l.b16 %v3159
    %v3584 = vunpack.c.h.b16 %v3159
    %v3585 = vunpack.c.l.b16 %v3160
    %v3586 = vunpack.c.h.b16 %v3160
    %v3587 = vunpack.c.l.b16 %v3161
    %v3588 = vunpack.c.h.b16 %v3161
    %v3589 = vunpack.c.l.b16 %v3162
    %v3590 = vunpack.c.h.b16 %v3162
    %v3591 = vunpack.c.l.b16 %v3163
    %v3592 = vunpack.c.h.b16 %v3163
    %v3593 = vunpack.c.l.b16 %v3164
    %v3594 = vunpack.c.h.b16 %v3164
    %v3595 = vunpack.c.l.b16 %v3165
    %v3596 = vunpack.c.h.b16 %v3165
    %v3597 = vunpack.c.l.b16 %v3166
    %v3598 = vunpack.c.h.b16 %v3166
    %v3599 = vunpack.c.l.b16 %v3167
    %v3600 = vunpack.c.h.b16 %v3167
    %v3601 = vunpack.c.l.b16 %v3168
    %v3602 = vunpack.c.h.b16 %v3168
    %v3603 = vunpack.c.l.b16 %v3169
    %v3604 = vunpack.c.h.b16 %v3169
    %v3605 = vunpack.c.l.b16 %v3170
    %v3606 = vunpack.c.h.b16 %v3170
    %v3607 = vunpack.c.l.b16 %v3171
    %v3608 = vunpack.c.h.b16 %v3171
    %v3609 = vunpack.c.l.b16 %v3172
    %v3610 = vunpack.c.h.b16 %v3172
    %v3611 = vunpack.c.l.b16 %v3173
    %v3612 = vunpack.c.h.b16 %v3173
    %v3613 = vunpack.c.l.b16 %v3174
    %v3614 = vunpack.c.h.b16 %v3174
    %v3615 = vunpack.c.l.b16 %v3175
    %v3616 = vunpack.c.h.b16 %v3175
    %v3617 = vunpack.c.l.b16 %v3176
    %v3618 = vunpack.c.h.b16 %v3176
    %v3619 = vunpack.c.l.b16 %v3177
    %v3620 = vunpack.c.h.b16 %v3177
    %v3621 = vunpack.c.l.b16 %v3178
    %v3622 = vunpack.c.h.b16 %v3178
    %v3623 = vunpack.c.l.b16 %v3179
    %v3624 = vunpack.c.h.b16 %v3179
    %v3625 = vunpack.c.l.b16 %v3180
    %v3626 = vunpack.c.h.b16 %v3180
    %v3627 = vunpack.c.l.b16 %v3181
    %v3628 = vunpack.c.h.b16 %v3181
    %v3629 = vunpack.c.l.b16 %v3182
    %v3630 = vunpack.c.h.b16 %v3182
    %v3631 = vunpack.c.l.b16 %v3183
    %v3632 = vunpack.c.h.b16 %v3183
    %v3633 = vunpack.c.l.b16 %v3184
    %v3634 = vunpack.c.h.b16 %v3184
    %v3635 = vunpack.c.l.b16 %v3185
    %v3636 = vunpack.c.h.b16 %v3185
    %v3637 = vunpack.c.l.b16 %v3186
    %v3638 = vunpack.c.h.b16 %v3186
    %v3639 = vunpack.c.l.b16 %v3187
    %v3640 = vunpack.c.h.b16 %v3187
    %v3641 = vunpack.c.l.b16 %v3188
    %v3642 = vunpack.c.h.b16 %v3188
    %v3643 = vunpack.c.l.b16 %v3189
    %v3644 = vunpack.c.h.b16 %v3189
    %v3645 = vunpack.c.l.b16 %v3190
    %v3646 = vunpack.c.h.b16 %v3190
    %v3647 = vunpack.c.l.b16 %v3191
    %v3648 = vunpack.c.h.b16 %v3191
    %v3649 = vunpack.c.l.b16 %v3192
    %v3650 = vunpack.c.h.b16 %v3192
    %v3651 = vunpack.c.l.b16 %v3193
    %v3652 = vunpack.c.h.b16 %v3193
    %v3653 = vunpack.c.l.b16 %v3194
    %v3654 = vunpack.c.h.b16 %v3194
    %v3655 = vunpack.c.l.b16 %v3195
    %v3656 = vunpack.c.h.b16 %v3195
    %v3657 = vunpack.c.l.b16 %v3196
    %v3658 = vunpack.c.h.b16 %v3196
    %v3659 = vunpack.c.l.b16 %v3197
    %v3660 = vunpack.c.h.b16 %v3197
    %v3661 = vunpack.c.l.b16 %v3198
    %v3662 = vunpack.c.h.b16 %v3198
    %v3663 = vunpack.c.l.b16 %v3199
    %v3664 = vunpack.c.h.b16 %v3199
    %v3665 = vunpack.c.l.b16 %v3200
    %v3666 = vunpack.c.h.b16 %v3200
    %v3667 = vunpack.c.l.b16 %v3201
    %v3668 = vunpack.c.h.b16 %v3201
    %v3669 = vunpack.c.l.b16 %v3202
    %v3670 = vunpack.c.h.b16 %v3202
    %v3671 = vunpack.c.l.b16 %v3203
    %v3672 = vunpack.c.h.b16 %v3203
    %v3673 = vunpack.c.l.b16 %v3204
    %v3674 = vunpack.c.h.b16 %v3204
    %v3675 = vunpack.c.l.b16 %v3205
    %v3676 = vunpack.c.h.b16 %v3205
    %v3677 = vunpack.c.l.b16 %v3206
    %v3678 = vunpack.c.h.b16 %v3206
    %v3679 = vunpack.c.l.b16 %v3207
    %v3680 = vunpack.c.h.b16 %v3207
    %v3681 = vunpack.c.l.b16 %v3208
    %v3682 = vunpack.c.h.b16 %v3208
    %v3683 = vunpack.c.l.b16 %v3209
    %v3684 = vunpack.c.h.b16 %v3209
    %v3685 = vunpack.c.l.b16 %v3210
    %v3686 = vunpack.c.h.b16 %v3210
    %v3687 = vunpack.c.l.b16 %v3211
    %v3688 = vunpack.c.h.b16 %v3211
    %v3689 = vunpack.c.l.b16 %v3212
    %v3690 = vunpack.c.h.b16 %v3212
    %v3691 = vunpack.c.l.b16 %v3213
    %v3692 = vunpack.c.h.b16 %v3213
    %v3693 = vunpack.c.l.b16 %v3214
    %v3694 = vunpack.c.h.b16 %v3214
    %v3695 = vunpack.c.l.b16 %v3215
    %v3696 = vunpack.c.h.b16 %v3215
    %v3697 = vunpack.c.l.b16 %v3216
    %v3698 = vunpack.c.h.b16 %v3216
    %v3699 = vunpack.c.l.b16 %v3217
    %v3700 = vunpack.c.h.b16 %v3217
    %v3701 = vunpack.c.l.b16 %v3218
    %v3702 = vunpack.c.h.b16 %v3218
    %v3703 = vunpack.c.l.b16 %v3219
    %v3704 = vunpack.c.h.b16 %v3219
    %v3705 = vunpack.c.l.b16 %v3220
    %v3706 = vunpack.c.h.b16 %v3220
    %v3707 = vunpack.c.l.b16 %v3221
    %v3708 = vunpack.c.h.b16 %v3221
    %v3709 = vunpack.c.l.b16 %v3222
    %v3710 = vunpack.c.h.b16 %v3222
    %v3711 = vunpack.c.l.b16 %v3223
    %v3712 = vunpack.c.h.b16 %v3223
    %v3713 = vunpack.c.l.b16 %v3224
    %v3714 = vunpack.c.h.b16 %v3224
    %v3715 = vpack.c.b16 %v3399, %v3395
    %v3716 = vpack.c.b16 %v3400, %v3396
    %v3717 = vpack.c.b16 %v3401, %v3397
    %v3718 = vpack.c.b16 %v3402, %v3398
    %v3719 = vpack.c.b16 %v3407, %v3403
    %v3720 = vpack.c.b16 %v3408, %v3404
    %v3721 = vpack.c.b16 %v3409, %v3405
    %v3722 = vpack.c.b16 %v3410, %v3406
    %v3723 = vpack.c.b16 %v3415, %v3411
    %v3724 = vpack.c.b16 %v3416, %v3412
    %v3725 = vpack.c.b16 %v3417, %v3413
    %v3726 = vpack.c.b16 %v3418, %v3414
    %v3727 = vpack.c.b16 %v3423, %v3419
    %v3728 = vpack.c.b16 %v3424, %v3420
    %v3729 = vpack.c.b16 %v3425, %v3421
    %v3730 = vpack.c.b16 %v3426, %v3422
    %v3731 = vpack.c.b16 %v3431, %v3427
    %v3732 = vpack.c.b16 %v3432, %v3428
    %v3733 = vpack.c.b16 %v3433, %v3429
    %v3734 = vpack.c.b16 %v3434, %v3430
    %v3735 = vpack.c.b16 %v3439, %v3435
    %v3736 = vpack.c.b16 %v3440, %v3436
    %v3737 = vpack.c.b16 %v3441, %v3437
    %v3738 = vpack.c.b16 %v3442, %v3438
    %v3739 = vpack.c.b16 %v3447, %v3443
    %v3740 = vpack.c.b16 %v3448, %v3444
    %v3741 = vpack.c.b16 %v3449, %v3445
    %v3742 = vpack.c.b16 %v3450, %v3446
    %v3743 = vpack.c.b16 %v3455, %v3451
    %v3744 = vpack.c.b16 %v3456, %v3452
    %v3745 = vpack.c.b16 %v3457, %v3453
    %v3746 = vpack.c.b16 %v3458, %v3454
    %v3747 = vpack.c.b16 %v3463, %v3459
    %v3748 = vpack.c.b16 %v3464, %v3460
    %v3749 = vpack.c.b16 %v3465, %v3461
    %v3750 = vpack.c.b16 %v3466, %v3462
    %v3751 = vpack.c.b16 %v3471, %v3467
    %v3752 = vpack.c.b16 %v3472, %v3468
    %v3753 = vpack.c.b16 %v3473, %v3469
    %v3754 = vpack.c.b16 %v3474, %v3470
    %v3755 = vpack.c.b16 %v3479, %v3475
    %v3756 = vpack.c.b16 %v3480, %v3476
    %v3757 = vpack.c.b16 %v3481, %v3477
    %v3758 = vpack.c.b16 %v3482, %v3478
    %v3759 = vpack.c.b16 %v3487, %v3483
    %v3760 = vpack.c.b16 %v3488, %v3484
    %v3761 = vpack.c.b16 %v3489, %v3485
    %v3762 = vpack.c.b16 %v3490, %v3486
    %v3763 = vpack.c.b16 %v3495, %v3491
    %v3764 = vpack.c.b16 %v3496, %v3492
    %v3765 = vpack.c.b16 %v3497, %v3493
    %v3766 = vpack.c.b16 %v3498, %v3494
    %v3767 = vpack.c.b16 %v3503, %v3499
    %v3768 = vpack.c.b16 %v3504, %v3500
    %v3769 = vpack.c.b16 %v3505, %v3501
    %v3770 = vpack.c.b16 %v3506, %v3502
    %v3771 = vpack.c.b16 %v3511, %v3507
    %v3772 = vpack.c.b16 %v3512, %v3508
    %v3773 = vpack.c.b16 %v3513, %v3509
    %v3774 = vpack.c.b16 %v3514, %v3510
    %v3775 = vpack.c.b16 %v3519, %v3515
    %v3776 = vpack.c.b16 %v3520, %v3516
    %v3777 = vpack.c.b16 %v3521, %v3517
    %v3778 = vpack.c.b16 %v3522, %v3518
    %v3779 = vpack.c.b16 %v3527, %v3523
    %v3780 = vpack.c.b16 %v3528, %v3524
    %v3781 = vpack.c.b16 %v3529, %v3525
    %v3782 = vpack.c.b16 %v3530, %v3526
    %v3783 = vpack.c.b16 %v3535, %v3531
    %v3784 = vpack.c.b16 %v3536, %v3532
    %v3785 = vpack.c.b16 %v3537, %v3533
    %v3786 = vpack.c.b16 %v3538, %v3534
    %v3787 = vpack.c.b16 %v3543, %v3539
    %v3788 = vpack.c.b16 %v3544, %v3540
    %v3789 = vpack.c.b16 %v3545, %v3541
    %v3790 = vpack.c.b16 %v3546, %v3542
    %v3791 = vpack.c.b16 %v3551, %v3547
    %v3792 = vpack.c.b16 %v3552, %v3548
    %v3793 = vpack.c.b16 %v3553, %v3549
    %v3794 = vpack.c.b16 %v3554, %v3550
    %v3795 = vpack.c.b16 %v3559, %v3555
    %v3796 = vpack.c.b16 %v3560, %v3556
    %v3797 = vpack.c.b16 %v3561, %v3557
    %v3798 = vpack.c.b16 %v3562, %v3558
    %v3799 = vpack.c.b16 %v3567, %v3563
    %v3800 = vpack.c.b16 %v3568, %v3564
    %v3801 = vpack.c.b16 %v3569, %v3565
    %v3802 = vpack.c.b16 %v3570, %v3566
    %v3803 = vpack.c.b16 %v3575, %v3571
    %v3804 = vpack.c.b16 %v3576, %v3572
    %v3805 = vpack.c.b16 %v3577, %v3573
    %v3806 = vpack.c.b16 %v3578, %v3574
    %v3807 = vpack.c.b16 %v3583, %v3579
    %v3808 = vpack.c.b16 %v3584, %v3580
    %v3809 = vpack.c.b16 %v3585, %v3581
    %v3810 = vpack.c.b16 %v3586, %v3582
    %v3811 = vpack.c.b16 %v3591, %v3587
    %v3812 = vpack.c.b16 %v3592, %v3588
    %v3813 = vpack.c.b16 %v3593, %v3589
    %v3814 = vpack.c.b16 %v3594, %v3590
    %v3815 = vpack.c.b16 %v3599, %v3595
    %v3816 = vpack.c.b16 %v3600, %v3596
    %v3817 = vpack.c.b16 %v3601, %v3597
    %v3818 = vpack.c.b16 %v3602, %v3598
    %v3819 = vpack.c.b16 %v3607, %v3603
    %v3820 = vpack.c.b16 %v3608, %v3604
    %v3821 = vpack.c.b16 %v3609, %v3605
    %v3822 = vpack.c.b16 %v3610, %v3606
    %v3823 = vpack.c.b16 %v3615, %v3611
    %v3824 = vpack.c.b16 %v3616, %v3612
    %v3825 = vpack.c.b16 %v3617, %v3613
    %v3826 = vpack.c.b16 %v3618, %v3614
    %v3827 = vpack.c.b16 %v3623, %v3619
    %v3828 = vpack.c.b16 %v3624, %v3620
    %v3829 = vpack.c.b16 %v3625, %v3621
    %v3830 = vpack.c.b16 %v3626, %v3622
    %v3831 = vpack.c.b16 %v3631, %v3627
    %v3832 = vpack.c.b16 %v3632, %v3628
    %v3833 = vpack.c.b16 %v3633, %v3629
    %v3834 = vpack.c.b16 %v3634, %v3630
    %v3835 = vpack.c.b16 %v3639, %v3635
    %v3836 = vpack.c.b16 %v3640, %v3636
    %v3837 = vpack.c.b16 %v3641, %v3637
    %v3838 = vpack.c.b16 %v3642, %v3638
    %v3839 = vpack.c.b16 %v3647, %v3643
    %v3840 = vpack.c.b16 %v3648, %v3644
    %v3841 = vpack.c.b16 %v3649, %v3645
    %v3842 = vpack.c.b16 %v3650, %v3646
    %v3843 = vpack.c.b16 %v3655, %v3651
    %v3844 = vpack.c.b16 %v3656, %v3652
    %v3845 = vpack.c.b16 %v3657, %v3653
    %v3846 = vpack.c.b16 %v3658, %v3654
    %v3847 = vpack.c.b16 %v3663, %v3659
    %v3848 = vpack.c.b16 %v3664, %v3660
    %v3849 = vpack.c.b16 %v3665, %v3661
    %v3850 = vpack.c.b16 %v3666, %v3662
    %v3851 = vpack.c.b16 %v3671, %v3667
    %v3852 = vpack.c.b16 %v3672, %v3668
    %v3853 = vpack.c.b16 %v3673, %v3669
    %v3854 = vpack.c.b16 %v3674, %v3670
    %v3855 = vpack.c.b16 %v3679, %v3675
    %v3856 = vpack.c.b16 %v3680, %v3676
    %v3857 = vpack.c.b16 %v3681, %v3677
    %v3858 = vpack.c.b16 %v3682, %v3678
    %v3859 = vpack.c.b16 %v3687, %v3683
    %v3860 = vpack.c.b16 %v3688, %v3684
    %v3861 = vpack.c.b16 %v3689, %v3685
    %v3862 = vpack.c.b16 %v3690, %v3686
    %v3863 = vpack.c.b16 %v3695, %v3691
    %v3864 = vpack.c.b16 %v3696, %v3692
    %v3865 = vpack.c.b16 %v3697, %v3693
    %v3866 = vpack.c.b16 %v3698, %v3694
    %v3867 = vpack.c.b16 %v3703, %v3699
    %v3868 = vpack.c.b16 %v3704, %v3700
    %v3869 = vpack.c.b16 %v3705, %v3701
    %v3870 = vpack.c.b16 %v3706, %v3702
    %v3871 = vpack.c.b16 %v3711, %v3707
    %v3872 = vpack.c.b16 %v3712, %v3708
    %v3873 = vpack.c.b16 %v3713, %v3709
    %v3874 = vpack.c.b16 %v3714, %v3710
    %4035 = vmatpush.bf16.msra.mxu0 %v3743
    %4036 = vmatpush.bf16.msra.mxu0 %v3739
    %4037 = vmatpush.bf16.msra.mxu0 %v3735
    %4038 = vmatpush.bf16.msra.mxu0 %v3731
    %4039 = vmatpush.bf16.msra.mxu0 %v3727
    %4040 = vmatpush.bf16.msra.mxu0 %v3723
    %4041 = vmatpush.bf16.msra.mxu0 %v3719
    %4042 = vmatpush.bf16.msra.mxu0 %v3715
    %4043 = vmatmul.bf16.gmra.mxu0 %v3060
    %v4044 = vpop.f32.mrf.mxu0
    %v4045 = vadd.f32 %v3227, %v4044
    %v4046 = vpop.f32.mrf.mxu0
    %4047 = vdwg.mxu0
    %4048 = vmatpush.bf16.msra.mxu0 %v3775
    %4049 = vmatpush.bf16.msra.mxu0 %v3771
    %4050 = vmatpush.bf16.msra.mxu0 %v3767
    %4051 = vmatpush.bf16.msra.mxu0 %v3763
    %4052 = vmatpush.bf16.msra.mxu0 %v3759
    %4053 = vmatpush.bf16.msra.mxu0 %v3755
    %4054 = vmatpush.bf16.msra.mxu0 %v3751
    %4055 = vmatpush.bf16.msra.mxu0 %v3747
    %4056 = vmatmul.bf16.gmra.mxu0 %v3061
    %v4057 = vpop.f32.mrf.mxu0
    %v4058 = vadd.f32 %v4045, %v4057
    %v4059 = vpop.f32.mrf.mxu0
    %4060 = vdwg.mxu0
    %4061 = vmatpush.bf16.msra.mxu0 %v3807
    %4062 = vmatpush.bf16.msra.mxu0 %v3803
    %4063 = vmatpush.bf16.msra.mxu0 %v3799
    %4064 = vmatpush.bf16.msra.mxu0 %v3795
    %4065 = vmatpush.bf16.msra.mxu0 %v3791
    %4066 = vmatpush.bf16.msra.mxu0 %v3787
    %4067 = vmatpush.bf16.msra.mxu0 %v3783
    %4068 = vmatpush.bf16.msra.mxu0 %v3779
    %4069 = vmatmul.bf16.gmra.mxu0 %v3062
    %v4070 = vpop.f32.mrf.mxu0
    %v4071 = vadd.f32 %v4058, %v4070
    %v4072 = vpop.f32.mrf.mxu0
    %4073 = vdwg.mxu0
    %4074 = vmatpush.bf16.msra.mxu0 %v3839
    %4075 = vmatpush.bf16.msra.mxu0 %v3835
    %4076 = vmatpush.bf16.msra.mxu0 %v3831
    %4077 = vmatpush.bf16.msra.mxu0 %v3827
    %4078 = vmatpush.bf16.msra.mxu0 %v3823
    %4079 = vmatpush.bf16.msra.mxu0 %v3819
    %4080 = vmatpush.bf16.msra.mxu0 %v3815
    %4081 = vmatpush.bf16.msra.mxu0 %v3811
    %4082 = vmatmul.bf16.gmra.mxu0 %v3063
    %v4083 = vpop.f32.mrf.mxu0
    %v4084 = vadd.f32 %v4071, %v4083
    %v4085 = vpop.f32.mrf.mxu0
    %4086 = vdwg.mxu0
    %4087 = vmatpush.bf16.msra.mxu0 %v3871
    %4088 = vmatpush.bf16.msra.mxu0 %v3867
    %4089 = vmatpush.bf16.msra.mxu0 %v3863
    %4090 = vmatpush.bf16.msra.mxu0 %v3859
    %4091 = vmatpush.bf16.msra.mxu0 %v3855
    %4092 = vmatpush.bf16.msra.mxu0 %v3851
    %4093 = vmatpush.bf16.msra.mxu0 %v3847
    %4094 = vmatpush.bf16.msra.mxu0 %v3843
    %4095 = vmatmul.bf16.gmra.mxu0 %v3064
    %v4096 = vpop.f32.mrf.mxu0
    %v4097 = vadd.f32 %v4084, %v4096
    %v4098 = vpop.f32.mrf.mxu0
    %4099 = vdwg.mxu0
    %4100 = vmatpush.bf16.msra.mxu0 %v3744
    %4101 = vmatpush.bf16.msra.mxu0 %v3740
    %4102 = vmatpush.bf16.msra.mxu0 %v3736
    %4103 = vmatpush.bf16.msra.mxu0 %v3732
    %4104 = vmatpush.bf16.msra.mxu0 %v3728
    %4105 = vmatpush.bf16.msra.mxu0 %v3724
    %4106 = vmatpush.bf16.msra.mxu0 %v3720
    %4107 = vmatpush.bf16.msra.mxu0 %v3716
    %4108 = vmatmul.bf16.gmra.mxu0 %v3060
    %v4109 = vpop.f32.mrf.mxu0
    %v4110 = vadd.f32 %v3228, %v4109
    %v4111 = vpop.f32.mrf.mxu0
    %4112 = vdwg.mxu0
    %4113 = vmatpush.bf16.msra.mxu0 %v3776
    %4114 = vmatpush.bf16.msra.mxu0 %v3772
    %4115 = vmatpush.bf16.msra.mxu0 %v3768
    %4116 = vmatpush.bf16.msra.mxu0 %v3764
    %4117 = vmatpush.bf16.msra.mxu0 %v3760
    %4118 = vmatpush.bf16.msra.mxu0 %v3756
    %4119 = vmatpush.bf16.msra.mxu0 %v3752
    %4120 = vmatpush.bf16.msra.mxu0 %v3748
    %4121 = vmatmul.bf16.gmra.mxu0 %v3061
    %v4122 = vpop.f32.mrf.mxu0
    %v4123 = vadd.f32 %v4110, %v4122
    %v4124 = vpop.f32.mrf.mxu0
    %4125 = vdwg.mxu0
    %4126 = vmatpush.bf16.msra.mxu0 %v3808
    %4127 = vmatpush.bf16.msra.mxu0 %v3804
    %4128 = vmatpush.bf16.msra.mxu0 %v3800
    %4129 = vmatpush.bf16.msra.mxu0 %v3796
    %4130 = vmatpush.bf16.msra.mxu0 %v3792
    %4131 = vmatpush.bf16.msra.mxu0 %v3788
    %4132 = vmatpush.bf16.msra.mxu0 %v3784
    %4133 = vmatpush.bf16.msra.mxu0 %v3780
    %4134 = vmatmul.bf16.gmra.mxu0 %v3062
    %v4135 = vpop.f32.mrf.mxu0
    %v4136 = vadd.f32 %v4123, %v4135
    %v4137 = vpop.f32.mrf.mxu0
    %4138 = vdwg.mxu0
    %4139 = vmatpush.bf16.msra.mxu0 %v3840
    %4140 = vmatpush.bf16.msra.mxu0 %v3836
    %4141 = vmatpush.bf16.msra.mxu0 %v3832
    %4142 = vmatpush.bf16.msra.mxu0 %v3828
    %4143 = vmatpush.bf16.msra.mxu0 %v3824
    %4144 = vmatpush.bf16.msra.mxu0 %v3820
    %4145 = vmatpush.bf16.msra.mxu0 %v3816
    %4146 = vmatpush.bf16.msra.mxu0 %v3812
    %4147 = vmatmul.bf16.gmra.mxu0 %v3063
    %v4148 = vpop.f32.mrf.mxu0
    %v4149 = vadd.f32 %v4136, %v4148
    %v4150 = vpop.f32.mrf.mxu0
    %4151 = vdwg.mxu0
    %4152 = vmatpush.bf16.msra.mxu0 %v3872
    %4153 = vmatpush.bf16.msra.mxu0 %v3868
    %4154 = vmatpush.bf16.msra.mxu0 %v3864
    %4155 = vmatpush.bf16.msra.mxu0 %v3860
    %4156 = vmatpush.bf16.msra.mxu0 %v3856
    %4157 = vmatpush.bf16.msra.mxu0 %v3852
    %4158 = vmatpush.bf16.msra.mxu0 %v3848
    %4159 = vmatpush.bf16.msra.mxu0 %v3844
    %4160 = vmatmul.bf16.gmra.mxu0 %v3064
    %v4161 = vpop.f32.mrf.mxu0
    %v4162 = vadd.f32 %v4149, %v4161
    %v4163 = vpop.f32.mrf.mxu0
    %4164 = vdwg.mxu0
    %4165 = vmatpush.bf16.msra.mxu0 %v3745
    %4166 = vmatpush.bf16.msra.mxu0 %v3741
    %4167 = vmatpush.bf16.msra.mxu0 %v3737
    %4168 = vmatpush.bf16.msra.mxu0 %v3733
    %4169 = vmatpush.bf16.msra.mxu0 %v3729
    %4170 = vmatpush.bf16.msra.mxu0 %v3725
    %4171 = vmatpush.bf16.msra.mxu0 %v3721
    %4172 = vmatpush.bf16.msra.mxu0 %v3717
    %4173 = vmatmul.bf16.gmra.mxu0 %v3060
    %v4174 = vpop.f32.mrf.mxu0
    %v4175 = vadd.f32 %v3229, %v4174
    %v4176 = vpop.f32.mrf.mxu0
    %4177 = vdwg.mxu0
    %4178 = vmatpush.bf16.msra.mxu0 %v3777
    %4179 = vmatpush.bf16.msra.mxu0 %v3773
    %4180 = vmatpush.bf16.msra.mxu0 %v3769
    %4181 = vmatpush.bf16.msra.mxu0 %v3765
    %4182 = vmatpush.bf16.msra.mxu0 %v3761
    %4183 = vmatpush.bf16.msra.mxu0 %v3757
    %4184 = vmatpush.bf16.msra.mxu0 %v3753
    %4185 = vmatpush.bf16.msra.mxu0 %v3749
    %4186 = vmatmul.bf16.gmra.mxu0 %v3061
    %v4187 = vpop.f32.mrf.mxu0
    %v4188 = vadd.f32 %v4175, %v4187
    %v4189 = vpop.f32.mrf.mxu0
    %4190 = vdwg.mxu0
    %4191 = vmatpush.bf16.msra.mxu0 %v3809
    %4192 = vmatpush.bf16.msra.mxu0 %v3805
    %4193 = vmatpush.bf16.msra.mxu0 %v3801
    %4194 = vmatpush.bf16.msra.mxu0 %v3797
    %4195 = vmatpush.bf16.msra.mxu0 %v3793
    %4196 = vmatpush.bf16.msra.mxu0 %v3789
    %4197 = vmatpush.bf16.msra.mxu0 %v3785
    %4198 = vmatpush.bf16.msra.mxu0 %v3781
    %4199 = vmatmul.bf16.gmra.mxu0 %v3062
    %v4200 = vpop.f32.mrf.mxu0
    %v4201 = vadd.f32 %v4188, %v4200
    %v4202 = vpop.f32.mrf.mxu0
    %4203 = vdwg.mxu0
    %4204 = vmatpush.bf16.msra.mxu0 %v3841
    %4205 = vmatpush.bf16.msra.mxu0 %v3837
    %4206 = vmatpush.bf16.msra.mxu0 %v3833
    %4207 = vmatpush.bf16.msra.mxu0 %v3829
    %4208 = vmatpush.bf16.msra.mxu0 %v3825
    %4209 = vmatpush.bf16.msra.mxu0 %v3821
    %4210 = vmatpush.bf16.msra.mxu0 %v3817
    %4211 = vmatpush.bf16.msra.mxu0 %v3813
    %4212 = vmatmul.bf16.gmra.mxu0 %v3063
    %v4213 = vpop.f32.mrf.mxu0
    %v4214 = vadd.f32 %v4201, %v4213
    %v4215 = vpop.f32.mrf.mxu0
    %4216 = vdwg.mxu0
    %4217 = vmatpush.bf16.msra.mxu0 %v3873
    %4218 = vmatpush.bf16.msra.mxu0 %v3869
    %4219 = vmatpush.bf16.msra.mxu0 %v3865
    %4220 = vmatpush.bf16.msra.mxu0 %v3861
    %4221 = vmatpush.bf16.msra.mxu0 %v3857
    %4222 = vmatpush.bf16.msra.mxu0 %v3853
    %4223 = vmatpush.bf16.msra.mxu0 %v3849
    %4224 = vmatpush.bf16.msra.mxu0 %v3845
    %4225 = vmatmul.bf16.gmra.mxu0 %v3064
    %v4226 = vpop.f32.mrf.mxu0
    %v4227 = vadd.f32 %v4214, %v4226
    %v4228 = vpop.f32.mrf.mxu0
    %4229 = vdwg.mxu0
    %4230 = vmatpush.bf16.msra.mxu0 %v3746
    %4231 = vmatpush.bf16.msra.mxu0 %v3742
    %4232 = vmatpush.bf16.msra.mxu0 %v3738
    %4233 = vmatpush.bf16.msra.mxu0 %v3734
    %4234 = vmatpush.bf16.msra.mxu0 %v3730
    %4235 = vmatpush.bf16.msra.mxu0 %v3726
    %4236 = vmatpush.bf16.msra.mxu0 %v3722
    %4237 = vmatpush.bf16.msra.mxu0 %v3718
    %4238 = vmatmul.bf16.gmra.mxu0 %v3060
    %v4239 = vpop.f32.mrf.mxu0
    %v4240 = vadd.f32 %v3230, %v4239
    %v4241 = vpop.f32.mrf.mxu0
    %4242 = vdwg.mxu0
    %4243 = vmatpush.bf16.msra.mxu0 %v3778
    %4244 = vmatpush.bf16.msra.mxu0 %v3774
    %4245 = vmatpush.bf16.msra.mxu0 %v3770
    %4246 = vmatpush.bf16.msra.mxu0 %v3766
    %4247 = vmatpush.bf16.msra.mxu0 %v3762
    %4248 = vmatpush.bf16.msra.mxu0 %v3758
    %4249 = vmatpush.bf16.msra.mxu0 %v3754
    %4250 = vmatpush.bf16.msra.mxu0 %v3750
    %4251 = vmatmul.bf16.gmra.mxu0 %v3061
    %v4252 = vpop.f32.mrf.mxu0
    %v4253 = vadd.f32 %v4240, %v4252
    %v4254 = vpop.f32.mrf.mxu0
    %4255 = vdwg.mxu0
    %4256 = vmatpush.bf16.msra.mxu0 %v3810
    %4257 = vmatpush.bf16.msra.mxu0 %v3806
    %4258 = vmatpush.bf16.msra.mxu0 %v3802
    %4259 = vmatpush.bf16.msra.mxu0 %v3798
    %4260 = vmatpush.bf16.msra.mxu0 %v3794
    %4261 = vmatpush.bf16.msra.mxu0 %v3790
    %4262 = vmatpush.bf16.msra.mxu0 %v3786
    %4263 = vmatpush.bf16.msra.mxu0 %v3782
    %4264 = vmatmul.bf16.gmra.mxu0 %v3062
    %v4265 = vpop.f32.mrf.mxu0
    %v4266 = vadd.f32 %v4253, %v4265
    %v4267 = vpop.f32.mrf.mxu0
    %4268 = vdwg.mxu0
    %4269 = vmatpush.bf16.msra.mxu0 %v3842
    %4270 = vmatpush.bf16.msra.mxu0 %v3838
    %4271 = vmatpush.bf16.msra.mxu0 %v3834
    %4272 = vmatpush.bf16.msra.mxu0 %v3830
    %4273 = vmatpush.bf16.msra.mxu0 %v3826
    %4274 = vmatpush.bf16.msra.mxu0 %v3822
    %4275 = vmatpush.bf16.msra.mxu0 %v3818
    %4276 = vmatpush.bf16.msra.mxu0 %v3814
    %4277 = vmatmul.bf16.gmra.mxu0 %v3063
    %v4278 = vpop.f32.mrf.mxu0
    %v4279 = vadd.f32 %v4266, %v4278
    %v4280 = vpop.f32.mrf.mxu0
    %4281 = vdwg.mxu0
    %4282 = vmatpush.bf16.msra.mxu0 %v3874
    %4283 = vmatpush.bf16.msra.mxu0 %v3870
    %4284 = vmatpush.bf16.msra.mxu0 %v3866
    %4285 = vmatpush.bf16.msra.mxu0 %v3862
    %4286 = vmatpush.bf16.msra.mxu0 %v3858
    %4287 = vmatpush.bf16.msra.mxu0 %v3854
    %4288 = vmatpush.bf16.msra.mxu0 %v3850
    %4289 = vmatpush.bf16.msra.mxu0 %v3846
    %4290 = vmatmul.bf16.gmra.mxu0 %v3064
    %v4291 = vpop.f32.mrf.mxu0
    %v4292 = vadd.f32 %v4279, %v4291
    %v4293 = vpop.f32.mrf.mxu0
    %4294 = vdwg.mxu0
    %4295 = vst [vmem:[%s7] sm:$0xff] %v4097
    %4296 = vst [vmem:[%s7 + $0x8] sm:$0xff] %v4162
    %4297 = vst [vmem:[%s7 + $0x10] sm:$0xff] %v4227
    %4298 = vst.msk [vmem:[%s7 + $0x18] sm:$0xff] %vm1070, %v4292
    // Predicated region
    $region34: #{ann_forward.1} parent=1 // pred_check
      _
    $region35: #{ann_forward.1} parent=1 // pred_check_branch
      %4300 = sbr.rel (0) target = $region37
    $region36: #{ann_forward.1} parent=1 // pred_region
      _
    $region37: #{ann_forward.1} parent=1 // pred_fallthru
      _
    // Predicated region
    $region38: #{ann_forward.1} parent=1 // pred_check
      _
    $region39: #{ann_forward.1} parent=1 // pred_check_branch
      %4302 = sbr.rel (0) target = $region41
    $region40: #{ann_forward.1} parent=1 // pred_region
      _
    $region41: #{ann_forward.1} parent=1 // pred_fallthru
      _
    %4303 = vsyncpa [#allocation3], 1

</llo_original>
